<compile_context>
chip_gen: v7x
topology: tpu7x:2x2x1
jax: 0.10.0
libtpu: 0.0.40
codegen_flags: <defaults>
</compile_context>

<pallas_src>
import functools

import jax
import jax.numpy as jnp
from jax.experimental import pallas as pl
from jax.experimental.pallas import tpu as pltpu


def _round_up(x, m):
    return (x + m - 1) // m * m


# ----------------------------------------------------------------------------
# Pallas kernel 1: tiled  out = relu?(x @ w + b)   (conv GEMM, bf16 in, f32 acc)
# ----------------------------------------------------------------------------
def _matmul_bias_kernel(x_ref, w_ref, b_ref, o_ref, *, relu):
    acc = jnp.dot(x_ref[...], w_ref[...], preferred_element_type=jnp.float32)
    acc = acc + b_ref[...]                      # b is (1, N) f32, broadcasts over rows
    if relu:
        acc = jnp.maximum(acc, 0.0)
    o_ref[...] = acc.astype(o_ref.dtype)


def matmul_bias(x, w, b, *, relu=False, out_dtype=jnp.bfloat16, tm_max=256):
    """x: (M, K) bf16, w: (K, N) bf16, b: (N,) f32 -> (M, N) out_dtype."""
    M, K = x.shape
    K2, N = w.shape
    assert K == K2, (K, K2)

    tm = min(tm_max, _round_up(M, 16))          # multiple of 16 (bf16 sublane tile)
    Mp = _round_up(M, tm)
    if Mp != M:
        x = jnp.pad(x, ((0, Mp - M), (0, 0)))   # keep every grid block full

    out = pl.pallas_call(
        functools.partial(_matmul_bias_kernel, relu=relu),
        out_shape=jax.ShapeDtypeStruct((Mp, N), out_dtype),
        grid=(Mp // tm,),
        in_specs=[
            pl.BlockSpec((tm, K), lambda i: (i, 0)),    # x rows: streamed
            pl.BlockSpec((K, N), lambda i: (0, 0)),     # w: resident
            pl.BlockSpec((1, N), lambda i: (0, 0)),     # b: resident
        ],
        out_specs=pl.BlockSpec((tm, N), lambda i: (i, 0)),
        compiler_params=pltpu.CompilerParams(dimension_semantics=("parallel",)),
        cost_estimate=pl.CostEstimate(
            flops=2 * Mp * K * N,
            transcendentals=0,
            bytes_accessed=Mp * K * 2 + K * N * 2 + N * 4 + Mp * N * 2),
    )(x, w, b.reshape(1, N))
    return out[:M] if Mp != M else out


# ----------------------------------------------------------------------------
# Pallas kernel 2: fused trunk Linear(1568->128) + concatenated pi/v heads.
# ----------------------------------------------------------------------------
def _trunk_head_kernel(flat_ref, fcw_ref, fcb_ref, hw_ref, hb_ref, o_ref):
    # mid = flat @ fc_w + fc_b.  NOTE: no activation here -- the torch
    # Sequential ends right after the Linear.
    mid = jnp.dot(flat_ref[...], fcw_ref[...], preferred_element_type=jnp.float32)
    mid = mid + fcb_ref[...]
    # heads: (pi | v | zero-pad) fused into one lane-dense 128-wide matmul.
    out = jnp.dot(mid, hw_ref[...].astype(jnp.float32),
                  preferred_element_type=jnp.float32)
    o_ref[...] = out + hb_ref[...]


def trunk_and_heads(flat, fc_w, fc_b, head_w, head_b, *, tm_max=128):
    """flat: (M, 1568) bf16 -> (M, HP) f32 where HP = padded(out_size + 1)."""
    M, K = flat.shape
    K2, H = fc_w.shape            # H = 128 (mid width)
    H2, HP = head_w.shape
    assert K == K2 and H == H2, (K, K2, H, H2)

    tm = min(tm_max, _round_up(M, 16))
    Mp = _round_up(M, tm)
    if Mp != M:
        flat = jnp.pad(flat, ((0, Mp - M), (0, 0)))

    out = pl.pallas_call(
        _trunk_head_kernel,
        out_shape=jax.ShapeDtypeStruct((Mp, HP), jnp.float32),
        grid=(Mp // tm,),
        in_specs=[
            pl.BlockSpec((tm, K), lambda i: (i, 0)),    # flat rows: streamed
            pl.BlockSpec((K, H), lambda i: (0, 0)),     # fc_w: resident
            pl.BlockSpec((1, H), lambda i: (0, 0)),     # fc_b: resident
            pl.BlockSpec((H, HP), lambda i: (0, 0)),    # fused head_w: resident
            pl.BlockSpec((1, HP), lambda i: (0, 0)),    # fused head_b: resident
        ],
        out_specs=pl.BlockSpec((tm, HP), lambda i: (i, 0)),
        compiler_params=pltpu.CompilerParams(dimension_semantics=("parallel",)),
        cost_estimate=pl.CostEstimate(
            flops=2 * Mp * K * H + 2 * Mp * H * HP,
            transcendentals=0,
            bytes_accessed=Mp * K * 2 + K * H * 2 + H * HP * 2 + Mp * HP * 4),
    )(flat, fc_w, fc_b.reshape(1, H), head_w, head_b.reshape(1, HP))
    return out[:M] if Mp != M else out


# ----------------------------------------------------------------------------
# Conv2d (valid padding) in NHWC: light patch gather + Pallas GEMM kernel.
# ----------------------------------------------------------------------------
def conv2d_nhwc(x, w, b, *, stride, relu):
    """x: (N, H, W, C) bf16, w: (k, k, C, O) bf16 (HWIO), b: (O,) f32."""
    N, H, W, C = x.shape
    k, _, _, O = w.shape
    Ho = (H - k) // stride + 1
    Wo = (W - k) // stride + 1

    taps = []
    for i in range(k):
        for j in range(k):
            taps.append(x[:, i: i + stride * (Ho - 1) + 1: stride,
                            j: j + stride * (Wo - 1) + 1: stride, :])
    # (N, Ho, Wo, k*k, C): tap-major-then-channel order matches w.reshape(k*k*C, O),
    # and no transpose is needed afterwards (NHWC keeps C in the lanes).
    patches = jnp.stack(taps, axis=3).reshape(N * Ho * Wo, k * k * C)

    out = matmul_bias(patches, w.reshape(k * k * C, O), b, relu=relu,
                      out_dtype=jnp.bfloat16)                  # (N*Ho*Wo, O)
    return out.reshape(N, Ho, Wo, O)                           # stays NHWC


# ----------------------------------------------------------------------------
# Full ActorCritic forward (Pallas path).  Input x is NCHW, like the nn.Module.
# ----------------------------------------------------------------------------
def actor_critic_forward(kparams, x_nchw, out_size):
    x = jnp.transpose(x_nchw, (0, 2, 3, 1)).astype(jnp.bfloat16)   # one-time NHWC + bf16
    h = conv2d_nhwc(x, kparams["c1_w"], kparams["c1_b"], stride=2, relu=True)
    h = conv2d_nhwc(h, kparams["c2_w"], kparams["c2_b"], stride=2, relu=True)
    h = conv2d_nhwc(h, kparams["c3_w"], kparams["c3_b"], stride=2, relu=True)
    # NOTE: the 4th conv in the torch Sequential has NO ReLU after it.
    h = conv2d_nhwc(h, kparams["c4_w"], kparams["c4_b"], stride=1, relu=False)

    flat = h.reshape(h.shape[0], -1)                 # NHWC flatten, (N, 32*7*7)
    assert flat.shape[1] == kparams["fc_w"].shape[0], flat.shape

    out = trunk_and_heads(flat, kparams["fc_w"], kparams["fc_b"],
                          kparams["head_w"], kparams["head_b"])    # (N, HP) f32
    pi = out[:, :out_size]
    v = out[:, out_size:out_size + 1]
    return pi, v


# ----------------------------------------------------------------------------
# Pure-JAX reference (same parameter convention; f32 math).
# ----------------------------------------------------------------------------
def reference_forward(params, x_nchw):
    x = jnp.transpose(x_nchw, (0, 2, 3, 1)).astype(jnp.float32)

    def conv(h, w, b, stride):
        y = jax.lax.conv_general_dilated(
            h, w, (stride, stride), "VALID",
            dimension_numbers=("NHWC", "HWIO", "NHWC"))
        return y + b[None, None, None, :]

    h = jax.nn.relu(conv(x, params["c1_w"], params["c1_b"], 2))
    h = jax.nn.relu(conv(h, params["c2_w"], params["c2_b"], 2))
    h = jax.nn.relu(conv(h, params["c3_w"], params["c3_b"], 2))
    h = conv(h, params["c4_w"], params["c4_b"], 1)
    flat = h.reshape(h.shape[0], -1)
    mid = flat @ params["fc_w"] + params["fc_b"]
    pi = mid @ params["pi_w"] + params["pi_b"]
    v = mid @ params["v_w"] + params["v_b"]
    return pi, v


# ----------------------------------------------------------------------------
# Deterministic parameter construction (PyTorch-default-like uniform init).
# ----------------------------------------------------------------------------
def make_params(key, in_channel, out_size):
    ks = jax.random.split(key, 14)

    def u(k, shape, fan_in):
        bound = 1.0 / (fan_in ** 0.5)
        w = jax.random.uniform(k, shape, jnp.float32, -bound, bound)
        # Round weights through bf16 once so the Pallas (bf16) and reference
        # (f32) paths use numerically identical weight values.
        return w.astype(jnp.bfloat16).astype(jnp.float32)

    def ub(k, shape, fan_in):  # biases stay exact f32 in both paths
        bound = 1.0 / (fan_in ** 0.5)
        return jax.random.uniform(k, shape, jnp.float32, -bound, bound)

    return {
        # Conv weights in HWIO layout; a torch OIHW checkpoint would be
        # imported via w.transpose(2, 3, 1, 0).
        "c1_w": u(ks[0], (3, 3, in_channel, 32), in_channel * 9),
        "c1_b": ub(ks[1], (32,), in_channel * 9),
        "c2_w": u(ks[2], (3, 3, 32, 32), 32 * 9),
        "c2_b": ub(ks[3], (32,), 32 * 9),
        "c3_w": u(ks[4], (3, 3, 32, 32), 32 * 9),
        "c3_b": ub(ks[5], (32,), 32 * 9),
        "c4_w": u(ks[6], (3, 3, 32, 32), 32 * 9),
        "c4_b": ub(ks[7], (32,), 32 * 9),
        # fc rows are in NHWC (H, W, C) flatten order; a torch checkpoint's
        # (C, H, W)-ordered rows would be permuted once at import time.
        "fc_w": u(ks[8], (32 * 7 * 7, 128), 32 * 7 * 7),
        "fc_b": ub(ks[9], (128,), 32 * 7 * 7),
        "pi_w": u(ks[10], (128, out_size), 128),
        "pi_b": ub(ks[11], (out_size,), 128),
        "v_w": u(ks[12], (128, 1), 128),
        "v_b": ub(ks[13], (1,), 128),
    }


def prepare_kernel_params(params, out_size):
    """One-time host-side prep: bf16 weights + fused, lane-padded pi/v head."""
    hp = _round_up(out_size + 1, 128)
    head_w = jnp.concatenate([params["pi_w"], params["v_w"]], axis=1)
    head_w = jnp.pad(head_w, ((0, 0), (0, hp - (out_size + 1))))
    head_b = jnp.concatenate([params["pi_b"], params["v_b"]], axis=0)
    head_b = jnp.pad(head_b, (0, hp - (out_size + 1)))
    return {
        "c1_w": params["c1_w"].astype(jnp.bfloat16), "c1_b": params["c1_b"],
        "c2_w": params["c2_w"].astype(jnp.bfloat16), "c2_b": params["c2_b"],
        "c3_w": params["c3_w"].astype(jnp.bfloat16), "c3_b": params["c3_b"],
        "c4_w": params["c4_w"].astype(jnp.bfloat16), "c4_b": params["c4_b"],
        "fc_w": params["fc_w"].astype(jnp.bfloat16), "fc_b": params["fc_b"],
        "head_w": head_w.astype(jnp.bfloat16), "head_b": head_b,
    }


if __name__ == "__main__":
    in_channel, out_size, batch = 4, 7, 2
    key = jax.random.PRNGKey(0)
    pkey, xkey = jax.random.split(key)
    params = make_params(pkey, in_channel, out_size)
    kparams = prepare_kernel_params(params, out_size)

    # 84x84 is required so the conv stack produces exactly 7x7 spatial output
    # (the module hard-codes Linear(32*7*7, 128)).
    x = jax.random.uniform(xkey, (batch, in_channel, 84, 84), jnp.float32)

    fwd = jax.jit(lambda p, xx: actor_critic_forward(p, xx, out_size))
    pi, v = fwd(kparams, x)
    jax.block_until_ready((pi, v))
    assert pi.shape == (batch, out_size) and pi.dtype == jnp.float32
    assert v.shape == (batch, 1) and v.dtype == jnp.float32

    pi_ref, v_ref = jax.jit(reference_forward)(params, x)
    jax.block_until_ready((pi_ref, v_ref))
    # bf16 activations/weights on the Pallas path vs f32 reference.
    assert jnp.allclose(pi, pi_ref, atol=2e-2, rtol=2e-2), "pi mismatch"
    assert jnp.allclose(v, v_ref, atol=2e-2, rtol=2e-2), "v mismatch"

    print("KERNEL_OK")
</pallas_src>

<mosaic_0001>
module attributes {stable_mosaic.version = 11 : i64} {
  func.func @_matmul_bias_kernel(%arg0: i32, %arg1: memref<256x36xbf16, #tpu.memory_space<vmem>>, %arg2: memref<36x32xbf16, #tpu.memory_space<vmem>>, %arg3: memref<1x32xf32, #tpu.memory_space<vmem>>, %arg4: memref<256x32xbf16, #tpu.memory_space<vmem>>) attributes {dimension_semantics = [#tpu.dimension_semantics<parallel>], iteration_bounds = array<i64: 14>, scalar_prefetch = 0 : i64, scratch_operands = 0 : i64, tpu.core_type = #tpu.core_type<tc>, window_params = [{transform_indices = @transform_0, window_bounds = array<i64: 256, 36>}, {pipeline_mode = #tpu.pipeline_mode<synchronous>, transform_indices = @transform_1, window_bounds = array<i64: 36, 32>}, {pipeline_mode = #tpu.pipeline_mode<synchronous>, transform_indices = @transform_2, window_bounds = array<i64: 1, 32>}, {transform_indices = @transform_3, window_bounds = array<i64: 256, 32>}]} {
    %c0 = arith.constant 0 : index
    %c0_0 = arith.constant 0 : index
    %0 = vector.load %arg1[%c0, %c0_0] : memref<256x36xbf16, #tpu.memory_space<vmem>>, vector<256x36xbf16>
    %c0_1 = arith.constant 0 : index
    %c0_2 = arith.constant 0 : index
    %1 = vector.load %arg2[%c0_1, %c0_2] : memref<36x32xbf16, #tpu.memory_space<vmem>>, vector<36x32xbf16>
    %cst = arith.constant dense<0.000000e+00> : vector<256x32xf32>
    %2 = tpu.matmul %0, %1, %cst {dimension_numbers = #tpu.dot_dimension_numbers<[1], [0], [0], [1], [0, 0, 1, 1], [], []>} : vector<256x36xbf16>, vector<36x32xbf16>, vector<256x32xf32> -> vector<256x32xf32>
    %c0_3 = arith.constant 0 : index
    %c0_4 = arith.constant 0 : index
    %3 = vector.load %arg3[%c0_3, %c0_4] : memref<1x32xf32, #tpu.memory_space<vmem>>, vector<1x32xf32>
    %4 = vector.broadcast %3 : vector<1x32xf32> to vector<256x32xf32>
    %5 = arith.addf %2, %4 : vector<256x32xf32>
    %cst_5 = arith.constant 0.000000e+00 : f32
    %6 = vector.broadcast %cst_5 : f32 to vector<256x32xf32>
    %7 = arith.maximumf %5, %6 : vector<256x32xf32>
    %8 = arith.truncf %7 : vector<256x32xf32> to vector<256x32xbf16>
    %c0_6 = arith.constant 0 : index
    %c0_7 = arith.constant 0 : index
    %9 = vector.load %arg4[%c0_6, %c0_7] : memref<256x32xbf16, #tpu.memory_space<vmem>>, vector<256x32xbf16>
    tpu.vector_store %arg4[%c0_6, %c0_7], %8 {strides = array<i32>} : memref<256x32xbf16, #tpu.memory_space<vmem>>, vector<256x32xbf16>,
    return
  }
  func.func @transform_0(%arg0: i32) -> (i32, i32) {
    %c0_i32 = arith.constant 0 : i32
    %c0_i32_0 = arith.constant 0 : i32
    return %arg0, %c0_i32 : i32, i32
  }
  func.func @transform_1(%arg0: i32) -> (i32, i32) {
    %c0_i32 = arith.constant 0 : i32
    %c0_i32_0 = arith.constant 0 : i32
    %c0_i32_1 = arith.constant 0 : i32
    return %c0_i32, %c0_i32_0 : i32, i32
  }
  func.func @transform_2(%arg0: i32) -> (i32, i32) {
    %c0_i32 = arith.constant 0 : i32
    %c0_i32_0 = arith.constant 0 : i32
    %c0_i32_1 = arith.constant 0 : i32
    return %c0_i32, %c0_i32_0 : i32, i32
  }
  func.func @transform_3(%arg0: i32) -> (i32, i32) {
    %c0_i32 = arith.constant 0 : i32
    %c0_i32_0 = arith.constant 0 : i32
    return %arg0, %c0_i32 : i32, i32
  }
}

module attributes {stable_mosaic.version = 11 : i64} {
  func.func @_matmul_bias_kernel(%arg0: i32, %arg1: memref<256x288xbf16, #tpu.memory_space<vmem>>, %arg2: memref<288x32xbf16, #tpu.memory_space<vmem>>, %arg3: memref<1x32xf32, #tpu.memory_space<vmem>>, %arg4: memref<256x32xbf16, #tpu.memory_space<vmem>>) attributes {dimension_semantics = [#tpu.dimension_semantics<parallel>], iteration_bounds = array<i64: 4>, scalar_prefetch = 0 : i64, scratch_operands = 0 : i64, tpu.core_type = #tpu.core_type<tc>, window_params = [{transform_indices = @transform_0, window_bounds = array<i64: 256, 288>}, {pipeline_mode = #tpu.pipeline_mode<synchronous>, transform_indices = @transform_1, window_bounds = array<i64: 288, 32>}, {pipeline_mode = #tpu.pipeline_mode<synchronous>, transform_indices = @transform_2, window_bounds = array<i64: 1, 32>}, {transform_indices = @transform_3, window_bounds = array<i64: 256, 32>}]} {
    %c0 = arith.constant 0 : index
    %c0_0 = arith.constant 0 : index
    %0 = vector.load %arg1[%c0, %c0_0] : memref<256x288xbf16, #tpu.memory_space<vmem>>, vector<256x288xbf16>
    %c0_1 = arith.constant 0 : index
    %c0_2 = arith.constant 0 : index
    %1 = vector.load %arg2[%c0_1, %c0_2] : memref<288x32xbf16, #tpu.memory_space<vmem>>, vector<288x32xbf16>
    %cst = arith.constant dense<0.000000e+00> : vector<256x32xf32>
    %2 = tpu.matmul %0, %1, %cst {dimension_numbers = #tpu.dot_dimension_numbers<[1], [0], [0], [1], [0, 0, 1, 1], [], []>} : vector<256x288xbf16>, vector<288x32xbf16>, vector<256x32xf32> -> vector<256x32xf32>
    %c0_3 = arith.constant 0 : index
    %c0_4 = arith.constant 0 : index
    %3 = vector.load %arg3[%c0_3, %c0_4] : memref<1x32xf32, #tpu.memory_space<vmem>>, vector<1x32xf32>
    %4 = vector.broadcast %3 : vector<1x32xf32> to vector<256x32xf32>
    %5 = arith.addf %2, %4 : vector<256x32xf32>
    %cst_5 = arith.constant 0.000000e+00 : f32
    %6 = vector.broadcast %cst_5 : f32 to vector<256x32xf32>
    %7 = arith.maximumf %5, %6 : vector<256x32xf32>
    %8 = arith.truncf %7 : vector<256x32xf32> to vector<256x32xbf16>
    %c0_6 = arith.constant 0 : index
    %c0_7 = arith.constant 0 : index
    %9 = vector.load %arg4[%c0_6, %c0_7] : memref<256x32xbf16, #tpu.memory_space<vmem>>, vector<256x32xbf16>
    tpu.vector_store %arg4[%c0_6, %c0_7], %8 {strides = array<i32>} : memref<256x32xbf16, #tpu.memory_space<vmem>>, vector<256x32xbf16>,
    return
  }
  func.func @transform_0(%arg0: i32) -> (i32, i32) {
    %c0_i32 = arith.constant 0 : i32
    %c0_i32_0 = arith.constant 0 : i32
    return %arg0, %c0_i32 : i32, i32
  }
  func.func @transform_1(%arg0: i32) -> (i32, i32) {
    %c0_i32 = arith.constant 0 : i32
    %c0_i32_0 = arith.constant 0 : i32
    %c0_i32_1 = arith.constant 0 : i32
    return %c0_i32, %c0_i32_0 : i32, i32
  }
  func.func @transform_2(%arg0: i32) -> (i32, i32) {
    %c0_i32 = arith.constant 0 : i32
    %c0_i32_0 = arith.constant 0 : i32
    %c0_i32_1 = arith.constant 0 : i32
    return %c0_i32, %c0_i32_0 : i32, i32
  }
  func.func @transform_3(%arg0: i32) -> (i32, i32) {
    %c0_i32 = arith.constant 0 : i32
    %c0_i32_0 = arith.constant 0 : i32
    return %arg0, %c0_i32 : i32, i32
  }
}

module attributes {stable_mosaic.version = 11 : i64} {
  func.func @_matmul_bias_kernel(%arg0: i32, %arg1: memref<176x288xbf16, #tpu.memory_space<vmem>>, %arg2: memref<288x32xbf16, #tpu.memory_space<vmem>>, %arg3: memref<1x32xf32, #tpu.memory_space<vmem>>, %arg4: memref<176x32xbf16, #tpu.memory_space<vmem>>) attributes {dimension_semantics = [#tpu.dimension_semantics<parallel>], iteration_bounds = array<i64: 1>, scalar_prefetch = 0 : i64, scratch_operands = 0 : i64, tpu.core_type = #tpu.core_type<tc>, window_params = [{transform_indices = @transform_0, window_bounds = array<i64: 176, 288>}, {pipeline_mode = #tpu.pipeline_mode<synchronous>, transform_indices = @transform_1, window_bounds = array<i64: 288, 32>}, {pipeline_mode = #tpu.pipeline_mode<synchronous>, transform_indices = @transform_2, window_bounds = array<i64: 1, 32>}, {transform_indices = @transform_3, window_bounds = array<i64: 176, 32>}]} {
    %c0 = arith.constant 0 : index
    %c0_0 = arith.constant 0 : index
    %0 = vector.load %arg1[%c0, %c0_0] : memref<176x288xbf16, #tpu.memory_space<vmem>>, vector<176x288xbf16>
    %c0_1 = arith.constant 0 : index
    %c0_2 = arith.constant 0 : index
    %1 = vector.load %arg2[%c0_1, %c0_2] : memref<288x32xbf16, #tpu.memory_space<vmem>>, vector<288x32xbf16>
    %cst = arith.constant dense<0.000000e+00> : vector<176x32xf32>
    %2 = tpu.matmul %0, %1, %cst {dimension_numbers = #tpu.dot_dimension_numbers<[1], [0], [0], [1], [0, 0, 1, 1], [], []>} : vector<176x288xbf16>, vector<288x32xbf16>, vector<176x32xf32> -> vector<176x32xf32>
    %c0_3 = arith.constant 0 : index
    %c0_4 = arith.constant 0 : index
    %3 = vector.load %arg3[%c0_3, %c0_4] : memref<1x32xf32, #tpu.memory_space<vmem>>, vector<1x32xf32>
    %4 = vector.broadcast %3 : vector<1x32xf32> to vector<176x32xf32>
    %5 = arith.addf %2, %4 : vector<176x32xf32>
    %cst_5 = arith.constant 0.000000e+00 : f32
    %6 = vector.broadcast %cst_5 : f32 to vector<176x32xf32>
    %7 = arith.maximumf %5, %6 : vector<176x32xf32>
    %8 = arith.truncf %7 : vector<176x32xf32> to vector<176x32xbf16>
    %c0_6 = arith.constant 0 : index
    %c0_7 = arith.constant 0 : index
    %9 = vector.load %arg4[%c0_6, %c0_7] : memref<176x32xbf16, #tpu.memory_space<vmem>>, vector<176x32xbf16>
    tpu.vector_store %arg4[%c0_6, %c0_7], %8 {strides = array<i32>} : memref<176x32xbf16, #tpu.memory_space<vmem>>, vector<176x32xbf16>,
    return
  }
  func.func @transform_0(%arg0: i32) -> (i32, i32) {
    %c0_i32 = arith.constant 0 : i32
    %c0_i32_0 = arith.constant 0 : i32
    return %arg0, %c0_i32 : i32, i32
  }
  func.func @transform_1(%arg0: i32) -> (i32, i32) {
    %c0_i32 = arith.constant 0 : i32
    %c0_i32_0 = arith.constant 0 : i32
    %c0_i32_1 = arith.constant 0 : i32
    return %c0_i32, %c0_i32_0 : i32, i32
  }
  func.func @transform_2(%arg0: i32) -> (i32, i32) {
    %c0_i32 = arith.constant 0 : i32
    %c0_i32_0 = arith.constant 0 : i32
    %c0_i32_1 = arith.constant 0 : i32
    return %c0_i32, %c0_i32_0 : i32, i32
  }
  func.func @transform_3(%arg0: i32) -> (i32, i32) {
    %c0_i32 = arith.constant 0 : i32
    %c0_i32_0 = arith.constant 0 : i32
    return %arg0, %c0_i32 : i32, i32
  }
}

module attributes {stable_mosaic.version = 11 : i64} {
  func.func @_matmul_bias_kernel(%arg0: i32, %arg1: memref<112x288xbf16, #tpu.memory_space<vmem>>, %arg2: memref<288x32xbf16, #tpu.memory_space<vmem>>, %arg3: memref<1x32xf32, #tpu.memory_space<vmem>>, %arg4: memref<112x32xbf16, #tpu.memory_space<vmem>>) attributes {dimension_semantics = [#tpu.dimension_semantics<parallel>], iteration_bounds = array<i64: 1>, scalar_prefetch = 0 : i64, scratch_operands = 0 : i64, tpu.core_type = #tpu.core_type<tc>, window_params = [{transform_indices = @transform_0, window_bounds = array<i64: 112, 288>}, {pipeline_mode = #tpu.pipeline_mode<synchronous>, transform_indices = @transform_1, window_bounds = array<i64: 288, 32>}, {pipeline_mode = #tpu.pipeline_mode<synchronous>, transform_indices = @transform_2, window_bounds = array<i64: 1, 32>}, {transform_indices = @transform_3, window_bounds = array<i64: 112, 32>}]} {
    %c0 = arith.constant 0 : index
    %c0_0 = arith.constant 0 : index
    %0 = vector.load %arg1[%c0, %c0_0] : memref<112x288xbf16, #tpu.memory_space<vmem>>, vector<112x288xbf16>
    %c0_1 = arith.constant 0 : index
    %c0_2 = arith.constant 0 : index
    %1 = vector.load %arg2[%c0_1, %c0_2] : memref<288x32xbf16, #tpu.memory_space<vmem>>, vector<288x32xbf16>
    %cst = arith.constant dense<0.000000e+00> : vector<112x32xf32>
    %2 = tpu.matmul %0, %1, %cst {dimension_numbers = #tpu.dot_dimension_numbers<[1], [0], [0], [1], [0, 0, 1, 1], [], []>} : vector<112x288xbf16>, vector<288x32xbf16>, vector<112x32xf32> -> vector<112x32xf32>
    %c0_3 = arith.constant 0 : index
    %c0_4 = arith.constant 0 : index
    %3 = vector.load %arg3[%c0_3, %c0_4] : memref<1x32xf32, #tpu.memory_space<vmem>>, vector<1x32xf32>
    %4 = vector.broadcast %3 : vector<1x32xf32> to vector<112x32xf32>
    %5 = arith.addf %2, %4 : vector<112x32xf32>
    %6 = arith.truncf %5 : vector<112x32xf32> to vector<112x32xbf16>
    %c0_5 = arith.constant 0 : index
    %c0_6 = arith.constant 0 : index
    %7 = vector.load %arg4[%c0_5, %c0_6] : memref<112x32xbf16, #tpu.memory_space<vmem>>, vector<112x32xbf16>
    tpu.vector_store %arg4[%c0_5, %c0_6], %6 {strides = array<i32>} : memref<112x32xbf16, #tpu.memory_space<vmem>>, vector<112x32xbf16>,
    return
  }
  func.func @transform_0(%arg0: i32) -> (i32, i32) {
    %c0_i32 = arith.constant 0 : i32
    %c0_i32_0 = arith.constant 0 : i32
    return %arg0, %c0_i32 : i32, i32
  }
  func.func @transform_1(%arg0: i32) -> (i32, i32) {
    %c0_i32 = arith.constant 0 : i32
    %c0_i32_0 = arith.constant 0 : i32
    %c0_i32_1 = arith.constant 0 : i32
    return %c0_i32, %c0_i32_0 : i32, i32
  }
  func.func @transform_2(%arg0: i32) -> (i32, i32) {
    %c0_i32 = arith.constant 0 : i32
    %c0_i32_0 = arith.constant 0 : i32
    %c0_i32_1 = arith.constant 0 : i32
    return %c0_i32, %c0_i32_0 : i32, i32
  }
  func.func @transform_3(%arg0: i32) -> (i32, i32) {
    %c0_i32 = arith.constant 0 : i32
    %c0_i32_0 = arith.constant 0 : i32
    return %arg0, %c0_i32 : i32, i32
  }
}

module attributes {stable_mosaic.version = 11 : i64} {
  func.func @_trunk_head_kernel(%arg0: i32, %arg1: memref<16x1568xbf16, #tpu.memory_space<vmem>>, %arg2: memref<1568x128xbf16, #tpu.memory_space<vmem>>, %arg3: memref<1x128xf32, #tpu.memory_space<vmem>>, %arg4: memref<128x128xbf16, #tpu.memory_space<vmem>>, %arg5: memref<1x128xf32, #tpu.memory_space<vmem>>, %arg6: memref<16x128xf32, #tpu.memory_space<vmem>>) attributes {dimension_semantics = [#tpu.dimension_semantics<parallel>], iteration_bounds = array<i64: 1>, scalar_prefetch = 0 : i64, scratch_operands = 0 : i64, tpu.core_type = #tpu.core_type<tc>, window_params = [{transform_indices = @transform_0, window_bounds = array<i64: 16, 1568>}, {pipeline_mode = #tpu.pipeline_mode<synchronous>, transform_indices = @transform_1, window_bounds = array<i64: 1568, 128>}, {pipeline_mode = #tpu.pipeline_mode<synchronous>, transform_indices = @transform_2, window_bounds = array<i64: 1, 128>}, {pipeline_mode = #tpu.pipeline_mode<synchronous>, transform_indices = @transform_3, window_bounds = array<i64: 128, 128>}, {pipeline_mode = #tpu.pipeline_mode<synchronous>, transform_indices = @transform_4, window_bounds = array<i64: 1, 128>}, {transform_indices = @transform_5, window_bounds = array<i64: 16, 128>}]} {
    %c0 = arith.constant 0 : index
    %c0_0 = arith.constant 0 : index
    %0 = vector.load %arg1[%c0, %c0_0] : memref<16x1568xbf16, #tpu.memory_space<vmem>>, vector<16x1568xbf16>
    %c0_1 = arith.constant 0 : index
    %c0_2 = arith.constant 0 : index
    %1 = vector.load %arg2[%c0_1, %c0_2] : memref<1568x128xbf16, #tpu.memory_space<vmem>>, vector<1568x128xbf16>
    %cst = arith.constant dense<0.000000e+00> : vector<16x128xf32>
    %2 = tpu.matmul %0, %1, %cst {dimension_numbers = #tpu.dot_dimension_numbers<[1], [0], [0], [1], [0, 0, 1, 1], [], []>} : vector<16x1568xbf16>, vector<1568x128xbf16>, vector<16x128xf32> -> vector<16x128xf32>
    %c0_3 = arith.constant 0 : index
    %c0_4 = arith.constant 0 : index
    %3 = vector.load %arg3[%c0_3, %c0_4] : memref<1x128xf32, #tpu.memory_space<vmem>>, vector<1x128xf32>
    %4 = vector.broadcast %3 : vector<1x128xf32> to vector<16x128xf32>
    %5 = arith.addf %2, %4 : vector<16x128xf32>
    %c0_5 = arith.constant 0 : index
    %c0_6 = arith.constant 0 : index
    %6 = vector.load %arg4[%c0_5, %c0_6] : memref<128x128xbf16, #tpu.memory_space<vmem>>, vector<128x128xbf16>
    %7 = arith.extf %6 : vector<128x128xbf16> to vector<128x128xf32>
    %cst_7 = arith.constant dense<0.000000e+00> : vector<16x128xf32>
    %8 = tpu.matmul %5, %7, %cst_7 {dimension_numbers = #tpu.dot_dimension_numbers<[1], [0], [0], [1], [0, 0, 1, 1], [], []>} : vector<16x128xf32>, vector<128x128xf32>, vector<16x128xf32> -> vector<16x128xf32>
    %c0_8 = arith.constant 0 : index
    %c0_9 = arith.constant 0 : index
    %9 = vector.load %arg5[%c0_8, %c0_9] : memref<1x128xf32, #tpu.memory_space<vmem>>, vector<1x128xf32>
    %10 = vector.broadcast %9 : vector<1x128xf32> to vector<16x128xf32>
    %11 = arith.addf %8, %10 : vector<16x128xf32>
    %c0_10 = arith.constant 0 : index
    %c0_11 = arith.constant 0 : index
    %12 = vector.load %arg6[%c0_10, %c0_11] : memref<16x128xf32, #tpu.memory_space<vmem>>, vector<16x128xf32>
    tpu.vector_store %arg6[%c0_10, %c0_11], %11 {strides = array<i32>} : memref<16x128xf32, #tpu.memory_space<vmem>>, vector<16x128xf32>,
    return
  }
  func.func @transform_0(%arg0: i32) -> (i32, i32) {
    %c0_i32 = arith.constant 0 : i32
    %c0_i32_0 = arith.constant 0 : i32
    return %arg0, %c0_i32 : i32, i32
  }
  func.func @transform_1(%arg0: i32) -> (i32, i32) {
    %c0_i32 = arith.constant 0 : i32
    %c0_i32_0 = arith.constant 0 : i32
    %c0_i32_1 = arith.constant 0 : i32
    return %c0_i32, %c0_i32_0 : i32, i32
  }
  func.func @transform_2(%arg0: i32) -> (i32, i32) {
    %c0_i32 = arith.constant 0 : i32
    %c0_i32_0 = arith.constant 0 : i32
    %c0_i32_1 = arith.constant 0 : i32
    return %c0_i32, %c0_i32_0 : i32, i32
  }
  func.func @transform_3(%arg0: i32) -> (i32, i32) {
    %c0_i32 = arith.constant 0 : i32
    %c0_i32_0 = arith.constant 0 : i32
    %c0_i32_1 = arith.constant 0 : i32
    return %c0_i32, %c0_i32_0 : i32, i32
  }
  func.func @transform_4(%arg0: i32) -> (i32, i32) {
    %c0_i32 = arith.constant 0 : i32
    %c0_i32_0 = arith.constant 0 : i32
    %c0_i32_1 = arith.constant 0 : i32
    return %c0_i32, %c0_i32_0 : i32, i32
  }
  func.func @transform_5(%arg0: i32) -> (i32, i32) {
    %c0_i32 = arith.constant 0 : i32
    %c0_i32_0 = arith.constant 0 : i32
    return %arg0, %c0_i32 : i32, i32
  }
}

</mosaic_0001>

<llo_original>
// kernel: _lambda_.5
$region0: #{_lambda_.5}
  #allocation0 [shape = 'u32[]', space=smem, size = 0x4, offset = 0x4, fixed_abs, tag = 'smem constant byte address 0x4 - core index']
  #allocation1 [shape = 'u32[144,128]{1,0:T(1,128)}', space=vmem, size = 0x12000, scoped, tag = 'internal scratch']
  %s0 = inlined_call_operand.vmem [shape: bf16[3584,36], index: 0, kind: input, shape index: {}]
  %s1 = inlined_call_operand.vmem [shape: bf16[36,32], index: 1, kind: input, shape index: {}]
  %s2 = inlined_call_operand.vmem [shape: f32[1,32], index: 2, kind: input, shape index: {}]
  %s3 = inlined_call_operand.vmem [shape: bf16[3584,32], index: 3, kind: output, shape index: {}]
  %s4 = sld [smem:[#allocation0]]
  $region45: #{_lambda_.5} parent=0
    _
  %s6 = ssub.s32 1, %s4
  %s7 = scalar_select 0, %s6, %s4
  loop: start=0, step=1, limit=16
  $region2: #{_lambda_.5} parent=0 // loop_pre_header
    _
  $region3: #{_lambda_.5} parent=0 // loop_header
    %s9 = sphi 0, %s13
    %p10 = scmp.ge.s32.totalorder %s9, 16
    %s19 = sphi 0, %s21
    %s22 = sphi 0, %s19
    %s23 = sphi 0, %s22
    %s39 = sphi 0, %s23
    %s43 = sphi 0, %s43
    %s45 = sphi 0, %s43
    %s46 = sphi 0, %s45
    %s60 = sphi 0, %s46
    %s64 = sphi 0, %s64
    %s66 = sphi 0, %s64
    %s67 = sphi 0, %s66
    %s81 = sphi 0, %s67
    %s87 = sphi 0, %s89
    %s90 = sphi 0, %s87
    %s91 = sphi 0, %s90
    %s107 = sphi 0, %s91
  $region4: #{_lambda_.5} parent=0 // loop_header_branch
    %12 = sbr.rel (%p10) target = $region8
  $region5: #{_lambda_.5} parent=0 // loop_body
    %s14 = ssub.s32 %s9, 1
    %s15 = ssub.s32 %s9, 2
    %s16 = sadd.s32 %s9, 1
    %s17 = ssub.s32 %s9, %s16
    %p18 = scmp.eq.s32.totalorder %s17, 0
    %s20 = sadd.s32 %s19, 1
    %s21 = scalar_select %p18, %s19, %s20
    %p24 = pneg %p18
    %p25 = scmp.eq.s32.totalorder %s9, 13
    %p26 = por %p24, %p25
    %p27 = scmp.ne.s32.totalorder %s19, %s22
    %p28 = scmp.eq.s32.totalorder %s9, 0
    %p29 = por %p27, %p28
    %p30 = scmp.ne.s32.totalorder %s19, %s22
    %p31 = scmp.eq.s32.totalorder %s14, 13
    %p32 = por %p30, %p31
    %p33 = scmp.ne.s32.totalorder %s22, %s23
    %p34 = scmp.eq.s32.totalorder %s14, 0
    %p35 = por %p33, %p34
    %p36 = scmp.ne.s32.totalorder %s22, %s23
    %p37 = scmp.eq.s32.totalorder %s15, 13
    %p38 = por %p36, %p37
    %p40 = scmp.ne.s32.totalorder %s23, %s39
    %p41 = scmp.eq.s32.totalorder %s15, 0
    %p42 = por %p40, %p41
    %s44 = sadd.s32 %s43, 1
    %p47 = scmp.eq.s32.totalorder %s9, 13
    %p48 = scmp.ne.s32.totalorder %s43, %s45
    %p49 = scmp.eq.s32.totalorder %s9, 0
    %p50 = por %p48, %p49
    %p51 = scmp.ne.s32.totalorder %s43, %s45
    %p52 = scmp.eq.s32.totalorder %s14, 13
    %p53 = por %p51, %p52
    %p54 = scmp.ne.s32.totalorder %s45, %s46
    %p55 = scmp.eq.s32.totalorder %s14, 0
    %p56 = por %p54, %p55
    %p57 = scmp.ne.s32.totalorder %s45, %s46
    %p58 = scmp.eq.s32.totalorder %s15, 13
    %p59 = por %p57, %p58
    %p61 = scmp.ne.s32.totalorder %s46, %s60
    %p62 = scmp.eq.s32.totalorder %s15, 0
    %p63 = por %p61, %p62
    %s65 = sadd.s32 %s64, 1
    %p68 = scmp.eq.s32.totalorder %s9, 13
    %p69 = scmp.ne.s32.totalorder %s64, %s66
    %p70 = scmp.eq.s32.totalorder %s9, 0
    %p71 = por %p69, %p70
    %p72 = scmp.ne.s32.totalorder %s64, %s66
    %p73 = scmp.eq.s32.totalorder %s14, 13
    %p74 = por %p72, %p73
    %p75 = scmp.ne.s32.totalorder %s66, %s67
    %p76 = scmp.eq.s32.totalorder %s14, 0
    %p77 = por %p75, %p76
    %p78 = scmp.ne.s32.totalorder %s66, %s67
    %p79 = scmp.eq.s32.totalorder %s15, 13
    %p80 = por %p78, %p79
    %p82 = scmp.ne.s32.totalorder %s67, %s81
    %p83 = scmp.eq.s32.totalorder %s15, 0
    %p84 = por %p82, %p83
    %s85 = ssub.s32 %s9, %s16
    %p86 = scmp.eq.s32.totalorder %s85, 0
    %s88 = sadd.s32 %s87, 1
    %s89 = scalar_select %p86, %s87, %s88
    %p92 = pneg %p86
    %p93 = scmp.eq.s32.totalorder %s9, 13
    %p94 = por %p92, %p93
    %p95 = scmp.ne.s32.totalorder %s87, %s90
    %p96 = scmp.eq.s32.totalorder %s9, 0
    %p97 = por %p95, %p96
    %p98 = scmp.ne.s32.totalorder %s87, %s90
    %p99 = scmp.eq.s32.totalorder %s14, 13
    %p100 = por %p98, %p99
    %p101 = scmp.ne.s32.totalorder %s90, %s91
    %p102 = scmp.eq.s32.totalorder %s14, 0
    %p103 = por %p101, %p102
    %p104 = scmp.ne.s32.totalorder %s90, %s91
    %p105 = scmp.eq.s32.totalorder %s15, 13
    %p106 = por %p104, %p105
    %p108 = scmp.ne.s32.totalorder %s91, %s107
    %p109 = scmp.eq.s32.totalorder %s15, 0
    %p110 = por %p108, %p109
    %p111 = scmp.le.s32.totalorder 1, %s9
    %p112 = scmp.lt.s32.totalorder %s9, 15
    %p113 = pnand %p111, %p112
    %p114 = pneg %p113
    // Predicated region
    $region9: #{_lambda_.5} parent=5 // pred_check
      _
    $region10: #{_lambda_.5} parent=5 // pred_check_branch
      %116 = sbr.rel (%p113) target = $region12
    $region11: #{_lambda_.5} parent=5 // pred_region
      %s117 = ssub.s32 %s9, 1
      // Predicated region
      $region13: #{_lambda_.5} parent=11 // pred_check
        %p118 = pneg %p56
      $region14: #{_lambda_.5} parent=11 // pred_check_branch
        %120 = sbr.rel (%p118) target = $region16
      $region15: #{_lambda_.5} parent=11 // pred_region
        _
      $region16: #{_lambda_.5} parent=11 // pred_fallthru
        _
      // Predicated region
      $region17: #{_lambda_.5} parent=11 // pred_check
        %p121 = pneg %p77
      $region18: #{_lambda_.5} parent=11 // pred_check_branch
        %123 = sbr.rel (%p121) target = $region20
      $region19: #{_lambda_.5} parent=11 // pred_region
        _
      $region20: #{_lambda_.5} parent=11 // pred_fallthru
        _
    $region12: #{_lambda_.5} parent=5 // pred_fallthru
      _
    %p124 = scmp.lt.s32.totalorder %s9, 14
    // Predicated region
    $region21: #{_lambda_.5} parent=5 // pred_check
      %p125 = pneg %p124
    $region22: #{_lambda_.5} parent=5 // pred_check_branch
      %127 = sbr.rel (%p125) target = $region24
    $region23: #{_lambda_.5} parent=5 // pred_region
      // Predicated region
      $region25: #{_lambda_.5} parent=23 // pred_check
        %p128 = pneg %p29
      $region26: #{_lambda_.5} parent=23 // pred_check_branch
        %130 = sbr.rel (%p128) target = $region28
      $region27: #{_lambda_.5} parent=23 // pred_region
        %s131 = smul.u32 32, %s9
        %p132 = scmp.lt.s32.totalorder %s131, 447
        %s133 = scalar_select %p132, %s131, 447
        %s134 = smul.addr %s133, 4
        %s135 = scalar_lea.vmem %s0, %s134
        %s136 = smul.u32 32, %s9
      $region28: #{_lambda_.5} parent=23 // pred_fallthru
        _
    $region24: #{_lambda_.5} parent=5 // pred_fallthru
      _
    %p137 = scmp.le.s32.totalorder 1, %s9
    %p138 = scmp.lt.s32.totalorder %s9, 15
    %p139 = pnand %p137, %p138
    %p140 = pneg %p139
    // Predicated region
    $region29: #{_lambda_.5} parent=5 // pred_check
      _
    $region30: #{_lambda_.5} parent=5 // pred_check_branch
      %142 = sbr.rel (%p139) target = $region32
    $region31: #{_lambda_.5} parent=5 // pred_region
      %s143 = ssub.s32 %s9, 1
      %s144 = smul.u32 32, %s14
      %p145 = scmp.lt.s32.totalorder %s144, 447
      %s146 = scalar_select %p145, %s144, 447
      %s147 = smul.addr %s146, 4
      %s148 = scalar_lea.vmem %s0, %s147
      %p149 = pneg %p35
      %p150 = pneg %p32
      %p151 = pneg %p56
      %p152 = pneg %p53
      %p153 = pneg %p77
      %p154 = pneg %p74
      %p155 = pneg %p103
      %p156 = pneg %p100
      %s157 = smul.u32 32, %s14
      %p158 = scmp.lt.s32.totalorder %s157, 447
      %s159 = scalar_select %p158, %s157, 447
      %s160 = smul.addr %s159, 4
      %s161 = scalar_lea.vmem %s3, %s160
      %s162 = smul.u32 32, %s14
      %p163 = scmp.lt.s32.totalorder %s162, 447
      %s164 = scalar_select %p163, %s162, 447
      %s165 = smul.addr %s164, 4
      %s166 = scalar_lea.vmem %s0, %s165
      %s167 = smul.u32 32, %s14
      %s168 = smul.u32 32, %s14
      %p169 = scmp.lt.s32.totalorder %s168, 447
      %s170 = scalar_select %p169, %s168, 447
      %s171 = smul.addr %s170, 4
      %s172 = scalar_lea.vmem %s3, %s171
      %s173 = smul.u32 32, %s14
      %v175 = vld [vmem:[%s166] sm:$0xf]
      %v176 = vld [vmem:[%s166 + $0x4] sm:$0xf]
      %v177 = vld [vmem:[%s166 + $0x8] sm:$0xf]
      %v178 = vld [vmem:[%s166 + $0xc] sm:$0xf]
      %v179 = vld [vmem:[%s166 + $0x10] sm:$0xf]
      %v180 = vld [vmem:[%s166 + $0x14] sm:$0xf]
      %v181 = vld [vmem:[%s166 + $0x18] sm:$0xf]
      %v182 = vld [vmem:[%s166 + $0x1c] sm:$0xf]
      %v183 = vld [vmem:[%s166 + $0x20] sm:$0xf]
      %v184 = vld [vmem:[%s166 + $0x24] sm:$0xf]
      %v185 = vld [vmem:[%s166 + $0x28] sm:$0xf]
      %v186 = vld [vmem:[%s166 + $0x2c] sm:$0xf]
      %v187 = vld [vmem:[%s166 + $0x30] sm:$0xf]
      %v188 = vld [vmem:[%s166 + $0x34] sm:$0xf]
      %v189 = vld [vmem:[%s166 + $0x38] sm:$0xf]
      %v190 = vld [vmem:[%s166 + $0x3c] sm:$0xf]
      %v191 = vld [vmem:[%s166 + $0x40] sm:$0xf]
      %v192 = vld [vmem:[%s166 + $0x44] sm:$0xf]
      %v193 = vld [vmem:[%s166 + $0x48] sm:$0xf]
      %v194 = vld [vmem:[%s166 + $0x4c] sm:$0xf]
      %v195 = vld [vmem:[%s166 + $0x50] sm:$0xf]
      %v196 = vld [vmem:[%s166 + $0x54] sm:$0xf]
      %v197 = vld [vmem:[%s166 + $0x58] sm:$0xf]
      %v198 = vld [vmem:[%s166 + $0x5c] sm:$0xf]
      %v199 = vld [vmem:[%s166 + $0x60] sm:$0xf]
      %v200 = vld [vmem:[%s166 + $0x64] sm:$0xf]
      %v201 = vld [vmem:[%s166 + $0x68] sm:$0xf]
      %v202 = vld [vmem:[%s166 + $0x6c] sm:$0xf]
      %v203 = vld [vmem:[%s166 + $0x70] sm:$0xf]
      %v204 = vld [vmem:[%s166 + $0x74] sm:$0xf]
      %v205 = vld [vmem:[%s166 + $0x78] sm:$0xf]
      %v206 = vld [vmem:[%s166 + $0x7c] sm:$0xf]
      %v207 = vld [vmem:[%s1] sm:$0xf]
      %v208 = vld [vmem:[%s1 + $0x4] sm:$0xf]
      %v209 = vld [vmem:[%s1 + $0x8] sm:$0xf]
      %v210 = vld [vmem:[%s1 + $0xc] sm:$0xf]
      %v211 = vld [vmem:[%s1 + $0x10] sm:$0x3]
      %v212 = vld [vmem:[%s2] sm:$0x1]
      %v214 = vlaneseq
      %v215 = vshrl.u32 %v214, 7
      %v216 = vsub.s32 0, %v215
      %v217 = vrot.slane %v212, %v216
      %v251 = vunpack.c.l.b16 %v175
      %v252 = vunpack.c.l.b16 %v176
      %v253 = vunpack.c.l.b16 %v177
      %v254 = vunpack.c.l.b16 %v178
      %v255 = vunpack.c.l.b16 %v179
      %v256 = vunpack.c.l.b16 %v180
      %v257 = vunpack.c.l.b16 %v181
      %v258 = vunpack.c.l.b16 %v182
      %v259 = vunpack.c.l.b16 %v183
      %v260 = vunpack.c.l.b16 %v184
      %v261 = vunpack.c.l.b16 %v185
      %v262 = vunpack.c.l.b16 %v186
      %v263 = vunpack.c.l.b16 %v187
      %v264 = vunpack.c.l.b16 %v188
      %v265 = vunpack.c.l.b16 %v189
      %v266 = vunpack.c.l.b16 %v190
      %v267 = vunpack.c.l.b16 %v191
      %v268 = vunpack.c.l.b16 %v192
      %v269 = vunpack.c.l.b16 %v193
      %v270 = vunpack.c.l.b16 %v194
      %v271 = vunpack.c.l.b16 %v195
      %v272 = vunpack.c.l.b16 %v196
      %v273 = vunpack.c.l.b16 %v197
      %v274 = vunpack.c.l.b16 %v198
      %v275 = vunpack.c.l.b16 %v199
      %v276 = vunpack.c.l.b16 %v200
      %v277 = vunpack.c.l.b16 %v201
      %v278 = vunpack.c.l.b16 %v202
      %v279 = vunpack.c.l.b16 %v203
      %v280 = vunpack.c.l.b16 %v204
      %v281 = vunpack.c.l.b16 %v205
      %v282 = vunpack.c.l.b16 %v206
      %v283 = vpack.c.b16 %v252, %v251
      %v284 = vpack.c.b16 %v254, %v253
      %v285 = vpack.c.b16 %v256, %v255
      %v286 = vpack.c.b16 %v258, %v257
      %v287 = vpack.c.b16 %v260, %v259
      %v288 = vpack.c.b16 %v262, %v261
      %v289 = vpack.c.b16 %v264, %v263
      %v290 = vpack.c.b16 %v266, %v265
      %v291 = vpack.c.b16 %v268, %v267
      %v292 = vpack.c.b16 %v270, %v269
      %v293 = vpack.c.b16 %v272, %v271
      %v294 = vpack.c.b16 %v274, %v273
      %v295 = vpack.c.b16 %v276, %v275
      %v296 = vpack.c.b16 %v278, %v277
      %v297 = vpack.c.b16 %v280, %v279
      %v298 = vpack.c.b16 %v282, %v281
      %v304 = vunpack.c.l.b16 %v207
      %v305 = vunpack.c.l.b16 %v208
      %v306 = vunpack.c.l.b16 %v209
      %v307 = vunpack.c.l.b16 %v210
      %v308 = vunpack.c.l.b16 %v211
      %v309 = vpack.c.b16 %v305, %v304
      %v310 = vpack.c.b16 %v307, %v306
      %v311 = vpack.c.b16 %v308, %v308
      %vm314 = vcmask 293888
      %v316 = vsel %vm314, %v283, 0
      %v319 = vsel %vm314, %v284, 0
      %v322 = vsel %vm314, %v285, 0
      %v325 = vsel %vm314, %v286, 0
      %v328 = vsel %vm314, %v287, 0
      %v331 = vsel %vm314, %v288, 0
      %v334 = vsel %vm314, %v289, 0
      %v337 = vsel %vm314, %v290, 0
      %v340 = vsel %vm314, %v291, 0
      %v343 = vsel %vm314, %v292, 0
      %v346 = vsel %vm314, %v293, 0
      %v349 = vsel %vm314, %v294, 0
      %v352 = vsel %vm314, %v295, 0
      %v355 = vsel %vm314, %v296, 0
      %v358 = vsel %vm314, %v297, 0
      %v361 = vsel %vm314, %v298, 0
      %vm363 = vcmask 1041408
      %v365 = vsel %vm363, %v311, 0
      %367 = vmatprep.subr.bf16.mxu0 0
      %368 = vmatpush1.bf16.msra.mxu0 %v309
      %369 = vmatprep.subr.bf16.mxu0 0
      %370 = vmatpush1.bf16.msra.mxu0 %v310
      %371 = vmatprep.subr.bf16.mxu0 0
      %372 = vmatpush1.bf16.msra.mxu0 %v365
      %373 = vmatprep.subr.bf16.mxu0 0
      %374 = vmatpush1.bf16.msra.mxu0 0
      %375 = vmatprep.subr.bf16.mxu0 0
      %376 = vmatpush1.bf16.msra.mxu0 0
      %377 = vmatprep.subr.bf16.mxu0 0
      %378 = vmatpush1.bf16.msra.mxu0 0
      %379 = vmatprep.subr.bf16.mxu0 0
      %380 = vmatpush1.bf16.msra.mxu0 0
      %381 = vmatprep.subr.bf16.mxu0 0
      %382 = vmatpush1.bf16.msra.mxu0 0
      %383 = vmatprep.subr.bf16.mxu0 0
      %384 = vmatpush1.bf16.msra.mxu0 0
      %385 = vmatprep.subr.bf16.mxu0 0
      %386 = vmatpush1.bf16.msra.mxu0 0
      %387 = vmatprep.subr.bf16.mxu0 0
      %388 = vmatpush1.bf16.msra.mxu0 0
      %389 = vmatprep.subr.bf16.mxu0 0
      %390 = vmatpush1.bf16.msra.mxu0 0
      %391 = vmatprep.subr.bf16.mxu0 0
      %392 = vmatpush1.bf16.msra.mxu0 0
      %393 = vmatprep.subr.bf16.mxu0 0
      %394 = vmatpush1.bf16.msra.mxu0 0
      %395 = vmatprep.subr.bf16.mxu0 0
      %396 = vmatpush1.bf16.msra.mxu0 0
      %397 = vmatprep.subr.bf16.mxu0 0
      %398 = vmatpush1.bf16.msra.mxu0 0
      %399 = vmatprep.mubr.bf16.mxu0 0
      %400 = vmatmul.mubr.bf16.gmra.mrb[0].mxu0 %v316
      %v401 = vpop.f32.mrb[0].mxu0
      %v402 = vadd.f32 %v217, %v401
      %v403 = vpop.f32.mrb[0].mxu0
      %v404 = vpop.f32.mrb[0].mxu0
      %v405 = vadd.f32 %v217, %v404
      %v406 = vpop.f32.mrb[0].mxu0
      %407 = vmatprep.mubr.bf16.mxu0 0
      %408 = vmatmul.mubr.bf16.gmra.mrb[0].mxu0 %v319
      %v409 = vpop.f32.mrb[0].mxu0
      %v410 = vadd.f32 %v217, %v409
      %v411 = vpop.f32.mrb[0].mxu0
      %v412 = vpop.f32.mrb[0].mxu0
      %v413 = vadd.f32 %v217, %v412
      %v414 = vpop.f32.mrb[0].mxu0
      %415 = vmatprep.mubr.bf16.mxu0 0
      %416 = vmatmul.mubr.bf16.gmra.mrb[0].mxu0 %v322
      %v417 = vpop.f32.mrb[0].mxu0
      %v418 = vadd.f32 %v217, %v417
      %v419 = vpop.f32.mrb[0].mxu0
      %v420 = vpop.f32.mrb[0].mxu0
      %v421 = vadd.f32 %v217, %v420
      %v422 = vpop.f32.mrb[0].mxu0
      %423 = vmatprep.mubr.bf16.mxu0 0
      %424 = vmatmul.mubr.bf16.gmra.mrb[0].mxu0 %v325
      %v425 = vpop.f32.mrb[0].mxu0
      %v426 = vadd.f32 %v217, %v425
      %v427 = vpop.f32.mrb[0].mxu0
      %v428 = vpop.f32.mrb[0].mxu0
      %v429 = vadd.f32 %v217, %v428
      %v430 = vpop.f32.mrb[0].mxu0
      %431 = vmatprep.mubr.bf16.mxu0 0
      %432 = vmatmul.mubr.bf16.gmra.mrb[0].mxu0 %v328
      %v433 = vpop.f32.mrb[0].mxu0
      %v434 = vadd.f32 %v217, %v433
      %v435 = vpop.f32.mrb[0].mxu0
      %v436 = vpop.f32.mrb[0].mxu0
      %v437 = vadd.f32 %v217, %v436
      %v438 = vpop.f32.mrb[0].mxu0
      %439 = vmatprep.mubr.bf16.mxu0 0
      %440 = vmatmul.mubr.bf16.gmra.mrb[0].mxu0 %v331
      %v441 = vpop.f32.mrb[0].mxu0
      %v442 = vadd.f32 %v217, %v441
      %v443 = vpop.f32.mrb[0].mxu0
      %v444 = vpop.f32.mrb[0].mxu0
      %v445 = vadd.f32 %v217, %v444
      %v446 = vpop.f32.mrb[0].mxu0
      %447 = vmatprep.mubr.bf16.mxu0 0
      %448 = vmatmul.mubr.bf16.gmra.mrb[0].mxu0 %v334
      %v449 = vpop.f32.mrb[0].mxu0
      %v450 = vadd.f32 %v217, %v449
      %v451 = vpop.f32.mrb[0].mxu0
      %v452 = vpop.f32.mrb[0].mxu0
      %v453 = vadd.f32 %v217, %v452
      %v454 = vpop.f32.mrb[0].mxu0
      %455 = vmatprep.mubr.bf16.mxu0 0
      %456 = vmatmul.mubr.bf16.gmra.mrb[0].mxu0 %v337
      %v457 = vpop.f32.mrb[0].mxu0
      %v458 = vadd.f32 %v217, %v457
      %v459 = vpop.f32.mrb[0].mxu0
      %v460 = vpop.f32.mrb[0].mxu0
      %v461 = vadd.f32 %v217, %v460
      %v462 = vpop.f32.mrb[0].mxu0
      %463 = vmatprep.mubr.bf16.mxu0 0
      %464 = vmatmul.mubr.bf16.gmra.mrb[0].mxu0 %v340
      %v465 = vpop.f32.mrb[0].mxu0
      %v466 = vadd.f32 %v217, %v465
      %v467 = vpop.f32.mrb[0].mxu0
      %v468 = vpop.f32.mrb[0].mxu0
      %v469 = vadd.f32 %v217, %v468
      %v470 = vpop.f32.mrb[0].mxu0
      %471 = vmatprep.mubr.bf16.mxu0 0
      %472 = vmatmul.mubr.bf16.gmra.mrb[0].mxu0 %v343
      %v473 = vpop.f32.mrb[0].mxu0
      %v474 = vadd.f32 %v217, %v473
      %v475 = vpop.f32.mrb[0].mxu0
      %v476 = vpop.f32.mrb[0].mxu0
      %v477 = vadd.f32 %v217, %v476
      %v478 = vpop.f32.mrb[0].mxu0
      %479 = vmatprep.mubr.bf16.mxu0 0
      %480 = vmatmul.mubr.bf16.gmra.mrb[0].mxu0 %v346
      %v481 = vpop.f32.mrb[0].mxu0
      %v482 = vadd.f32 %v217, %v481
      %v483 = vpop.f32.mrb[0].mxu0
      %v484 = vpop.f32.mrb[0].mxu0
      %v485 = vadd.f32 %v217, %v484
      %v486 = vpop.f32.mrb[0].mxu0
      %487 = vmatprep.mubr.bf16.mxu0 0
      %488 = vmatmul.mubr.bf16.gmra.mrb[0].mxu0 %v349
      %v489 = vpop.f32.mrb[0].mxu0
      %v490 = vadd.f32 %v217, %v489
      %v491 = vpop.f32.mrb[0].mxu0
      %v492 = vpop.f32.mrb[0].mxu0
      %v493 = vadd.f32 %v217, %v492
      %v494 = vpop.f32.mrb[0].mxu0
      %495 = vmatprep.mubr.bf16.mxu0 0
      %496 = vmatmul.mubr.bf16.gmra.mrb[0].mxu0 %v352
      %v497 = vpop.f32.mrb[0].mxu0
      %v498 = vadd.f32 %v217, %v497
      %v499 = vpop.f32.mrb[0].mxu0
      %v500 = vpop.f32.mrb[0].mxu0
      %v501 = vadd.f32 %v217, %v500
      %v502 = vpop.f32.mrb[0].mxu0
      %503 = vmatprep.mubr.bf16.mxu0 0
      %504 = vmatmul.mubr.bf16.gmra.mrb[0].mxu0 %v355
      %v505 = vpop.f32.mrb[0].mxu0
      %v506 = vadd.f32 %v217, %v505
      %v507 = vpop.f32.mrb[0].mxu0
      %v508 = vpop.f32.mrb[0].mxu0
      %v509 = vadd.f32 %v217, %v508
      %v510 = vpop.f32.mrb[0].mxu0
      %511 = vmatprep.mubr.bf16.mxu0 0
      %512 = vmatmul.mubr.bf16.gmra.mrb[0].mxu0 %v358
      %v513 = vpop.f32.mrb[0].mxu0
      %v514 = vadd.f32 %v217, %v513
      %v515 = vpop.f32.mrb[0].mxu0
      %v516 = vpop.f32.mrb[0].mxu0
      %v517 = vadd.f32 %v217, %v516
      %v518 = vpop.f32.mrb[0].mxu0
      %519 = vmatprep.mubr.bf16.mxu0 0
      %520 = vmatmul.mubr.bf16.gmra.mrb[0].mxu0 %v361
      %v521 = vpop.f32.mrb[0].mxu0
      %v522 = vadd.f32 %v217, %v521
      %v523 = vpop.f32.mrb[0].mxu0
      %v524 = vpop.f32.mrb[0].mxu0
      %v525 = vadd.f32 %v217, %v524
      %v526 = vpop.f32.mrb[0].mxu0
      %527 = vdwg.mxu0
      %v528 = vmax.f32 %v402, 0.0
      %v529 = vmax.f32 %v405, 0.0
      %v530 = vmax.f32 %v410, 0.0
      %v531 = vmax.f32 %v413, 0.0
      %v532 = vmax.f32 %v418, 0.0
      %v533 = vmax.f32 %v421, 0.0
      %v534 = vmax.f32 %v426, 0.0
      %v535 = vmax.f32 %v429, 0.0
      %v536 = vmax.f32 %v434, 0.0
      %v537 = vmax.f32 %v437, 0.0
      %v538 = vmax.f32 %v442, 0.0
      %v539 = vmax.f32 %v445, 0.0
      %v540 = vmax.f32 %v450, 0.0
      %v541 = vmax.f32 %v453, 0.0
      %v542 = vmax.f32 %v458, 0.0
      %v543 = vmax.f32 %v461, 0.0
      %v544 = vmax.f32 %v466, 0.0
      %v545 = vmax.f32 %v469, 0.0
      %v546 = vmax.f32 %v474, 0.0
      %v547 = vmax.f32 %v477, 0.0
      %v548 = vmax.f32 %v482, 0.0
      %v549 = vmax.f32 %v485, 0.0
      %v550 = vmax.f32 %v490, 0.0
      %v551 = vmax.f32 %v493, 0.0
      %v552 = vmax.f32 %v498, 0.0
      %v553 = vmax.f32 %v501, 0.0
      %v554 = vmax.f32 %v506, 0.0
      %v555 = vmax.f32 %v509, 0.0
      %v556 = vmax.f32 %v514, 0.0
      %v557 = vmax.f32 %v517, 0.0
      %v558 = vmax.f32 %v522, 0.0
      %v559 = vmax.f32 %v525, 0.0
      %v560 = vpack.c.bf16 %v529, %v528
      %v561 = vpack.c.bf16 %v531, %v530
      %v562 = vpack.c.bf16 %v533, %v532
      %v563 = vpack.c.bf16 %v535, %v534
      %v564 = vpack.c.bf16 %v537, %v536
      %v565 = vpack.c.bf16 %v539, %v538
      %v566 = vpack.c.bf16 %v541, %v540
      %v567 = vpack.c.bf16 %v543, %v542
      %v568 = vpack.c.bf16 %v545, %v544
      %v569 = vpack.c.bf16 %v547, %v546
      %v570 = vpack.c.bf16 %v549, %v548
      %v571 = vpack.c.bf16 %v551, %v550
      %v572 = vpack.c.bf16 %v553, %v552
      %v573 = vpack.c.bf16 %v555, %v554
      %v574 = vpack.c.bf16 %v557, %v556
      %v575 = vpack.c.bf16 %v559, %v558
      %v592 = vunpack.c.l.b16 %v560
      %v593 = vunpack.c.h.b16 %v560
      %v594 = vunpack.c.l.b16 %v561
      %v595 = vunpack.c.h.b16 %v561
      %v596 = vunpack.c.l.b16 %v562
      %v597 = vunpack.c.h.b16 %v562
      %v598 = vunpack.c.l.b16 %v563
      %v599 = vunpack.c.h.b16 %v563
      %v600 = vunpack.c.l.b16 %v564
      %v601 = vunpack.c.h.b16 %v564
      %v602 = vunpack.c.l.b16 %v565
      %v603 = vunpack.c.h.b16 %v565
      %v604 = vunpack.c.l.b16 %v566
      %v605 = vunpack.c.h.b16 %v566
      %v606 = vunpack.c.l.b16 %v567
      %v607 = vunpack.c.h.b16 %v567
      %v608 = vunpack.c.l.b16 %v568
      %v609 = vunpack.c.h.b16 %v568
      %v610 = vunpack.c.l.b16 %v569
      %v611 = vunpack.c.h.b16 %v569
      %v612 = vunpack.c.l.b16 %v570
      %v613 = vunpack.c.h.b16 %v570
      %v614 = vunpack.c.l.b16 %v571
      %v615 = vunpack.c.h.b16 %v571
      %v616 = vunpack.c.l.b16 %v572
      %v617 = vunpack.c.h.b16 %v572
      %v618 = vunpack.c.l.b16 %v573
      %v619 = vunpack.c.h.b16 %v573
      %v620 = vunpack.c.l.b16 %v574
      %v621 = vunpack.c.h.b16 %v574
      %v622 = vunpack.c.l.b16 %v575
      %v623 = vunpack.c.h.b16 %v575
      %v624 = vpack.c.b16 %v592, %v592
      %v625 = vpack.c.b16 %v593, %v593
      %v626 = vpack.c.b16 %v594, %v594
      %v627 = vpack.c.b16 %v595, %v595
      %v628 = vpack.c.b16 %v596, %v596
      %v629 = vpack.c.b16 %v597, %v597
      %v630 = vpack.c.b16 %v598, %v598
      %v631 = vpack.c.b16 %v599, %v599
      %v632 = vpack.c.b16 %v600, %v600
      %v633 = vpack.c.b16 %v601, %v601
      %v634 = vpack.c.b16 %v602, %v602
      %v635 = vpack.c.b16 %v603, %v603
      %v636 = vpack.c.b16 %v604, %v604
      %v637 = vpack.c.b16 %v605, %v605
      %v638 = vpack.c.b16 %v606, %v606
      %v639 = vpack.c.b16 %v607, %v607
      %v640 = vpack.c.b16 %v608, %v608
      %v641 = vpack.c.b16 %v609, %v609
      %v642 = vpack.c.b16 %v610, %v610
      %v643 = vpack.c.b16 %v611, %v611
      %v644 = vpack.c.b16 %v612, %v612
      %v645 = vpack.c.b16 %v613, %v613
      %v646 = vpack.c.b16 %v614, %v614
      %v647 = vpack.c.b16 %v615, %v615
      %v648 = vpack.c.b16 %v616, %v616
      %v649 = vpack.c.b16 %v617, %v617
      %v650 = vpack.c.b16 %v618, %v618
      %v651 = vpack.c.b16 %v619, %v619
      %v652 = vpack.c.b16 %v620, %v620
      %v653 = vpack.c.b16 %v621, %v621
      %v654 = vpack.c.b16 %v622, %v622
      %v655 = vpack.c.b16 %v623, %v623
      %vm688 = vcmask 257024
      %689 = vst.msk [vmem:[%s172] sm:$0xf] %vm688, %v624
      %690 = vst.msk [vmem:[%s172 + $0x4] sm:$0xf] %vm688, %v625
      %691 = vst.msk [vmem:[%s172 + $0x8] sm:$0xf] %vm688, %v626
      %692 = vst.msk [vmem:[%s172 + $0xc] sm:$0xf] %vm688, %v627
      %693 = vst.msk [vmem:[%s172 + $0x10] sm:$0xf] %vm688, %v628
      %694 = vst.msk [vmem:[%s172 + $0x14] sm:$0xf] %vm688, %v629
      %695 = vst.msk [vmem:[%s172 + $0x18] sm:$0xf] %vm688, %v630
      %696 = vst.msk [vmem:[%s172 + $0x1c] sm:$0xf] %vm688, %v631
      %697 = vst.msk [vmem:[%s172 + $0x20] sm:$0xf] %vm688, %v632
      %698 = vst.msk [vmem:[%s172 + $0x24] sm:$0xf] %vm688, %v633
      %699 = vst.msk [vmem:[%s172 + $0x28] sm:$0xf] %vm688, %v634
      %700 = vst.msk [vmem:[%s172 + $0x2c] sm:$0xf] %vm688, %v635
      %701 = vst.msk [vmem:[%s172 + $0x30] sm:$0xf] %vm688, %v636
      %702 = vst.msk [vmem:[%s172 + $0x34] sm:$0xf] %vm688, %v637
      %703 = vst.msk [vmem:[%s172 + $0x38] sm:$0xf] %vm688, %v638
      %704 = vst.msk [vmem:[%s172 + $0x3c] sm:$0xf] %vm688, %v639
      %705 = vst.msk [vmem:[%s172 + $0x40] sm:$0xf] %vm688, %v640
      %706 = vst.msk [vmem:[%s172 + $0x44] sm:$0xf] %vm688, %v641
      %707 = vst.msk [vmem:[%s172 + $0x48] sm:$0xf] %vm688, %v642
      %708 = vst.msk [vmem:[%s172 + $0x4c] sm:$0xf] %vm688, %v643
      %709 = vst.msk [vmem:[%s172 + $0x50] sm:$0xf] %vm688, %v644
      %710 = vst.msk [vmem:[%s172 + $0x54] sm:$0xf] %vm688, %v645
      %711 = vst.msk [vmem:[%s172 + $0x58] sm:$0xf] %vm688, %v646
      %712 = vst.msk [vmem:[%s172 + $0x5c] sm:$0xf] %vm688, %v647
      %713 = vst.msk [vmem:[%s172 + $0x60] sm:$0xf] %vm688, %v648
      %714 = vst.msk [vmem:[%s172 + $0x64] sm:$0xf] %vm688, %v649
      %715 = vst.msk [vmem:[%s172 + $0x68] sm:$0xf] %vm688, %v650
      %716 = vst.msk [vmem:[%s172 + $0x6c] sm:$0xf] %vm688, %v651
      %717 = vst.msk [vmem:[%s172 + $0x70] sm:$0xf] %vm688, %v652
      %718 = vst.msk [vmem:[%s172 + $0x74] sm:$0xf] %vm688, %v653
      %719 = vst.msk [vmem:[%s172 + $0x78] sm:$0xf] %vm688, %v654
      %720 = vst.msk [vmem:[%s172 + $0x7c] sm:$0xf] %vm688, %v655
      %s721 = smul.u32 32, %s14
      %p722 = scmp.lt.s32.totalorder %s721, 447
      %s723 = scalar_select %p722, %s721, 447
      %s724 = smul.addr %s723, 4
      %s725 = scalar_lea.vmem %s3, %s724
      // Predicated region
      $region33: #{_lambda_.5} parent=31 // pred_check
        %p726 = pneg %p100
      $region34: #{_lambda_.5} parent=31 // pred_check_branch
        %728 = sbr.rel (%p726) target = $region36
      $region35: #{_lambda_.5} parent=31 // pred_region
        %s729 = smul.u32 32, %s14
      $region36: #{_lambda_.5} parent=31 // pred_fallthru
        _
    $region32: #{_lambda_.5} parent=5 // pred_fallthru
      _
    %p730 = scmp.le.s32.totalorder 2, %s9
    // Predicated region
    $region37: #{_lambda_.5} parent=5 // pred_check
      %p731 = pneg %p730
    $region38: #{_lambda_.5} parent=5 // pred_check_branch
      %733 = sbr.rel (%p731) target = $region40
    $region39: #{_lambda_.5} parent=5 // pred_region
      %s734 = ssub.s32 %s9, 2
      // Predicated region
      $region41: #{_lambda_.5} parent=39 // pred_check
        %p735 = pneg %p106
      $region42: #{_lambda_.5} parent=39 // pred_check_branch
        %737 = sbr.rel (%p735) target = $region44
      $region43: #{_lambda_.5} parent=39 // pred_region
        %s738 = smul.u32 32, %s15
        %p739 = scmp.lt.s32.totalorder %s738, 447
        %s740 = scalar_select %p739, %s738, 447
        %s741 = smul.addr %s740, 4
        %s742 = scalar_lea.vmem %s3, %s741
      $region44: #{_lambda_.5} parent=39 // pred_fallthru
        _
    $region40: #{_lambda_.5} parent=5 // pred_fallthru
      _
  $region6: #{_lambda_.5} parent=0 // loop_footer
    %s13 = sadd.s32 1, %s9
  $region7: #{_lambda_.5} parent=0 // loop_footer_branch
    %8 = sbr.rel target = $region3
  $region8: #{_lambda_.5} parent=0 // loop_exit
    _

// kernel: _lambda_.6
$region0: #{_lambda_.6}
  #allocation0 [shape = 'u32[]', space=smem, size = 0x4, offset = 0x4, fixed_abs, tag = 'smem constant byte address 0x4 - core index']
  #allocation1 [shape = 'u32[144,128]{1,0:T(1,128)}', space=vmem, size = 0x12000, scoped, tag = 'internal scratch']
  %s0 = inlined_call_operand.vmem [shape: bf16[1024,288], index: 0, kind: input, shape index: {}]
  %s1 = inlined_call_operand.vmem [shape: bf16[288,32], index: 1, kind: input, shape index: {}]
  %s2 = inlined_call_operand.vmem [shape: f32[1,32], index: 2, kind: input, shape index: {}]
  %s3 = inlined_call_operand.vmem [shape: bf16[1024,32], index: 3, kind: output, shape index: {}]
  %s4 = sld [smem:[#allocation0]]
  $region45: #{_lambda_.6} parent=0
    _
  %s6 = ssub.s32 1, %s4
  %s7 = scalar_select 0, %s6, %s4
  loop: start=0, step=1, limit=6
  $region2: #{_lambda_.6} parent=0 // loop_pre_header
    _
  $region3: #{_lambda_.6} parent=0 // loop_header
    %s9 = sphi 0, %s13
    %p10 = scmp.ge.s32.totalorder %s9, 6
    %s19 = sphi 0, %s21
    %s22 = sphi 0, %s19
    %s23 = sphi 0, %s22
    %s39 = sphi 0, %s23
    %s43 = sphi 0, %s43
    %s45 = sphi 0, %s43
    %s46 = sphi 0, %s45
    %s60 = sphi 0, %s46
    %s64 = sphi 0, %s64
    %s66 = sphi 0, %s64
    %s67 = sphi 0, %s66
    %s81 = sphi 0, %s67
    %s87 = sphi 0, %s89
    %s90 = sphi 0, %s87
    %s91 = sphi 0, %s90
    %s107 = sphi 0, %s91
  $region4: #{_lambda_.6} parent=0 // loop_header_branch
    %12 = sbr.rel (%p10) target = $region8
  $region5: #{_lambda_.6} parent=0 // loop_body
    %s14 = ssub.s32 %s9, 1
    %s15 = ssub.s32 %s9, 2
    %s16 = sadd.s32 %s9, 1
    %s17 = ssub.s32 %s9, %s16
    %p18 = scmp.eq.s32.totalorder %s17, 0
    %s20 = sadd.s32 %s19, 1
    %s21 = scalar_select %p18, %s19, %s20
    %p24 = pneg %p18
    %p25 = scmp.eq.s32.totalorder %s9, 3
    %p26 = por %p24, %p25
    %p27 = scmp.ne.s32.totalorder %s19, %s22
    %p28 = scmp.eq.s32.totalorder %s9, 0
    %p29 = por %p27, %p28
    %p30 = scmp.ne.s32.totalorder %s19, %s22
    %p31 = scmp.eq.s32.totalorder %s14, 3
    %p32 = por %p30, %p31
    %p33 = scmp.ne.s32.totalorder %s22, %s23
    %p34 = scmp.eq.s32.totalorder %s14, 0
    %p35 = por %p33, %p34
    %p36 = scmp.ne.s32.totalorder %s22, %s23
    %p37 = scmp.eq.s32.totalorder %s15, 3
    %p38 = por %p36, %p37
    %p40 = scmp.ne.s32.totalorder %s23, %s39
    %p41 = scmp.eq.s32.totalorder %s15, 0
    %p42 = por %p40, %p41
    %s44 = sadd.s32 %s43, 1
    %p47 = scmp.eq.s32.totalorder %s9, 3
    %p48 = scmp.ne.s32.totalorder %s43, %s45
    %p49 = scmp.eq.s32.totalorder %s9, 0
    %p50 = por %p48, %p49
    %p51 = scmp.ne.s32.totalorder %s43, %s45
    %p52 = scmp.eq.s32.totalorder %s14, 3
    %p53 = por %p51, %p52
    %p54 = scmp.ne.s32.totalorder %s45, %s46
    %p55 = scmp.eq.s32.totalorder %s14, 0
    %p56 = por %p54, %p55
    %p57 = scmp.ne.s32.totalorder %s45, %s46
    %p58 = scmp.eq.s32.totalorder %s15, 3
    %p59 = por %p57, %p58
    %p61 = scmp.ne.s32.totalorder %s46, %s60
    %p62 = scmp.eq.s32.totalorder %s15, 0
    %p63 = por %p61, %p62
    %s65 = sadd.s32 %s64, 1
    %p68 = scmp.eq.s32.totalorder %s9, 3
    %p69 = scmp.ne.s32.totalorder %s64, %s66
    %p70 = scmp.eq.s32.totalorder %s9, 0
    %p71 = por %p69, %p70
    %p72 = scmp.ne.s32.totalorder %s64, %s66
    %p73 = scmp.eq.s32.totalorder %s14, 3
    %p74 = por %p72, %p73
    %p75 = scmp.ne.s32.totalorder %s66, %s67
    %p76 = scmp.eq.s32.totalorder %s14, 0
    %p77 = por %p75, %p76
    %p78 = scmp.ne.s32.totalorder %s66, %s67
    %p79 = scmp.eq.s32.totalorder %s15, 3
    %p80 = por %p78, %p79
    %p82 = scmp.ne.s32.totalorder %s67, %s81
    %p83 = scmp.eq.s32.totalorder %s15, 0
    %p84 = por %p82, %p83
    %s85 = ssub.s32 %s9, %s16
    %p86 = scmp.eq.s32.totalorder %s85, 0
    %s88 = sadd.s32 %s87, 1
    %s89 = scalar_select %p86, %s87, %s88
    %p92 = pneg %p86
    %p93 = scmp.eq.s32.totalorder %s9, 3
    %p94 = por %p92, %p93
    %p95 = scmp.ne.s32.totalorder %s87, %s90
    %p96 = scmp.eq.s32.totalorder %s9, 0
    %p97 = por %p95, %p96
    %p98 = scmp.ne.s32.totalorder %s87, %s90
    %p99 = scmp.eq.s32.totalorder %s14, 3
    %p100 = por %p98, %p99
    %p101 = scmp.ne.s32.totalorder %s90, %s91
    %p102 = scmp.eq.s32.totalorder %s14, 0
    %p103 = por %p101, %p102
    %p104 = scmp.ne.s32.totalorder %s90, %s91
    %p105 = scmp.eq.s32.totalorder %s15, 3
    %p106 = por %p104, %p105
    %p108 = scmp.ne.s32.totalorder %s91, %s107
    %p109 = scmp.eq.s32.totalorder %s15, 0
    %p110 = por %p108, %p109
    %p111 = scmp.le.s32.totalorder 1, %s9
    %p112 = scmp.lt.s32.totalorder %s9, 5
    %p113 = pnand %p111, %p112
    %p114 = pneg %p113
    // Predicated region
    $region9: #{_lambda_.6} parent=5 // pred_check
      _
    $region10: #{_lambda_.6} parent=5 // pred_check_branch
      %116 = sbr.rel (%p113) target = $region12
    $region11: #{_lambda_.6} parent=5 // pred_region
      %s117 = ssub.s32 %s9, 1
      // Predicated region
      $region13: #{_lambda_.6} parent=11 // pred_check
        %p118 = pneg %p56
      $region14: #{_lambda_.6} parent=11 // pred_check_branch
        %120 = sbr.rel (%p118) target = $region16
      $region15: #{_lambda_.6} parent=11 // pred_region
        _
      $region16: #{_lambda_.6} parent=11 // pred_fallthru
        _
      // Predicated region
      $region17: #{_lambda_.6} parent=11 // pred_check
        %p121 = pneg %p77
      $region18: #{_lambda_.6} parent=11 // pred_check_branch
        %123 = sbr.rel (%p121) target = $region20
      $region19: #{_lambda_.6} parent=11 // pred_region
        _
      $region20: #{_lambda_.6} parent=11 // pred_fallthru
        _
    $region12: #{_lambda_.6} parent=5 // pred_fallthru
      _
    %p124 = scmp.lt.s32.totalorder %s9, 4
    // Predicated region
    $region21: #{_lambda_.6} parent=5 // pred_check
      %p125 = pneg %p124
    $region22: #{_lambda_.6} parent=5 // pred_check_branch
      %127 = sbr.rel (%p125) target = $region24
    $region23: #{_lambda_.6} parent=5 // pred_region
      // Predicated region
      $region25: #{_lambda_.6} parent=23 // pred_check
        %p128 = pneg %p29
      $region26: #{_lambda_.6} parent=23 // pred_check_branch
        %130 = sbr.rel (%p128) target = $region28
      $region27: #{_lambda_.6} parent=23 // pred_region
        %s131 = smul.u32 32, %s9
        %p132 = scmp.lt.s32.totalorder %s131, 127
        %s133 = scalar_select %p132, %s131, 127
        %s134 = smul.addr %s133, 3
        %s135 = smul.addr %s134, 4
        %s136 = scalar_lea.vmem %s0, %s135
        %s137 = smul.u32 32, %s9
      $region28: #{_lambda_.6} parent=23 // pred_fallthru
        _
    $region24: #{_lambda_.6} parent=5 // pred_fallthru
      _
    %p138 = scmp.le.s32.totalorder 1, %s9
    %p139 = scmp.lt.s32.totalorder %s9, 5
    %p140 = pnand %p138, %p139
    %p141 = pneg %p140
    // Predicated region
    $region29: #{_lambda_.6} parent=5 // pred_check
      _
    $region30: #{_lambda_.6} parent=5 // pred_check_branch
      %143 = sbr.rel (%p140) target = $region32
    $region31: #{_lambda_.6} parent=5 // pred_region
      %s144 = ssub.s32 %s9, 1
      %s145 = smul.u32 32, %s14
      %p146 = scmp.lt.s32.totalorder %s145, 127
      %s147 = scalar_select %p146, %s145, 127
      %s148 = smul.addr %s147, 3
      %s149 = smul.addr %s148, 4
      %s150 = scalar_lea.vmem %s0, %s149
      %p151 = pneg %p35
      %p152 = pneg %p32
      %p153 = pneg %p56
      %p154 = pneg %p53
      %p155 = pneg %p77
      %p156 = pneg %p74
      %p157 = pneg %p103
      %p158 = pneg %p100
      %s159 = smul.u32 32, %s14
      %p160 = scmp.lt.s32.totalorder %s159, 127
      %s161 = scalar_select %p160, %s159, 127
      %s162 = smul.addr %s161, 4
      %s163 = scalar_lea.vmem %s3, %s162
      %s164 = smul.u32 32, %s14
      %p165 = scmp.lt.s32.totalorder %s164, 127
      %s166 = scalar_select %p165, %s164, 127
      %s167 = smul.addr %s166, 3
      %s168 = smul.addr %s167, 4
      %s169 = scalar_lea.vmem %s0, %s168
      %s170 = smul.u32 32, %s14
      %s171 = smul.u32 32, %s14
      %p172 = scmp.lt.s32.totalorder %s171, 127
      %s173 = scalar_select %p172, %s171, 127
      %s174 = smul.addr %s173, 4
      %s175 = scalar_lea.vmem %s3, %s174
      %s176 = smul.u32 32, %s14
      %v178 = vld [vmem:[%s169] sm:$0xff]
      %v179 = vld [vmem:[%s169 + $0x8] sm:$0xf]
      %v180 = vld [vmem:[%s169 + $0xc] sm:$0xff]
      %v181 = vld [vmem:[%s169 + $0x14] sm:$0xf]
      %v182 = vld [vmem:[%s169 + $0x18] sm:$0xff]
      %v183 = vld [vmem:[%s169 + $0x20] sm:$0xf]
      %v184 = vld [vmem:[%s169 + $0x24] sm:$0xff]
      %v185 = vld [vmem:[%s169 + $0x2c] sm:$0xf]
      %v186 = vld [vmem:[%s169 + $0x30] sm:$0xff]
      %v187 = vld [vmem:[%s169 + $0x38] sm:$0xf]
      %v188 = vld [vmem:[%s169 + $0x3c] sm:$0xff]
      %v189 = vld [vmem:[%s169 + $0x44] sm:$0xf]
      %v190 = vld [vmem:[%s169 + $0x48] sm:$0xff]
      %v191 = vld [vmem:[%s169 + $0x50] sm:$0xf]
      %v192 = vld [vmem:[%s169 + $0x54] sm:$0xff]
      %v193 = vld [vmem:[%s169 + $0x5c] sm:$0xf]
      %v194 = vld [vmem:[%s169 + $0x60] sm:$0xff]
      %v195 = vld [vmem:[%s169 + $0x68] sm:$0xf]
      %v196 = vld [vmem:[%s169 + $0x6c] sm:$0xff]
      %v197 = vld [vmem:[%s169 + $0x74] sm:$0xf]
      %v198 = vld [vmem:[%s169 + $0x78] sm:$0xff]
      %v199 = vld [vmem:[%s169 + $0x80] sm:$0xf]
      %v200 = vld [vmem:[%s169 + $0x84] sm:$0xff]
      %v201 = vld [vmem:[%s169 + $0x8c] sm:$0xf]
      %v202 = vld [vmem:[%s169 + $0x90] sm:$0xff]
      %v203 = vld [vmem:[%s169 + $0x98] sm:$0xf]
      %v204 = vld [vmem:[%s169 + $0x9c] sm:$0xff]
      %v205 = vld [vmem:[%s169 + $0xa4] sm:$0xf]
      %v206 = vld [vmem:[%s169 + $0xa8] sm:$0xff]
      %v207 = vld [vmem:[%s169 + $0xb0] sm:$0xf]
      %v208 = vld [vmem:[%s169 + $0xb4] sm:$0xff]
      %v209 = vld [vmem:[%s169 + $0xbc] sm:$0xf]
      %v210 = vld [vmem:[%s169 + $0xc0] sm:$0xff]
      %v211 = vld [vmem:[%s169 + $0xc8] sm:$0xf]
      %v212 = vld [vmem:[%s169 + $0xcc] sm:$0xff]
      %v213 = vld [vmem:[%s169 + $0xd4] sm:$0xf]
      %v214 = vld [vmem:[%s169 + $0xd8] sm:$0xff]
      %v215 = vld [vmem:[%s169 + $0xe0] sm:$0xf]
      %v216 = vld [vmem:[%s169 + $0xe4] sm:$0xff]
      %v217 = vld [vmem:[%s169 + $0xec] sm:$0xf]
      %v218 = vld [vmem:[%s169 + $0xf0] sm:$0xff]
      %v219 = vld [vmem:[%s169 + $0xf8] sm:$0xf]
      %v220 = vld [vmem:[%s169 + $0xfc] sm:$0xff]
      %v221 = vld [vmem:[%s169 + $0x104] sm:$0xf]
      %v222 = vld [vmem:[%s169 + $0x108] sm:$0xff]
      %v223 = vld [vmem:[%s169 + $0x110] sm:$0xf]
      %v224 = vld [vmem:[%s169 + $0x114] sm:$0xff]
      %v225 = vld [vmem:[%s169 + $0x11c] sm:$0xf]
      %v226 = vld [vmem:[%s169 + $0x120] sm:$0xff]
      %v227 = vld [vmem:[%s169 + $0x128] sm:$0xf]
      %v228 = vld [vmem:[%s169 + $0x12c] sm:$0xff]
      %v229 = vld [vmem:[%s169 + $0x134] sm:$0xf]
      %v230 = vld [vmem:[%s169 + $0x138] sm:$0xff]
      %v231 = vld [vmem:[%s169 + $0x140] sm:$0xf]
      %v232 = vld [vmem:[%s169 + $0x144] sm:$0xff]
      %v233 = vld [vmem:[%s169 + $0x14c] sm:$0xf]
      %v234 = vld [vmem:[%s169 + $0x150] sm:$0xff]
      %v235 = vld [vmem:[%s169 + $0x158] sm:$0xf]
      %v236 = vld [vmem:[%s169 + $0x15c] sm:$0xff]
      %v237 = vld [vmem:[%s169 + $0x164] sm:$0xf]
      %v238 = vld [vmem:[%s169 + $0x168] sm:$0xff]
      %v239 = vld [vmem:[%s169 + $0x170] sm:$0xf]
      %v240 = vld [vmem:[%s169 + $0x174] sm:$0xff]
      %v241 = vld [vmem:[%s169 + $0x17c] sm:$0xf]
      %v242 = vld [vmem:[%s1] sm:$0xf]
      %v243 = vld [vmem:[%s1 + $0x4] sm:$0xf]
      %v244 = vld [vmem:[%s1 + $0x8] sm:$0xf]
      %v245 = vld [vmem:[%s1 + $0xc] sm:$0xf]
      %v246 = vld [vmem:[%s1 + $0x10] sm:$0xf]
      %v247 = vld [vmem:[%s1 + $0x14] sm:$0xf]
      %v248 = vld [vmem:[%s1 + $0x18] sm:$0xf]
      %v249 = vld [vmem:[%s1 + $0x1c] sm:$0xf]
      %v250 = vld [vmem:[%s1 + $0x20] sm:$0xf]
      %v251 = vld [vmem:[%s1 + $0x24] sm:$0xf]
      %v252 = vld [vmem:[%s1 + $0x28] sm:$0xf]
      %v253 = vld [vmem:[%s1 + $0x2c] sm:$0xf]
      %v254 = vld [vmem:[%s1 + $0x30] sm:$0xf]
      %v255 = vld [vmem:[%s1 + $0x34] sm:$0xf]
      %v256 = vld [vmem:[%s1 + $0x38] sm:$0xf]
      %v257 = vld [vmem:[%s1 + $0x3c] sm:$0xf]
      %v258 = vld [vmem:[%s1 + $0x40] sm:$0xf]
      %v259 = vld [vmem:[%s1 + $0x44] sm:$0xf]
      %v260 = vld [vmem:[%s1 + $0x48] sm:$0xf]
      %v261 = vld [vmem:[%s1 + $0x4c] sm:$0xf]
      %v262 = vld [vmem:[%s1 + $0x50] sm:$0xf]
      %v263 = vld [vmem:[%s1 + $0x54] sm:$0xf]
      %v264 = vld [vmem:[%s1 + $0x58] sm:$0xf]
      %v265 = vld [vmem:[%s1 + $0x5c] sm:$0xf]
      %v266 = vld [vmem:[%s1 + $0x60] sm:$0xf]
      %v267 = vld [vmem:[%s1 + $0x64] sm:$0xf]
      %v268 = vld [vmem:[%s1 + $0x68] sm:$0xf]
      %v269 = vld [vmem:[%s1 + $0x6c] sm:$0xf]
      %v270 = vld [vmem:[%s1 + $0x70] sm:$0xf]
      %v271 = vld [vmem:[%s1 + $0x74] sm:$0xf]
      %v272 = vld [vmem:[%s1 + $0x78] sm:$0xf]
      %v273 = vld [vmem:[%s1 + $0x7c] sm:$0xf]
      %v274 = vld [vmem:[%s1 + $0x80] sm:$0xf]
      %v275 = vld [vmem:[%s1 + $0x84] sm:$0xf]
      %v276 = vld [vmem:[%s1 + $0x88] sm:$0xf]
      %v277 = vld [vmem:[%s1 + $0x8c] sm:$0xf]
      %v278 = vld [vmem:[%s2] sm:$0x1]
      %v280 = vlaneseq
      %v281 = vshrl.u32 %v280, 7
      %v282 = vsub.s32 0, %v281
      %v283 = vrot.slane %v278, %v282
      %v349 = vunpack.c.l.b16 %v178
      %v350 = vunpack.c.h.b16 %v178
      %v351 = vunpack.c.l.b16 %v179
      %v352 = vunpack.c.l.b16 %v180
      %v353 = vunpack.c.h.b16 %v180
      %v354 = vunpack.c.l.b16 %v181
      %v355 = vunpack.c.l.b16 %v182
      %v356 = vunpack.c.h.b16 %v182
      %v357 = vunpack.c.l.b16 %v183
      %v358 = vunpack.c.l.b16 %v184
      %v359 = vunpack.c.h.b16 %v184
      %v360 = vunpack.c.l.b16 %v185
      %v361 = vunpack.c.l.b16 %v186
      %v362 = vunpack.c.h.b16 %v186
      %v363 = vunpack.c.l.b16 %v187
      %v364 = vunpack.c.l.b16 %v188
      %v365 = vunpack.c.h.b16 %v188
      %v366 = vunpack.c.l.b16 %v189
      %v367 = vunpack.c.l.b16 %v190
      %v368 = vunpack.c.h.b16 %v190
      %v369 = vunpack.c.l.b16 %v191
      %v370 = vunpack.c.l.b16 %v192
      %v371 = vunpack.c.h.b16 %v192
      %v372 = vunpack.c.l.b16 %v193
      %v373 = vunpack.c.l.b16 %v194
      %v374 = vunpack.c.h.b16 %v194
      %v375 = vunpack.c.l.b16 %v195
      %v376 = vunpack.c.l.b16 %v196
      %v377 = vunpack.c.h.b16 %v196
      %v378 = vunpack.c.l.b16 %v197
      %v379 = vunpack.c.l.b16 %v198
      %v380 = vunpack.c.h.b16 %v198
      %v381 = vunpack.c.l.b16 %v199
      %v382 = vunpack.c.l.b16 %v200
      %v383 = vunpack.c.h.b16 %v200
      %v384 = vunpack.c.l.b16 %v201
      %v385 = vunpack.c.l.b16 %v202
      %v386 = vunpack.c.h.b16 %v202
      %v387 = vunpack.c.l.b16 %v203
      %v388 = vunpack.c.l.b16 %v204
      %v389 = vunpack.c.h.b16 %v204
      %v390 = vunpack.c.l.b16 %v205
      %v391 = vunpack.c.l.b16 %v206
      %v392 = vunpack.c.h.b16 %v206
      %v393 = vunpack.c.l.b16 %v207
      %v394 = vunpack.c.l.b16 %v208
      %v395 = vunpack.c.h.b16 %v208
      %v396 = vunpack.c.l.b16 %v209
      %v397 = vunpack.c.l.b16 %v210
      %v398 = vunpack.c.h.b16 %v210
      %v399 = vunpack.c.l.b16 %v211
      %v400 = vunpack.c.l.b16 %v212
      %v401 = vunpack.c.h.b16 %v212
      %v402 = vunpack.c.l.b16 %v213
      %v403 = vunpack.c.l.b16 %v214
      %v404 = vunpack.c.h.b16 %v214
      %v405 = vunpack.c.l.b16 %v215
      %v406 = vunpack.c.l.b16 %v216
      %v407 = vunpack.c.h.b16 %v216
      %v408 = vunpack.c.l.b16 %v217
      %v409 = vunpack.c.l.b16 %v218
      %v410 = vunpack.c.h.b16 %v218
      %v411 = vunpack.c.l.b16 %v219
      %v412 = vunpack.c.l.b16 %v220
      %v413 = vunpack.c.h.b16 %v220
      %v414 = vunpack.c.l.b16 %v221
      %v415 = vunpack.c.l.b16 %v222
      %v416 = vunpack.c.h.b16 %v222
      %v417 = vunpack.c.l.b16 %v223
      %v418 = vunpack.c.l.b16 %v224
      %v419 = vunpack.c.h.b16 %v224
      %v420 = vunpack.c.l.b16 %v225
      %v421 = vunpack.c.l.b16 %v226
      %v422 = vunpack.c.h.b16 %v226
      %v423 = vunpack.c.l.b16 %v227
      %v424 = vunpack.c.l.b16 %v228
      %v425 = vunpack.c.h.b16 %v228
      %v426 = vunpack.c.l.b16 %v229
      %v427 = vunpack.c.l.b16 %v230
      %v428 = vunpack.c.h.b16 %v230
      %v429 = vunpack.c.l.b16 %v231
      %v430 = vunpack.c.l.b16 %v232
      %v431 = vunpack.c.h.b16 %v232
      %v432 = vunpack.c.l.b16 %v233
      %v433 = vunpack.c.l.b16 %v234
      %v434 = vunpack.c.h.b16 %v234
      %v435 = vunpack.c.l.b16 %v235
      %v436 = vunpack.c.l.b16 %v236
      %v437 = vunpack.c.h.b16 %v236
      %v438 = vunpack.c.l.b16 %v237
      %v439 = vunpack.c.l.b16 %v238
      %v440 = vunpack.c.h.b16 %v238
      %v441 = vunpack.c.l.b16 %v239
      %v442 = vunpack.c.l.b16 %v240
      %v443 = vunpack.c.h.b16 %v240
      %v444 = vunpack.c.l.b16 %v241
      %v445 = vpack.c.b16 %v352, %v349
      %v446 = vpack.c.b16 %v353, %v350
      %v447 = vpack.c.b16 %v354, %v351
      %v448 = vpack.c.b16 %v358, %v355
      %v449 = vpack.c.b16 %v359, %v356
      %v450 = vpack.c.b16 %v360, %v357
      %v451 = vpack.c.b16 %v364, %v361
      %v452 = vpack.c.b16 %v365, %v362
      %v453 = vpack.c.b16 %v366, %v363
      %v454 = vpack.c.b16 %v370, %v367
      %v455 = vpack.c.b16 %v371, %v368
      %v456 = vpack.c.b16 %v372, %v369
      %v457 = vpack.c.b16 %v376, %v373
      %v458 = vpack.c.b16 %v377, %v374
      %v459 = vpack.c.b16 %v378, %v375
      %v460 = vpack.c.b16 %v382, %v379
      %v461 = vpack.c.b16 %v383, %v380
      %v462 = vpack.c.b16 %v384, %v381
      %v463 = vpack.c.b16 %v388, %v385
      %v464 = vpack.c.b16 %v389, %v386
      %v465 = vpack.c.b16 %v390, %v387
      %v466 = vpack.c.b16 %v394, %v391
      %v467 = vpack.c.b16 %v395, %v392
      %v468 = vpack.c.b16 %v396, %v393
      %v469 = vpack.c.b16 %v400, %v397
      %v470 = vpack.c.b16 %v401, %v398
      %v471 = vpack.c.b16 %v402, %v399
      %v472 = vpack.c.b16 %v406, %v403
      %v473 = vpack.c.b16 %v407, %v404
      %v474 = vpack.c.b16 %v408, %v405
      %v475 = vpack.c.b16 %v412, %v409
      %v476 = vpack.c.b16 %v413, %v410
      %v477 = vpack.c.b16 %v414, %v411
      %v478 = vpack.c.b16 %v418, %v415
      %v479 = vpack.c.b16 %v419, %v416
      %v480 = vpack.c.b16 %v420, %v417
      %v481 = vpack.c.b16 %v424, %v421
      %v482 = vpack.c.b16 %v425, %v422
      %v483 = vpack.c.b16 %v426, %v423
      %v484 = vpack.c.b16 %v430, %v427
      %v485 = vpack.c.b16 %v431, %v428
      %v486 = vpack.c.b16 %v432, %v429
      %v487 = vpack.c.b16 %v436, %v433
      %v488 = vpack.c.b16 %v437, %v434
      %v489 = vpack.c.b16 %v438, %v435
      %v490 = vpack.c.b16 %v442, %v439
      %v491 = vpack.c.b16 %v443, %v440
      %v492 = vpack.c.b16 %v444, %v441
      %v561 = vunpack.c.l.b16 %v242
      %v562 = vunpack.c.l.b16 %v243
      %v563 = vunpack.c.l.b16 %v244
      %v564 = vunpack.c.l.b16 %v245
      %v565 = vunpack.c.l.b16 %v246
      %v566 = vunpack.c.l.b16 %v247
      %v567 = vunpack.c.l.b16 %v248
      %v568 = vunpack.c.l.b16 %v249
      %v569 = vunpack.c.l.b16 %v250
      %v570 = vunpack.c.l.b16 %v251
      %v571 = vunpack.c.l.b16 %v252
      %v572 = vunpack.c.l.b16 %v253
      %v573 = vunpack.c.l.b16 %v254
      %v574 = vunpack.c.l.b16 %v255
      %v575 = vunpack.c.l.b16 %v256
      %v576 = vunpack.c.l.b16 %v257
      %v577 = vunpack.c.l.b16 %v258
      %v578 = vunpack.c.l.b16 %v259
      %v579 = vunpack.c.l.b16 %v260
      %v580 = vunpack.c.l.b16 %v261
      %v581 = vunpack.c.l.b16 %v262
      %v582 = vunpack.c.l.b16 %v263
      %v583 = vunpack.c.l.b16 %v264
      %v584 = vunpack.c.l.b16 %v265
      %v585 = vunpack.c.l.b16 %v266
      %v586 = vunpack.c.l.b16 %v267
      %v587 = vunpack.c.l.b16 %v268
      %v588 = vunpack.c.l.b16 %v269
      %v589 = vunpack.c.l.b16 %v270
      %v590 = vunpack.c.l.b16 %v271
      %v591 = vunpack.c.l.b16 %v272
      %v592 = vunpack.c.l.b16 %v273
      %v593 = vunpack.c.l.b16 %v274
      %v594 = vunpack.c.l.b16 %v275
      %v595 = vunpack.c.l.b16 %v276
      %v596 = vunpack.c.l.b16 %v277
      %v597 = vpack.c.b16 %v562, %v561
      %v598 = vpack.c.b16 %v564, %v563
      %v599 = vpack.c.b16 %v566, %v565
      %v600 = vpack.c.b16 %v568, %v567
      %v601 = vpack.c.b16 %v570, %v569
      %v602 = vpack.c.b16 %v572, %v571
      %v603 = vpack.c.b16 %v574, %v573
      %v604 = vpack.c.b16 %v576, %v575
      %v605 = vpack.c.b16 %v578, %v577
      %v606 = vpack.c.b16 %v580, %v579
      %v607 = vpack.c.b16 %v582, %v581
      %v608 = vpack.c.b16 %v584, %v583
      %v609 = vpack.c.b16 %v586, %v585
      %v610 = vpack.c.b16 %v588, %v587
      %v611 = vpack.c.b16 %v590, %v589
      %v612 = vpack.c.b16 %v592, %v591
      %v613 = vpack.c.b16 %v594, %v593
      %v614 = vpack.c.b16 %v596, %v595
      %vm633 = vcmask 261120
      %v635 = vsel %vm633, %v447, 0
      %v638 = vsel %vm633, %v450, 0
      %v641 = vsel %vm633, %v453, 0
      %v644 = vsel %vm633, %v456, 0
      %v647 = vsel %vm633, %v459, 0
      %v650 = vsel %vm633, %v462, 0
      %v653 = vsel %vm633, %v465, 0
      %v656 = vsel %vm633, %v468, 0
      %v659 = vsel %vm633, %v471, 0
      %v662 = vsel %vm633, %v474, 0
      %v665 = vsel %vm633, %v477, 0
      %v668 = vsel %vm633, %v480, 0
      %v671 = vsel %vm633, %v483, 0
      %v674 = vsel %vm633, %v486, 0
      %v677 = vsel %vm633, %v489, 0
      %v680 = vsel %vm633, %v492, 0
      %682 = vmatprep.subr.bf16.mxu0 0
      %683 = vmatpush1.bf16.msra.mxu0 %v597
      %684 = vmatprep.subr.bf16.mxu0 0
      %685 = vmatpush1.bf16.msra.mxu0 %v598
      %686 = vmatprep.subr.bf16.mxu0 0
      %687 = vmatpush1.bf16.msra.mxu0 %v599
      %688 = vmatprep.subr.bf16.mxu0 0
      %689 = vmatpush1.bf16.msra.mxu0 %v600
      %690 = vmatprep.subr.bf16.mxu0 0
      %691 = vmatpush1.bf16.msra.mxu0 %v601
      %692 = vmatprep.subr.bf16.mxu0 0
      %693 = vmatpush1.bf16.msra.mxu0 %v602
      %694 = vmatprep.subr.bf16.mxu0 0
      %695 = vmatpush1.bf16.msra.mxu0 %v603
      %696 = vmatprep.subr.bf16.mxu0 0
      %697 = vmatpush1.bf16.msra.mxu0 %v604
      %698 = vmatprep.subr.bf16.mxu0 0
      %699 = vmatpush1.bf16.msra.mxu0 %v605
      %700 = vmatprep.subr.bf16.mxu0 0
      %701 = vmatpush1.bf16.msra.mxu0 %v606
      %702 = vmatprep.subr.bf16.mxu0 0
      %703 = vmatpush1.bf16.msra.mxu0 %v607
      %704 = vmatprep.subr.bf16.mxu0 0
      %705 = vmatpush1.bf16.msra.mxu0 %v608
      %706 = vmatprep.subr.bf16.mxu0 0
      %707 = vmatpush1.bf16.msra.mxu0 %v609
      %708 = vmatprep.subr.bf16.mxu0 0
      %709 = vmatpush1.bf16.msra.mxu0 %v610
      %710 = vmatprep.subr.bf16.mxu0 0
      %711 = vmatpush1.bf16.msra.mxu0 %v611
      %712 = vmatprep.subr.bf16.mxu0 0
      %713 = vmatpush1.bf16.msra.mxu0 %v612
      %714 = vmatprep.mubr.bf16.mxu0 %v446
      %715 = vmatmul.mubr.bf16.gmra.mrb[0].mxu0 %v445
      %v716 = vpop.f32.mrb[0].mxu0
      %v717 = vadd.f32 %v283, %v716
      %v718 = vpop.f32.mrb[0].mxu0
      %v719 = vpop.f32.mrb[0].mxu0
      %v720 = vadd.f32 %v283, %v719
      %v721 = vpop.f32.mrb[0].mxu0
      %722 = vmatprep.mubr.bf16.mxu0 %v449
      %723 = vmatmul.mubr.bf16.gmra.mrb[0].mxu0 %v448
      %v724 = vpop.f32.mrb[0].mxu0
      %v725 = vadd.f32 %v283, %v724
      %v726 = vpop.f32.mrb[0].mxu0
      %v727 = vpop.f32.mrb[0].mxu0
      %v728 = vadd.f32 %v283, %v727
      %v729 = vpop.f32.mrb[0].mxu0
      %730 = vmatprep.mubr.bf16.mxu0 %v452
      %731 = vmatmul.mubr.bf16.gmra.mrb[0].mxu0 %v451
      %v732 = vpop.f32.mrb[0].mxu0
      %v733 = vadd.f32 %v283, %v732
      %v734 = vpop.f32.mrb[0].mxu0
      %v735 = vpop.f32.mrb[0].mxu0
      %v736 = vadd.f32 %v283, %v735
      %v737 = vpop.f32.mrb[0].mxu0
      %738 = vmatprep.mubr.bf16.mxu0 %v455
      %739 = vmatmul.mubr.bf16.gmra.mrb[0].mxu0 %v454
      %v740 = vpop.f32.mrb[0].mxu0
      %v741 = vadd.f32 %v283, %v740
      %v742 = vpop.f32.mrb[0].mxu0
      %v743 = vpop.f32.mrb[0].mxu0
      %v744 = vadd.f32 %v283, %v743
      %v745 = vpop.f32.mrb[0].mxu0
      %746 = vmatprep.mubr.bf16.mxu0 %v458
      %747 = vmatmul.mubr.bf16.gmra.mrb[0].mxu0 %v457
      %v748 = vpop.f32.mrb[0].mxu0
      %v749 = vadd.f32 %v283, %v748
      %v750 = vpop.f32.mrb[0].mxu0
      %v751 = vpop.f32.mrb[0].mxu0
      %v752 = vadd.f32 %v283, %v751
      %v753 = vpop.f32.mrb[0].mxu0
      %754 = vmatprep.mubr.bf16.mxu0 %v461
      %755 = vmatmul.mubr.bf16.gmra.mrb[0].mxu0 %v460
      %v756 = vpop.f32.mrb[0].mxu0
      %v757 = vadd.f32 %v283, %v756
      %v758 = vpop.f32.mrb[0].mxu0
      %v759 = vpop.f32.mrb[0].mxu0
      %v760 = vadd.f32 %v283, %v759
      %v761 = vpop.f32.mrb[0].mxu0
      %762 = vmatprep.mubr.bf16.mxu0 %v464
      %763 = vmatmul.mubr.bf16.gmra.mrb[0].mxu0 %v463
      %v764 = vpop.f32.mrb[0].mxu0
      %v765 = vadd.f32 %v283, %v764
      %v766 = vpop.f32.mrb[0].mxu0
      %v767 = vpop.f32.mrb[0].mxu0
      %v768 = vadd.f32 %v283, %v767
      %v769 = vpop.f32.mrb[0].mxu0
      %770 = vmatprep.mubr.bf16.mxu0 %v467
      %771 = vmatmul.mubr.bf16.gmra.mrb[0].mxu0 %v466
      %v772 = vpop.f32.mrb[0].mxu0
      %v773 = vadd.f32 %v283, %v772
      %v774 = vpop.f32.mrb[0].mxu0
      %v775 = vpop.f32.mrb[0].mxu0
      %v776 = vadd.f32 %v283, %v775
      %v777 = vpop.f32.mrb[0].mxu0
      %778 = vmatprep.mubr.bf16.mxu0 %v470
      %779 = vmatmul.mubr.bf16.gmra.mrb[0].mxu0 %v469
      %v780 = vpop.f32.mrb[0].mxu0
      %v781 = vadd.f32 %v283, %v780
      %v782 = vpop.f32.mrb[0].mxu0
      %v783 = vpop.f32.mrb[0].mxu0
      %v784 = vadd.f32 %v283, %v783
      %v785 = vpop.f32.mrb[0].mxu0
      %786 = vmatprep.mubr.bf16.mxu0 %v473
      %787 = vmatmul.mubr.bf16.gmra.mrb[0].mxu0 %v472
      %v788 = vpop.f32.mrb[0].mxu0
      %v789 = vadd.f32 %v283, %v788
      %v790 = vpop.f32.mrb[0].mxu0
      %v791 = vpop.f32.mrb[0].mxu0
      %v792 = vadd.f32 %v283, %v791
      %v793 = vpop.f32.mrb[0].mxu0
      %794 = vmatprep.mubr.bf16.mxu0 %v476
      %795 = vmatmul.mubr.bf16.gmra.mrb[0].mxu0 %v475
      %v796 = vpop.f32.mrb[0].mxu0
      %v797 = vadd.f32 %v283, %v796
      %v798 = vpop.f32.mrb[0].mxu0
      %v799 = vpop.f32.mrb[0].mxu0
      %v800 = vadd.f32 %v283, %v799
      %v801 = vpop.f32.mrb[0].mxu0
      %802 = vmatprep.mubr.bf16.mxu0 %v479
      %803 = vmatmul.mubr.bf16.gmra.mrb[0].mxu0 %v478
      %v804 = vpop.f32.mrb[0].mxu0
      %v805 = vadd.f32 %v283, %v804
      %v806 = vpop.f32.mrb[0].mxu0
      %v807 = vpop.f32.mrb[0].mxu0
      %v808 = vadd.f32 %v283, %v807
      %v809 = vpop.f32.mrb[0].mxu0
      %810 = vmatprep.mubr.bf16.mxu0 %v482
      %811 = vmatmul.mubr.bf16.gmra.mrb[0].mxu0 %v481
      %v812 = vpop.f32.mrb[0].mxu0
      %v813 = vadd.f32 %v283, %v812
      %v814 = vpop.f32.mrb[0].mxu0
      %v815 = vpop.f32.mrb[0].mxu0
      %v816 = vadd.f32 %v283, %v815
      %v817 = vpop.f32.mrb[0].mxu0
      %818 = vmatprep.mubr.bf16.mxu0 %v485
      %819 = vmatmul.mubr.bf16.gmra.mrb[0].mxu0 %v484
      %v820 = vpop.f32.mrb[0].mxu0
      %v821 = vadd.f32 %v283, %v820
      %v822 = vpop.f32.mrb[0].mxu0
      %v823 = vpop.f32.mrb[0].mxu0
      %v824 = vadd.f32 %v283, %v823
      %v825 = vpop.f32.mrb[0].mxu0
      %826 = vmatprep.mubr.bf16.mxu0 %v488
      %827 = vmatmul.mubr.bf16.gmra.mrb[0].mxu0 %v487
      %v828 = vpop.f32.mrb[0].mxu0
      %v829 = vadd.f32 %v283, %v828
      %v830 = vpop.f32.mrb[0].mxu0
      %v831 = vpop.f32.mrb[0].mxu0
      %v832 = vadd.f32 %v283, %v831
      %v833 = vpop.f32.mrb[0].mxu0
      %834 = vmatprep.mubr.bf16.mxu0 %v491
      %835 = vmatmul.mubr.bf16.gmra.mrb[0].mxu0 %v490
      %v836 = vpop.f32.mrb[0].mxu0
      %v837 = vadd.f32 %v283, %v836
      %v838 = vpop.f32.mrb[0].mxu0
      %v839 = vpop.f32.mrb[0].mxu0
      %v840 = vadd.f32 %v283, %v839
      %v841 = vpop.f32.mrb[0].mxu0
      %842 = vdwg.mxu0
      %843 = vmatprep.subr.bf16.mxu0 0
      %844 = vmatpush1.bf16.msra.mxu0 %v613
      %845 = vmatprep.subr.bf16.mxu0 0
      %846 = vmatpush1.bf16.msra.mxu0 %v614
      %847 = vmatprep.subr.bf16.mxu0 0
      %848 = vmatpush1.bf16.msra.mxu0 0
      %849 = vmatprep.subr.bf16.mxu0 0
      %850 = vmatpush1.bf16.msra.mxu0 0
      %851 = vmatprep.subr.bf16.mxu0 0
      %852 = vmatpush1.bf16.msra.mxu0 0
      %853 = vmatprep.subr.bf16.mxu0 0
      %854 = vmatpush1.bf16.msra.mxu0 0
      %855 = vmatprep.subr.bf16.mxu0 0
      %856 = vmatpush1.bf16.msra.mxu0 0
      %857 = vmatprep.subr.bf16.mxu0 0
      %858 = vmatpush1.bf16.msra.mxu0 0
      %859 = vmatprep.subr.bf16.mxu0 0
      %860 = vmatpush1.bf16.msra.mxu0 0
      %861 = vmatprep.subr.bf16.mxu0 0
      %862 = vmatpush1.bf16.msra.mxu0 0
      %863 = vmatprep.subr.bf16.mxu0 0
      %864 = vmatpush1.bf16.msra.mxu0 0
      %865 = vmatprep.subr.bf16.mxu0 0
      %866 = vmatpush1.bf16.msra.mxu0 0
      %867 = vmatprep.subr.bf16.mxu0 0
      %868 = vmatpush1.bf16.msra.mxu0 0
      %869 = vmatprep.subr.bf16.mxu0 0
      %870 = vmatpush1.bf16.msra.mxu0 0
      %871 = vmatprep.subr.bf16.mxu0 0
      %872 = vmatpush1.bf16.msra.mxu0 0
      %873 = vmatprep.subr.bf16.mxu0 0
      %874 = vmatpush1.bf16.msra.mxu0 0
      %875 = vmatprep.mubr.bf16.mxu0 0
      %876 = vmatmul.mubr.bf16.gmra.mrb[0].mxu0 %v635
      %v877 = vpop.f32.mrb[0].mxu0
      %v878 = vadd.f32 %v717, %v877
      %v879 = vpop.f32.mrb[0].mxu0
      %v880 = vpop.f32.mrb[0].mxu0
      %v881 = vadd.f32 %v720, %v880
      %v882 = vpop.f32.mrb[0].mxu0
      %883 = vmatprep.mubr.bf16.mxu0 0
      %884 = vmatmul.mubr.bf16.gmra.mrb[0].mxu0 %v638
      %v885 = vpop.f32.mrb[0].mxu0
      %v886 = vadd.f32 %v725, %v885
      %v887 = vpop.f32.mrb[0].mxu0
      %v888 = vpop.f32.mrb[0].mxu0
      %v889 = vadd.f32 %v728, %v888
      %v890 = vpop.f32.mrb[0].mxu0
      %891 = vmatprep.mubr.bf16.mxu0 0
      %892 = vmatmul.mubr.bf16.gmra.mrb[0].mxu0 %v641
      %v893 = vpop.f32.mrb[0].mxu0
      %v894 = vadd.f32 %v733, %v893
      %v895 = vpop.f32.mrb[0].mxu0
      %v896 = vpop.f32.mrb[0].mxu0
      %v897 = vadd.f32 %v736, %v896
      %v898 = vpop.f32.mrb[0].mxu0
      %899 = vmatprep.mubr.bf16.mxu0 0
      %900 = vmatmul.mubr.bf16.gmra.mrb[0].mxu0 %v644
      %v901 = vpop.f32.mrb[0].mxu0
      %v902 = vadd.f32 %v741, %v901
      %v903 = vpop.f32.mrb[0].mxu0
      %v904 = vpop.f32.mrb[0].mxu0
      %v905 = vadd.f32 %v744, %v904
      %v906 = vpop.f32.mrb[0].mxu0
      %907 = vmatprep.mubr.bf16.mxu0 0
      %908 = vmatmul.mubr.bf16.gmra.mrb[0].mxu0 %v647
      %v909 = vpop.f32.mrb[0].mxu0
      %v910 = vadd.f32 %v749, %v909
      %v911 = vpop.f32.mrb[0].mxu0
      %v912 = vpop.f32.mrb[0].mxu0
      %v913 = vadd.f32 %v752, %v912
      %v914 = vpop.f32.mrb[0].mxu0
      %915 = vmatprep.mubr.bf16.mxu0 0
      %916 = vmatmul.mubr.bf16.gmra.mrb[0].mxu0 %v650
      %v917 = vpop.f32.mrb[0].mxu0
      %v918 = vadd.f32 %v757, %v917
      %v919 = vpop.f32.mrb[0].mxu0
      %v920 = vpop.f32.mrb[0].mxu0
      %v921 = vadd.f32 %v760, %v920
      %v922 = vpop.f32.mrb[0].mxu0
      %923 = vmatprep.mubr.bf16.mxu0 0
      %924 = vmatmul.mubr.bf16.gmra.mrb[0].mxu0 %v653
      %v925 = vpop.f32.mrb[0].mxu0
      %v926 = vadd.f32 %v765, %v925
      %v927 = vpop.f32.mrb[0].mxu0
      %v928 = vpop.f32.mrb[0].mxu0
      %v929 = vadd.f32 %v768, %v928
      %v930 = vpop.f32.mrb[0].mxu0
      %931 = vmatprep.mubr.bf16.mxu0 0
      %932 = vmatmul.mubr.bf16.gmra.mrb[0].mxu0 %v656
      %v933 = vpop.f32.mrb[0].mxu0
      %v934 = vadd.f32 %v773, %v933
      %v935 = vpop.f32.mrb[0].mxu0
      %v936 = vpop.f32.mrb[0].mxu0
      %v937 = vadd.f32 %v776, %v936
      %v938 = vpop.f32.mrb[0].mxu0
      %939 = vmatprep.mubr.bf16.mxu0 0
      %940 = vmatmul.mubr.bf16.gmra.mrb[0].mxu0 %v659
      %v941 = vpop.f32.mrb[0].mxu0
      %v942 = vadd.f32 %v781, %v941
      %v943 = vpop.f32.mrb[0].mxu0
      %v944 = vpop.f32.mrb[0].mxu0
      %v945 = vadd.f32 %v784, %v944
      %v946 = vpop.f32.mrb[0].mxu0
      %947 = vmatprep.mubr.bf16.mxu0 0
      %948 = vmatmul.mubr.bf16.gmra.mrb[0].mxu0 %v662
      %v949 = vpop.f32.mrb[0].mxu0
      %v950 = vadd.f32 %v789, %v949
      %v951 = vpop.f32.mrb[0].mxu0
      %v952 = vpop.f32.mrb[0].mxu0
      %v953 = vadd.f32 %v792, %v952
      %v954 = vpop.f32.mrb[0].mxu0
      %955 = vmatprep.mubr.bf16.mxu0 0
      %956 = vmatmul.mubr.bf16.gmra.mrb[0].mxu0 %v665
      %v957 = vpop.f32.mrb[0].mxu0
      %v958 = vadd.f32 %v797, %v957
      %v959 = vpop.f32.mrb[0].mxu0
      %v960 = vpop.f32.mrb[0].mxu0
      %v961 = vadd.f32 %v800, %v960
      %v962 = vpop.f32.mrb[0].mxu0
      %963 = vmatprep.mubr.bf16.mxu0 0
      %964 = vmatmul.mubr.bf16.gmra.mrb[0].mxu0 %v668
      %v965 = vpop.f32.mrb[0].mxu0
      %v966 = vadd.f32 %v805, %v965
      %v967 = vpop.f32.mrb[0].mxu0
      %v968 = vpop.f32.mrb[0].mxu0
      %v969 = vadd.f32 %v808, %v968
      %v970 = vpop.f32.mrb[0].mxu0
      %971 = vmatprep.mubr.bf16.mxu0 0
      %972 = vmatmul.mubr.bf16.gmra.mrb[0].mxu0 %v671
      %v973 = vpop.f32.mrb[0].mxu0
      %v974 = vadd.f32 %v813, %v973
      %v975 = vpop.f32.mrb[0].mxu0
      %v976 = vpop.f32.mrb[0].mxu0
      %v977 = vadd.f32 %v816, %v976
      %v978 = vpop.f32.mrb[0].mxu0
      %979 = vmatprep.mubr.bf16.mxu0 0
      %980 = vmatmul.mubr.bf16.gmra.mrb[0].mxu0 %v674
      %v981 = vpop.f32.mrb[0].mxu0
      %v982 = vadd.f32 %v821, %v981
      %v983 = vpop.f32.mrb[0].mxu0
      %v984 = vpop.f32.mrb[0].mxu0
      %v985 = vadd.f32 %v824, %v984
      %v986 = vpop.f32.mrb[0].mxu0
      %987 = vmatprep.mubr.bf16.mxu0 0
      %988 = vmatmul.mubr.bf16.gmra.mrb[0].mxu0 %v677
      %v989 = vpop.f32.mrb[0].mxu0
      %v990 = vadd.f32 %v829, %v989
      %v991 = vpop.f32.mrb[0].mxu0
      %v992 = vpop.f32.mrb[0].mxu0
      %v993 = vadd.f32 %v832, %v992
      %v994 = vpop.f32.mrb[0].mxu0
      %995 = vmatprep.mubr.bf16.mxu0 0
      %996 = vmatmul.mubr.bf16.gmra.mrb[0].mxu0 %v680
      %v997 = vpop.f32.mrb[0].mxu0
      %v998 = vadd.f32 %v837, %v997
      %v999 = vpop.f32.mrb[0].mxu0
      %v1000 = vpop.f32.mrb[0].mxu0
      %v1001 = vadd.f32 %v840, %v1000
      %v1002 = vpop.f32.mrb[0].mxu0
      %1003 = vdwg.mxu0
      %v1004 = vmax.f32 %v878, 0.0
      %v1005 = vmax.f32 %v881, 0.0
      %v1006 = vmax.f32 %v886, 0.0
      %v1007 = vmax.f32 %v889, 0.0
      %v1008 = vmax.f32 %v894, 0.0
      %v1009 = vmax.f32 %v897, 0.0
      %v1010 = vmax.f32 %v902, 0.0
      %v1011 = vmax.f32 %v905, 0.0
      %v1012 = vmax.f32 %v910, 0.0
      %v1013 = vmax.f32 %v913, 0.0
      %v1014 = vmax.f32 %v918, 0.0
      %v1015 = vmax.f32 %v921, 0.0
      %v1016 = vmax.f32 %v926, 0.0
      %v1017 = vmax.f32 %v929, 0.0
      %v1018 = vmax.f32 %v934, 0.0
      %v1019 = vmax.f32 %v937, 0.0
      %v1020 = vmax.f32 %v942, 0.0
      %v1021 = vmax.f32 %v945, 0.0
      %v1022 = vmax.f32 %v950, 0.0
      %v1023 = vmax.f32 %v953, 0.0
      %v1024 = vmax.f32 %v958, 0.0
      %v1025 = vmax.f32 %v961, 0.0
      %v1026 = vmax.f32 %v966, 0.0
      %v1027 = vmax.f32 %v969, 0.0
      %v1028 = vmax.f32 %v974, 0.0
      %v1029 = vmax.f32 %v977, 0.0
      %v1030 = vmax.f32 %v982, 0.0
      %v1031 = vmax.f32 %v985, 0.0
      %v1032 = vmax.f32 %v990, 0.0
      %v1033 = vmax.f32 %v993, 0.0
      %v1034 = vmax.f32 %v998, 0.0
      %v1035 = vmax.f32 %v1001, 0.0
      %v1036 = vpack.c.bf16 %v1005, %v1004
      %v1037 = vpack.c.bf16 %v1007, %v1006
      %v1038 = vpack.c.bf16 %v1009, %v1008
      %v1039 = vpack.c.bf16 %v1011, %v1010
      %v1040 = vpack.c.bf16 %v1013, %v1012
      %v1041 = vpack.c.bf16 %v1015, %v1014
      %v1042 = vpack.c.bf16 %v1017, %v1016
      %v1043 = vpack.c.bf16 %v1019, %v1018
      %v1044 = vpack.c.bf16 %v1021, %v1020
      %v1045 = vpack.c.bf16 %v1023, %v1022
      %v1046 = vpack.c.bf16 %v1025, %v1024
      %v1047 = vpack.c.bf16 %v1027, %v1026
      %v1048 = vpack.c.bf16 %v1029, %v1028
      %v1049 = vpack.c.bf16 %v1031, %v1030
      %v1050 = vpack.c.bf16 %v1033, %v1032
      %v1051 = vpack.c.bf16 %v1035, %v1034
      %v1068 = vunpack.c.l.b16 %v1036
      %v1069 = vunpack.c.h.b16 %v1036
      %v1070 = vunpack.c.l.b16 %v1037
      %v1071 = vunpack.c.h.b16 %v1037
      %v1072 = vunpack.c.l.b16 %v1038
      %v1073 = vunpack.c.h.b16 %v1038
      %v1074 = vunpack.c.l.b16 %v1039
      %v1075 = vunpack.c.h.b16 %v1039
      %v1076 = vunpack.c.l.b16 %v1040
      %v1077 = vunpack.c.h.b16 %v1040
      %v1078 = vunpack.c.l.b16 %v1041
      %v1079 = vunpack.c.h.b16 %v1041
      %v1080 = vunpack.c.l.b16 %v1042
      %v1081 = vunpack.c.h.b16 %v1042
      %v1082 = vunpack.c.l.b16 %v1043
      %v1083 = vunpack.c.h.b16 %v1043
      %v1084 = vunpack.c.l.b16 %v1044
      %v1085 = vunpack.c.h.b16 %v1044
      %v1086 = vunpack.c.l.b16 %v1045
      %v1087 = vunpack.c.h.b16 %v1045
      %v1088 = vunpack.c.l.b16 %v1046
      %v1089 = vunpack.c.h.b16 %v1046
      %v1090 = vunpack.c.l.b16 %v1047
      %v1091 = vunpack.c.h.b16 %v1047
      %v1092 = vunpack.c.l.b16 %v1048
      %v1093 = vunpack.c.h.b16 %v1048
      %v1094 = vunpack.c.l.b16 %v1049
      %v1095 = vunpack.c.h.b16 %v1049
      %v1096 = vunpack.c.l.b16 %v1050
      %v1097 = vunpack.c.h.b16 %v1050
      %v1098 = vunpack.c.l.b16 %v1051
      %v1099 = vunpack.c.h.b16 %v1051
      %v1100 = vpack.c.b16 %v1068, %v1068
      %v1101 = vpack.c.b16 %v1069, %v1069
      %v1102 = vpack.c.b16 %v1070, %v1070
      %v1103 = vpack.c.b16 %v1071, %v1071
      %v1104 = vpack.c.b16 %v1072, %v1072
      %v1105 = vpack.c.b16 %v1073, %v1073
      %v1106 = vpack.c.b16 %v1074, %v1074
      %v1107 = vpack.c.b16 %v1075, %v1075
      %v1108 = vpack.c.b16 %v1076, %v1076
      %v1109 = vpack.c.b16 %v1077, %v1077
      %v1110 = vpack.c.b16 %v1078, %v1078
      %v1111 = vpack.c.b16 %v1079, %v1079
      %v1112 = vpack.c.b16 %v1080, %v1080
      %v1113 = vpack.c.b16 %v1081, %v1081
      %v1114 = vpack.c.b16 %v1082, %v1082
      %v1115 = vpack.c.b16 %v1083, %v1083
      %v1116 = vpack.c.b16 %v1084, %v1084
      %v1117 = vpack.c.b16 %v1085, %v1085
      %v1118 = vpack.c.b16 %v1086, %v1086
      %v1119 = vpack.c.b16 %v1087, %v1087
      %v1120 = vpack.c.b16 %v1088, %v1088
      %v1121 = vpack.c.b16 %v1089, %v1089
      %v1122 = vpack.c.b16 %v1090, %v1090
      %v1123 = vpack.c.b16 %v1091, %v1091
      %v1124 = vpack.c.b16 %v1092, %v1092
      %v1125 = vpack.c.b16 %v1093, %v1093
      %v1126 = vpack.c.b16 %v1094, %v1094
      %v1127 = vpack.c.b16 %v1095, %v1095
      %v1128 = vpack.c.b16 %v1096, %v1096
      %v1129 = vpack.c.b16 %v1097, %v1097
      %v1130 = vpack.c.b16 %v1098, %v1098
      %v1131 = vpack.c.b16 %v1099, %v1099
      %vm1164 = vcmask 257024
      %1165 = vst.msk [vmem:[%s175] sm:$0xf] %vm1164, %v1100
      %1166 = vst.msk [vmem:[%s175 + $0x4] sm:$0xf] %vm1164, %v1101
      %1167 = vst.msk [vmem:[%s175 + $0x8] sm:$0xf] %vm1164, %v1102
      %1168 = vst.msk [vmem:[%s175 + $0xc] sm:$0xf] %vm1164, %v1103
      %1169 = vst.msk [vmem:[%s175 + $0x10] sm:$0xf] %vm1164, %v1104
      %1170 = vst.msk [vmem:[%s175 + $0x14] sm:$0xf] %vm1164, %v1105
      %1171 = vst.msk [vmem:[%s175 + $0x18] sm:$0xf] %vm1164, %v1106
      %1172 = vst.msk [vmem:[%s175 + $0x1c] sm:$0xf] %vm1164, %v1107
      %1173 = vst.msk [vmem:[%s175 + $0x20] sm:$0xf] %vm1164, %v1108
      %1174 = vst.msk [vmem:[%s175 + $0x24] sm:$0xf] %vm1164, %v1109
      %1175 = vst.msk [vmem:[%s175 + $0x28] sm:$0xf] %vm1164, %v1110
      %1176 = vst.msk [vmem:[%s175 + $0x2c] sm:$0xf] %vm1164, %v1111
      %1177 = vst.msk [vmem:[%s175 + $0x30] sm:$0xf] %vm1164, %v1112
      %1178 = vst.msk [vmem:[%s175 + $0x34] sm:$0xf] %vm1164, %v1113
      %1179 = vst.msk [vmem:[%s175 + $0x38] sm:$0xf] %vm1164, %v1114
      %1180 = vst.msk [vmem:[%s175 + $0x3c] sm:$0xf] %vm1164, %v1115
      %1181 = vst.msk [vmem:[%s175 + $0x40] sm:$0xf] %vm1164, %v1116
      %1182 = vst.msk [vmem:[%s175 + $0x44] sm:$0xf] %vm1164, %v1117
      %1183 = vst.msk [vmem:[%s175 + $0x48] sm:$0xf] %vm1164, %v1118
      %1184 = vst.msk [vmem:[%s175 + $0x4c] sm:$0xf] %vm1164, %v1119
      %1185 = vst.msk [vmem:[%s175 + $0x50] sm:$0xf] %vm1164, %v1120
      %1186 = vst.msk [vmem:[%s175 + $0x54] sm:$0xf] %vm1164, %v1121
      %1187 = vst.msk [vmem:[%s175 + $0x58] sm:$0xf] %vm1164, %v1122
      %1188 = vst.msk [vmem:[%s175 + $0x5c] sm:$0xf] %vm1164, %v1123
      %1189 = vst.msk [vmem:[%s175 + $0x60] sm:$0xf] %vm1164, %v1124
      %1190 = vst.msk [vmem:[%s175 + $0x64] sm:$0xf] %vm1164, %v1125
      %1191 = vst.msk [vmem:[%s175 + $0x68] sm:$0xf] %vm1164, %v1126
      %1192 = vst.msk [vmem:[%s175 + $0x6c] sm:$0xf] %vm1164, %v1127
      %1193 = vst.msk [vmem:[%s175 + $0x70] sm:$0xf] %vm1164, %v1128
      %1194 = vst.msk [vmem:[%s175 + $0x74] sm:$0xf] %vm1164, %v1129
      %1195 = vst.msk [vmem:[%s175 + $0x78] sm:$0xf] %vm1164, %v1130
      %1196 = vst.msk [vmem:[%s175 + $0x7c] sm:$0xf] %vm1164, %v1131
      %s1197 = smul.u32 32, %s14
      %p1198 = scmp.lt.s32.totalorder %s1197, 127
      %s1199 = scalar_select %p1198, %s1197, 127
      %s1200 = smul.addr %s1199, 4
      %s1201 = scalar_lea.vmem %s3, %s1200
      // Predicated region
      $region33: #{_lambda_.6} parent=31 // pred_check
        %p1202 = pneg %p100
      $region34: #{_lambda_.6} parent=31 // pred_check_branch
        %1204 = sbr.rel (%p1202) target = $region36
      $region35: #{_lambda_.6} parent=31 // pred_region
        %s1205 = smul.u32 32, %s14
      $region36: #{_lambda_.6} parent=31 // pred_fallthru
        _
    $region32: #{_lambda_.6} parent=5 // pred_fallthru
      _
    %p1206 = scmp.le.s32.totalorder 2, %s9
    // Predicated region
    $region37: #{_lambda_.6} parent=5 // pred_check
      %p1207 = pneg %p1206
    $region38: #{_lambda_.6} parent=5 // pred_check_branch
      %1209 = sbr.rel (%p1207) target = $region40
    $region39: #{_lambda_.6} parent=5 // pred_region
      %s1210 = ssub.s32 %s9, 2
      // Predicated region
      $region41: #{_lambda_.6} parent=39 // pred_check
        %p1211 = pneg %p106
      $region42: #{_lambda_.6} parent=39 // pred_check_branch
        %1213 = sbr.rel (%p1211) target = $region44
      $region43: #{_lambda_.6} parent=39 // pred_region
        %s1214 = smul.u32 32, %s15
        %p1215 = scmp.lt.s32.totalorder %s1214, 127
        %s1216 = scalar_select %p1215, %s1214, 127
        %s1217 = smul.addr %s1216, 4
        %s1218 = scalar_lea.vmem %s3, %s1217
      $region44: #{_lambda_.6} parent=39 // pred_fallthru
        _
    $region40: #{_lambda_.6} parent=5 // pred_fallthru
      _
  $region6: #{_lambda_.6} parent=0 // loop_footer
    %s13 = sadd.s32 1, %s9
  $region7: #{_lambda_.6} parent=0 // loop_footer_branch
    %8 = sbr.rel target = $region3
  $region8: #{_lambda_.6} parent=0 // loop_exit
    _

// kernel: _lambda_.7
$region0: #{_lambda_.7}
  #allocation0 [shape = 'u32[]', space=smem, size = 0x4, offset = 0x4, fixed_abs, tag = 'smem constant byte address 0x4 - core index']
  #allocation1 [shape = 'u32[144,128]{1,0:T(1,128)}', space=vmem, size = 0x12000, scoped, tag = 'internal scratch']
  %s0 = inlined_call_operand.vmem [shape: bf16[176,288], index: 0, kind: input, shape index: {}]
  %s1 = inlined_call_operand.vmem [shape: bf16[288,32], index: 1, kind: input, shape index: {}]
  %s2 = inlined_call_operand.vmem [shape: f32[1,32], index: 2, kind: input, shape index: {}]
  %s3 = inlined_call_operand.vmem [shape: bf16[176,32], index: 3, kind: output, shape index: {}]
  %s4 = sld [smem:[#allocation0]]
  $region22: #{_lambda_.7} parent=0
    _
  %s6 = ssub.s32 1, %s4
  %s7 = scalar_select 0, %s6, %s4
  // Predicated region
  $region2: #{_lambda_.7} parent=0 // pred_check
    _
  $region3: #{_lambda_.7} parent=0 // pred_check_branch
    %9 = sbr.rel (0) target = $region5
  $region4: #{_lambda_.7} parent=0 // pred_region
    _
  $region5: #{_lambda_.7} parent=0 // pred_fallthru
    _
  // Predicated region
  $region6: #{_lambda_.7} parent=0 // pred_check
    _
  $region7: #{_lambda_.7} parent=0 // pred_check_branch
    %11 = sbr.rel (0) target = $region9
  $region8: #{_lambda_.7} parent=0 // pred_region
    _
  $region9: #{_lambda_.7} parent=0 // pred_fallthru
    _
  // Predicated region
  $region10: #{_lambda_.7} parent=0 // pred_check
    _
  $region11: #{_lambda_.7} parent=0 // pred_check_branch
    %13 = sbr.rel (0) target = $region13
  $region12: #{_lambda_.7} parent=0 // pred_region
    _
  $region13: #{_lambda_.7} parent=0 // pred_fallthru
    _
  %v15 = vld [vmem:[%s0] sm:$0xff]
  %v16 = vld [vmem:[%s0 + $0x8] sm:$0xf]
  %v17 = vld [vmem:[%s0 + $0xc] sm:$0xff]
  %v18 = vld [vmem:[%s0 + $0x14] sm:$0xf]
  %v19 = vld [vmem:[%s0 + $0x18] sm:$0xff]
  %v20 = vld [vmem:[%s0 + $0x20] sm:$0xf]
  %v21 = vld [vmem:[%s0 + $0x24] sm:$0xff]
  %v22 = vld [vmem:[%s0 + $0x2c] sm:$0xf]
  %v23 = vld [vmem:[%s0 + $0x30] sm:$0xff]
  %v24 = vld [vmem:[%s0 + $0x38] sm:$0xf]
  %v25 = vld [vmem:[%s0 + $0x3c] sm:$0xff]
  %v26 = vld [vmem:[%s0 + $0x44] sm:$0xf]
  %v27 = vld [vmem:[%s0 + $0x48] sm:$0xff]
  %v28 = vld [vmem:[%s0 + $0x50] sm:$0xf]
  %v29 = vld [vmem:[%s0 + $0x54] sm:$0xff]
  %v30 = vld [vmem:[%s0 + $0x5c] sm:$0xf]
  %v31 = vld [vmem:[%s0 + $0x60] sm:$0xff]
  %v32 = vld [vmem:[%s0 + $0x68] sm:$0xf]
  %v33 = vld [vmem:[%s0 + $0x6c] sm:$0xff]
  %v34 = vld [vmem:[%s0 + $0x74] sm:$0xf]
  %v35 = vld [vmem:[%s0 + $0x78] sm:$0xff]
  %v36 = vld [vmem:[%s0 + $0x80] sm:$0xf]
  %v37 = vld [vmem:[%s0 + $0x84] sm:$0xff]
  %v38 = vld [vmem:[%s0 + $0x8c] sm:$0xf]
  %v39 = vld [vmem:[%s0 + $0x90] sm:$0xff]
  %v40 = vld [vmem:[%s0 + $0x98] sm:$0xf]
  %v41 = vld [vmem:[%s0 + $0x9c] sm:$0xff]
  %v42 = vld [vmem:[%s0 + $0xa4] sm:$0xf]
  %v43 = vld [vmem:[%s0 + $0xa8] sm:$0xff]
  %v44 = vld [vmem:[%s0 + $0xb0] sm:$0xf]
  %v45 = vld [vmem:[%s0 + $0xb4] sm:$0xff]
  %v46 = vld [vmem:[%s0 + $0xbc] sm:$0xf]
  %v47 = vld [vmem:[%s0 + $0xc0] sm:$0xff]
  %v48 = vld [vmem:[%s0 + $0xc8] sm:$0xf]
  %v49 = vld [vmem:[%s0 + $0xcc] sm:$0xff]
  %v50 = vld [vmem:[%s0 + $0xd4] sm:$0xf]
  %v51 = vld [vmem:[%s0 + $0xd8] sm:$0xff]
  %v52 = vld [vmem:[%s0 + $0xe0] sm:$0xf]
  %v53 = vld [vmem:[%s0 + $0xe4] sm:$0xff]
  %v54 = vld [vmem:[%s0 + $0xec] sm:$0xf]
  %v55 = vld [vmem:[%s0 + $0xf0] sm:$0xff]
  %v56 = vld [vmem:[%s0 + $0xf8] sm:$0xf]
  %v57 = vld [vmem:[%s0 + $0xfc] sm:$0xff]
  %v58 = vld [vmem:[%s0 + $0x104] sm:$0xf]
  %v59 = vld [vmem:[%s1] sm:$0xf]
  %v60 = vld [vmem:[%s1 + $0x4] sm:$0xf]
  %v61 = vld [vmem:[%s1 + $0x8] sm:$0xf]
  %v62 = vld [vmem:[%s1 + $0xc] sm:$0xf]
  %v63 = vld [vmem:[%s1 + $0x10] sm:$0xf]
  %v64 = vld [vmem:[%s1 + $0x14] sm:$0xf]
  %v65 = vld [vmem:[%s1 + $0x18] sm:$0xf]
  %v66 = vld [vmem:[%s1 + $0x1c] sm:$0xf]
  %v67 = vld [vmem:[%s1 + $0x20] sm:$0xf]
  %v68 = vld [vmem:[%s1 + $0x24] sm:$0xf]
  %v69 = vld [vmem:[%s1 + $0x28] sm:$0xf]
  %v70 = vld [vmem:[%s1 + $0x2c] sm:$0xf]
  %v71 = vld [vmem:[%s1 + $0x30] sm:$0xf]
  %v72 = vld [vmem:[%s1 + $0x34] sm:$0xf]
  %v73 = vld [vmem:[%s1 + $0x38] sm:$0xf]
  %v74 = vld [vmem:[%s1 + $0x3c] sm:$0xf]
  %v75 = vld [vmem:[%s1 + $0x40] sm:$0xf]
  %v76 = vld [vmem:[%s1 + $0x44] sm:$0xf]
  %v77 = vld [vmem:[%s1 + $0x48] sm:$0xf]
  %v78 = vld [vmem:[%s1 + $0x4c] sm:$0xf]
  %v79 = vld [vmem:[%s1 + $0x50] sm:$0xf]
  %v80 = vld [vmem:[%s1 + $0x54] sm:$0xf]
  %v81 = vld [vmem:[%s1 + $0x58] sm:$0xf]
  %v82 = vld [vmem:[%s1 + $0x5c] sm:$0xf]
  %v83 = vld [vmem:[%s1 + $0x60] sm:$0xf]
  %v84 = vld [vmem:[%s1 + $0x64] sm:$0xf]
  %v85 = vld [vmem:[%s1 + $0x68] sm:$0xf]
  %v86 = vld [vmem:[%s1 + $0x6c] sm:$0xf]
  %v87 = vld [vmem:[%s1 + $0x70] sm:$0xf]
  %v88 = vld [vmem:[%s1 + $0x74] sm:$0xf]
  %v89 = vld [vmem:[%s1 + $0x78] sm:$0xf]
  %v90 = vld [vmem:[%s1 + $0x7c] sm:$0xf]
  %v91 = vld [vmem:[%s1 + $0x80] sm:$0xf]
  %v92 = vld [vmem:[%s1 + $0x84] sm:$0xf]
  %v93 = vld [vmem:[%s1 + $0x88] sm:$0xf]
  %v94 = vld [vmem:[%s1 + $0x8c] sm:$0xf]
  %v95 = vld [vmem:[%s2] sm:$0x1]
  %v97 = vlaneseq
  %v98 = vshrl.u32 %v97, 7
  %v99 = vsub.s32 0, %v98
  %v100 = vrot.slane %v95, %v99
  %v146 = vunpack.c.l.b16 %v15
  %v147 = vunpack.c.h.b16 %v15
  %v148 = vunpack.c.l.b16 %v16
  %v149 = vunpack.c.l.b16 %v17
  %v150 = vunpack.c.h.b16 %v17
  %v151 = vunpack.c.l.b16 %v18
  %v152 = vunpack.c.l.b16 %v19
  %v153 = vunpack.c.h.b16 %v19
  %v154 = vunpack.c.l.b16 %v20
  %v155 = vunpack.c.l.b16 %v21
  %v156 = vunpack.c.h.b16 %v21
  %v157 = vunpack.c.l.b16 %v22
  %v158 = vunpack.c.l.b16 %v23
  %v159 = vunpack.c.h.b16 %v23
  %v160 = vunpack.c.l.b16 %v24
  %v161 = vunpack.c.l.b16 %v25
  %v162 = vunpack.c.h.b16 %v25
  %v163 = vunpack.c.l.b16 %v26
  %v164 = vunpack.c.l.b16 %v27
  %v165 = vunpack.c.h.b16 %v27
  %v166 = vunpack.c.l.b16 %v28
  %v167 = vunpack.c.l.b16 %v29
  %v168 = vunpack.c.h.b16 %v29
  %v169 = vunpack.c.l.b16 %v30
  %v170 = vunpack.c.l.b16 %v31
  %v171 = vunpack.c.h.b16 %v31
  %v172 = vunpack.c.l.b16 %v32
  %v173 = vunpack.c.l.b16 %v33
  %v174 = vunpack.c.h.b16 %v33
  %v175 = vunpack.c.l.b16 %v34
  %v176 = vunpack.c.l.b16 %v35
  %v177 = vunpack.c.h.b16 %v35
  %v178 = vunpack.c.l.b16 %v36
  %v179 = vunpack.c.l.b16 %v37
  %v180 = vunpack.c.h.b16 %v37
  %v181 = vunpack.c.l.b16 %v38
  %v182 = vunpack.c.l.b16 %v39
  %v183 = vunpack.c.h.b16 %v39
  %v184 = vunpack.c.l.b16 %v40
  %v185 = vunpack.c.l.b16 %v41
  %v186 = vunpack.c.h.b16 %v41
  %v187 = vunpack.c.l.b16 %v42
  %v188 = vunpack.c.l.b16 %v43
  %v189 = vunpack.c.h.b16 %v43
  %v190 = vunpack.c.l.b16 %v44
  %v191 = vunpack.c.l.b16 %v45
  %v192 = vunpack.c.h.b16 %v45
  %v193 = vunpack.c.l.b16 %v46
  %v194 = vunpack.c.l.b16 %v47
  %v195 = vunpack.c.h.b16 %v47
  %v196 = vunpack.c.l.b16 %v48
  %v197 = vunpack.c.l.b16 %v49
  %v198 = vunpack.c.h.b16 %v49
  %v199 = vunpack.c.l.b16 %v50
  %v200 = vunpack.c.l.b16 %v51
  %v201 = vunpack.c.h.b16 %v51
  %v202 = vunpack.c.l.b16 %v52
  %v203 = vunpack.c.l.b16 %v53
  %v204 = vunpack.c.h.b16 %v53
  %v205 = vunpack.c.l.b16 %v54
  %v206 = vunpack.c.l.b16 %v55
  %v207 = vunpack.c.h.b16 %v55
  %v208 = vunpack.c.l.b16 %v56
  %v209 = vunpack.c.l.b16 %v57
  %v210 = vunpack.c.h.b16 %v57
  %v211 = vunpack.c.l.b16 %v58
  %v212 = vpack.c.b16 %v149, %v146
  %v213 = vpack.c.b16 %v150, %v147
  %v214 = vpack.c.b16 %v151, %v148
  %v215 = vpack.c.b16 %v155, %v152
  %v216 = vpack.c.b16 %v156, %v153
  %v217 = vpack.c.b16 %v157, %v154
  %v218 = vpack.c.b16 %v161, %v158
  %v219 = vpack.c.b16 %v162, %v159
  %v220 = vpack.c.b16 %v163, %v160
  %v221 = vpack.c.b16 %v167, %v164
  %v222 = vpack.c.b16 %v168, %v165
  %v223 = vpack.c.b16 %v169, %v166
  %v224 = vpack.c.b16 %v173, %v170
  %v225 = vpack.c.b16 %v174, %v171
  %v226 = vpack.c.b16 %v175, %v172
  %v227 = vpack.c.b16 %v179, %v176
  %v228 = vpack.c.b16 %v180, %v177
  %v229 = vpack.c.b16 %v181, %v178
  %v230 = vpack.c.b16 %v185, %v182
  %v231 = vpack.c.b16 %v186, %v183
  %v232 = vpack.c.b16 %v187, %v184
  %v233 = vpack.c.b16 %v191, %v188
  %v234 = vpack.c.b16 %v192, %v189
  %v235 = vpack.c.b16 %v193, %v190
  %v236 = vpack.c.b16 %v197, %v194
  %v237 = vpack.c.b16 %v198, %v195
  %v238 = vpack.c.b16 %v199, %v196
  %v239 = vpack.c.b16 %v203, %v200
  %v240 = vpack.c.b16 %v204, %v201
  %v241 = vpack.c.b16 %v205, %v202
  %v242 = vpack.c.b16 %v209, %v206
  %v243 = vpack.c.b16 %v210, %v207
  %v244 = vpack.c.b16 %v211, %v208
  %v303 = vunpack.c.l.b16 %v59
  %v304 = vunpack.c.l.b16 %v60
  %v305 = vunpack.c.l.b16 %v61
  %v306 = vunpack.c.l.b16 %v62
  %v307 = vunpack.c.l.b16 %v63
  %v308 = vunpack.c.l.b16 %v64
  %v309 = vunpack.c.l.b16 %v65
  %v310 = vunpack.c.l.b16 %v66
  %v311 = vunpack.c.l.b16 %v67
  %v312 = vunpack.c.l.b16 %v68
  %v313 = vunpack.c.l.b16 %v69
  %v314 = vunpack.c.l.b16 %v70
  %v315 = vunpack.c.l.b16 %v71
  %v316 = vunpack.c.l.b16 %v72
  %v317 = vunpack.c.l.b16 %v73
  %v318 = vunpack.c.l.b16 %v74
  %v319 = vunpack.c.l.b16 %v75
  %v320 = vunpack.c.l.b16 %v76
  %v321 = vunpack.c.l.b16 %v77
  %v322 = vunpack.c.l.b16 %v78
  %v323 = vunpack.c.l.b16 %v79
  %v324 = vunpack.c.l.b16 %v80
  %v325 = vunpack.c.l.b16 %v81
  %v326 = vunpack.c.l.b16 %v82
  %v327 = vunpack.c.l.b16 %v83
  %v328 = vunpack.c.l.b16 %v84
  %v329 = vunpack.c.l.b16 %v85
  %v330 = vunpack.c.l.b16 %v86
  %v331 = vunpack.c.l.b16 %v87
  %v332 = vunpack.c.l.b16 %v88
  %v333 = vunpack.c.l.b16 %v89
  %v334 = vunpack.c.l.b16 %v90
  %v335 = vunpack.c.l.b16 %v91
  %v336 = vunpack.c.l.b16 %v92
  %v337 = vunpack.c.l.b16 %v93
  %v338 = vunpack.c.l.b16 %v94
  %v339 = vpack.c.b16 %v304, %v303
  %v340 = vpack.c.b16 %v306, %v305
  %v341 = vpack.c.b16 %v308, %v307
  %v342 = vpack.c.b16 %v310, %v309
  %v343 = vpack.c.b16 %v312, %v311
  %v344 = vpack.c.b16 %v314, %v313
  %v345 = vpack.c.b16 %v316, %v315
  %v346 = vpack.c.b16 %v318, %v317
  %v347 = vpack.c.b16 %v320, %v319
  %v348 = vpack.c.b16 %v322, %v321
  %v349 = vpack.c.b16 %v324, %v323
  %v350 = vpack.c.b16 %v326, %v325
  %v351 = vpack.c.b16 %v328, %v327
  %v352 = vpack.c.b16 %v330, %v329
  %v353 = vpack.c.b16 %v332, %v331
  %v354 = vpack.c.b16 %v334, %v333
  %v355 = vpack.c.b16 %v336, %v335
  %v356 = vpack.c.b16 %v338, %v337
  %vm375 = vcmask 261120
  %v377 = vsel %vm375, %v214, 0
  %v380 = vsel %vm375, %v217, 0
  %v383 = vsel %vm375, %v220, 0
  %v386 = vsel %vm375, %v223, 0
  %v389 = vsel %vm375, %v226, 0
  %v392 = vsel %vm375, %v229, 0
  %v395 = vsel %vm375, %v232, 0
  %v398 = vsel %vm375, %v235, 0
  %v401 = vsel %vm375, %v238, 0
  %v404 = vsel %vm375, %v241, 0
  %v407 = vsel %vm375, %v244, 0
  %409 = vmatprep.subr.bf16.mxu0 0
  %410 = vmatpush1.bf16.msra.mxu0 %v339
  %411 = vmatprep.subr.bf16.mxu0 0
  %412 = vmatpush1.bf16.msra.mxu0 %v340
  %413 = vmatprep.subr.bf16.mxu0 0
  %414 = vmatpush1.bf16.msra.mxu0 %v341
  %415 = vmatprep.subr.bf16.mxu0 0
  %416 = vmatpush1.bf16.msra.mxu0 %v342
  %417 = vmatprep.subr.bf16.mxu0 0
  %418 = vmatpush1.bf16.msra.mxu0 %v343
  %419 = vmatprep.subr.bf16.mxu0 0
  %420 = vmatpush1.bf16.msra.mxu0 %v344
  %421 = vmatprep.subr.bf16.mxu0 0
  %422 = vmatpush1.bf16.msra.mxu0 %v345
  %423 = vmatprep.subr.bf16.mxu0 0
  %424 = vmatpush1.bf16.msra.mxu0 %v346
  %425 = vmatprep.subr.bf16.mxu0 0
  %426 = vmatpush1.bf16.msra.mxu0 %v347
  %427 = vmatprep.subr.bf16.mxu0 0
  %428 = vmatpush1.bf16.msra.mxu0 %v348
  %429 = vmatprep.subr.bf16.mxu0 0
  %430 = vmatpush1.bf16.msra.mxu0 %v349
  %431 = vmatprep.subr.bf16.mxu0 0
  %432 = vmatpush1.bf16.msra.mxu0 %v350
  %433 = vmatprep.subr.bf16.mxu0 0
  %434 = vmatpush1.bf16.msra.mxu0 %v351
  %435 = vmatprep.subr.bf16.mxu0 0
  %436 = vmatpush1.bf16.msra.mxu0 %v352
  %437 = vmatprep.subr.bf16.mxu0 0
  %438 = vmatpush1.bf16.msra.mxu0 %v353
  %439 = vmatprep.subr.bf16.mxu0 0
  %440 = vmatpush1.bf16.msra.mxu0 %v354
  %441 = vmatprep.mubr.bf16.mxu0 %v213
  %442 = vmatmul.mubr.bf16.gmra.mrb[0].mxu0 %v212
  %v443 = vpop.f32.mrb[0].mxu0
  %v444 = vadd.f32 %v100, %v443
  %v445 = vpop.f32.mrb[0].mxu0
  %v446 = vpop.f32.mrb[0].mxu0
  %v447 = vadd.f32 %v100, %v446
  %v448 = vpop.f32.mrb[0].mxu0
  %449 = vmatprep.mubr.bf16.mxu0 %v216
  %450 = vmatmul.mubr.bf16.gmra.mrb[0].mxu0 %v215
  %v451 = vpop.f32.mrb[0].mxu0
  %v452 = vadd.f32 %v100, %v451
  %v453 = vpop.f32.mrb[0].mxu0
  %v454 = vpop.f32.mrb[0].mxu0
  %v455 = vadd.f32 %v100, %v454
  %v456 = vpop.f32.mrb[0].mxu0
  %457 = vmatprep.mubr.bf16.mxu0 %v219
  %458 = vmatmul.mubr.bf16.gmra.mrb[0].mxu0 %v218
  %v459 = vpop.f32.mrb[0].mxu0
  %v460 = vadd.f32 %v100, %v459
  %v461 = vpop.f32.mrb[0].mxu0
  %v462 = vpop.f32.mrb[0].mxu0
  %v463 = vadd.f32 %v100, %v462
  %v464 = vpop.f32.mrb[0].mxu0
  %465 = vmatprep.mubr.bf16.mxu0 %v222
  %466 = vmatmul.mubr.bf16.gmra.mrb[0].mxu0 %v221
  %v467 = vpop.f32.mrb[0].mxu0
  %v468 = vadd.f32 %v100, %v467
  %v469 = vpop.f32.mrb[0].mxu0
  %v470 = vpop.f32.mrb[0].mxu0
  %v471 = vadd.f32 %v100, %v470
  %v472 = vpop.f32.mrb[0].mxu0
  %473 = vmatprep.mubr.bf16.mxu0 %v225
  %474 = vmatmul.mubr.bf16.gmra.mrb[0].mxu0 %v224
  %v475 = vpop.f32.mrb[0].mxu0
  %v476 = vadd.f32 %v100, %v475
  %v477 = vpop.f32.mrb[0].mxu0
  %v478 = vpop.f32.mrb[0].mxu0
  %v479 = vadd.f32 %v100, %v478
  %v480 = vpop.f32.mrb[0].mxu0
  %481 = vmatprep.mubr.bf16.mxu0 %v228
  %482 = vmatmul.mubr.bf16.gmra.mrb[0].mxu0 %v227
  %v483 = vpop.f32.mrb[0].mxu0
  %v484 = vadd.f32 %v100, %v483
  %v485 = vpop.f32.mrb[0].mxu0
  %v486 = vpop.f32.mrb[0].mxu0
  %v487 = vadd.f32 %v100, %v486
  %v488 = vpop.f32.mrb[0].mxu0
  %489 = vmatprep.mubr.bf16.mxu0 %v231
  %490 = vmatmul.mubr.bf16.gmra.mrb[0].mxu0 %v230
  %v491 = vpop.f32.mrb[0].mxu0
  %v492 = vadd.f32 %v100, %v491
  %v493 = vpop.f32.mrb[0].mxu0
  %v494 = vpop.f32.mrb[0].mxu0
  %v495 = vadd.f32 %v100, %v494
  %v496 = vpop.f32.mrb[0].mxu0
  %497 = vmatprep.mubr.bf16.mxu0 %v234
  %498 = vmatmul.mubr.bf16.gmra.mrb[0].mxu0 %v233
  %v499 = vpop.f32.mrb[0].mxu0
  %v500 = vadd.f32 %v100, %v499
  %v501 = vpop.f32.mrb[0].mxu0
  %v502 = vpop.f32.mrb[0].mxu0
  %v503 = vadd.f32 %v100, %v502
  %v504 = vpop.f32.mrb[0].mxu0
  %505 = vmatprep.mubr.bf16.mxu0 %v237
  %506 = vmatmul.mubr.bf16.gmra.mrb[0].mxu0 %v236
  %v507 = vpop.f32.mrb[0].mxu0
  %v508 = vadd.f32 %v100, %v507
  %v509 = vpop.f32.mrb[0].mxu0
  %v510 = vpop.f32.mrb[0].mxu0
  %v511 = vadd.f32 %v100, %v510
  %v512 = vpop.f32.mrb[0].mxu0
  %513 = vmatprep.mubr.bf16.mxu0 %v240
  %514 = vmatmul.mubr.bf16.gmra.mrb[0].mxu0 %v239
  %v515 = vpop.f32.mrb[0].mxu0
  %v516 = vadd.f32 %v100, %v515
  %v517 = vpop.f32.mrb[0].mxu0
  %v518 = vpop.f32.mrb[0].mxu0
  %v519 = vadd.f32 %v100, %v518
  %v520 = vpop.f32.mrb[0].mxu0
  %521 = vmatprep.mubr.bf16.mxu0 %v243
  %522 = vmatmul.mubr.bf16.gmra.mrb[0].mxu0 %v242
  %v523 = vpop.f32.mrb[0].mxu0
  %v524 = vadd.f32 %v100, %v523
  %v525 = vpop.f32.mrb[0].mxu0
  %v526 = vpop.f32.mrb[0].mxu0
  %v527 = vadd.f32 %v100, %v526
  %v528 = vpop.f32.mrb[0].mxu0
  %529 = vdwg.mxu0
  %530 = vmatprep.subr.bf16.mxu0 0
  %531 = vmatpush1.bf16.msra.mxu0 %v355
  %532 = vmatprep.subr.bf16.mxu0 0
  %533 = vmatpush1.bf16.msra.mxu0 %v356
  %534 = vmatprep.subr.bf16.mxu0 0
  %535 = vmatpush1.bf16.msra.mxu0 0
  %536 = vmatprep.subr.bf16.mxu0 0
  %537 = vmatpush1.bf16.msra.mxu0 0
  %538 = vmatprep.subr.bf16.mxu0 0
  %539 = vmatpush1.bf16.msra.mxu0 0
  %540 = vmatprep.subr.bf16.mxu0 0
  %541 = vmatpush1.bf16.msra.mxu0 0
  %542 = vmatprep.subr.bf16.mxu0 0
  %543 = vmatpush1.bf16.msra.mxu0 0
  %544 = vmatprep.subr.bf16.mxu0 0
  %545 = vmatpush1.bf16.msra.mxu0 0
  %546 = vmatprep.subr.bf16.mxu0 0
  %547 = vmatpush1.bf16.msra.mxu0 0
  %548 = vmatprep.subr.bf16.mxu0 0
  %549 = vmatpush1.bf16.msra.mxu0 0
  %550 = vmatprep.subr.bf16.mxu0 0
  %551 = vmatpush1.bf16.msra.mxu0 0
  %552 = vmatprep.subr.bf16.mxu0 0
  %553 = vmatpush1.bf16.msra.mxu0 0
  %554 = vmatprep.subr.bf16.mxu0 0
  %555 = vmatpush1.bf16.msra.mxu0 0
  %556 = vmatprep.subr.bf16.mxu0 0
  %557 = vmatpush1.bf16.msra.mxu0 0
  %558 = vmatprep.subr.bf16.mxu0 0
  %559 = vmatpush1.bf16.msra.mxu0 0
  %560 = vmatprep.subr.bf16.mxu0 0
  %561 = vmatpush1.bf16.msra.mxu0 0
  %562 = vmatprep.mubr.bf16.mxu0 0
  %563 = vmatmul.mubr.bf16.gmra.mrb[0].mxu0 %v377
  %v564 = vpop.f32.mrb[0].mxu0
  %v565 = vadd.f32 %v444, %v564
  %v566 = vpop.f32.mrb[0].mxu0
  %v567 = vpop.f32.mrb[0].mxu0
  %v568 = vadd.f32 %v447, %v567
  %v569 = vpop.f32.mrb[0].mxu0
  %570 = vmatprep.mubr.bf16.mxu0 0
  %571 = vmatmul.mubr.bf16.gmra.mrb[0].mxu0 %v380
  %v572 = vpop.f32.mrb[0].mxu0
  %v573 = vadd.f32 %v452, %v572
  %v574 = vpop.f32.mrb[0].mxu0
  %v575 = vpop.f32.mrb[0].mxu0
  %v576 = vadd.f32 %v455, %v575
  %v577 = vpop.f32.mrb[0].mxu0
  %578 = vmatprep.mubr.bf16.mxu0 0
  %579 = vmatmul.mubr.bf16.gmra.mrb[0].mxu0 %v383
  %v580 = vpop.f32.mrb[0].mxu0
  %v581 = vadd.f32 %v460, %v580
  %v582 = vpop.f32.mrb[0].mxu0
  %v583 = vpop.f32.mrb[0].mxu0
  %v584 = vadd.f32 %v463, %v583
  %v585 = vpop.f32.mrb[0].mxu0
  %586 = vmatprep.mubr.bf16.mxu0 0
  %587 = vmatmul.mubr.bf16.gmra.mrb[0].mxu0 %v386
  %v588 = vpop.f32.mrb[0].mxu0
  %v589 = vadd.f32 %v468, %v588
  %v590 = vpop.f32.mrb[0].mxu0
  %v591 = vpop.f32.mrb[0].mxu0
  %v592 = vadd.f32 %v471, %v591
  %v593 = vpop.f32.mrb[0].mxu0
  %594 = vmatprep.mubr.bf16.mxu0 0
  %595 = vmatmul.mubr.bf16.gmra.mrb[0].mxu0 %v389
  %v596 = vpop.f32.mrb[0].mxu0
  %v597 = vadd.f32 %v476, %v596
  %v598 = vpop.f32.mrb[0].mxu0
  %v599 = vpop.f32.mrb[0].mxu0
  %v600 = vadd.f32 %v479, %v599
  %v601 = vpop.f32.mrb[0].mxu0
  %602 = vmatprep.mubr.bf16.mxu0 0
  %603 = vmatmul.mubr.bf16.gmra.mrb[0].mxu0 %v392
  %v604 = vpop.f32.mrb[0].mxu0
  %v605 = vadd.f32 %v484, %v604
  %v606 = vpop.f32.mrb[0].mxu0
  %v607 = vpop.f32.mrb[0].mxu0
  %v608 = vadd.f32 %v487, %v607
  %v609 = vpop.f32.mrb[0].mxu0
  %610 = vmatprep.mubr.bf16.mxu0 0
  %611 = vmatmul.mubr.bf16.gmra.mrb[0].mxu0 %v395
  %v612 = vpop.f32.mrb[0].mxu0
  %v613 = vadd.f32 %v492, %v612
  %v614 = vpop.f32.mrb[0].mxu0
  %v615 = vpop.f32.mrb[0].mxu0
  %v616 = vadd.f32 %v495, %v615
  %v617 = vpop.f32.mrb[0].mxu0
  %618 = vmatprep.mubr.bf16.mxu0 0
  %619 = vmatmul.mubr.bf16.gmra.mrb[0].mxu0 %v398
  %v620 = vpop.f32.mrb[0].mxu0
  %v621 = vadd.f32 %v500, %v620
  %v622 = vpop.f32.mrb[0].mxu0
  %v623 = vpop.f32.mrb[0].mxu0
  %v624 = vadd.f32 %v503, %v623
  %v625 = vpop.f32.mrb[0].mxu0
  %626 = vmatprep.mubr.bf16.mxu0 0
  %627 = vmatmul.mubr.bf16.gmra.mrb[0].mxu0 %v401
  %v628 = vpop.f32.mrb[0].mxu0
  %v629 = vadd.f32 %v508, %v628
  %v630 = vpop.f32.mrb[0].mxu0
  %v631 = vpop.f32.mrb[0].mxu0
  %v632 = vadd.f32 %v511, %v631
  %v633 = vpop.f32.mrb[0].mxu0
  %634 = vmatprep.mubr.bf16.mxu0 0
  %635 = vmatmul.mubr.bf16.gmra.mrb[0].mxu0 %v404
  %v636 = vpop.f32.mrb[0].mxu0
  %v637 = vadd.f32 %v516, %v636
  %v638 = vpop.f32.mrb[0].mxu0
  %v639 = vpop.f32.mrb[0].mxu0
  %v640 = vadd.f32 %v519, %v639
  %v641 = vpop.f32.mrb[0].mxu0
  %642 = vmatprep.mubr.bf16.mxu0 0
  %643 = vmatmul.mubr.bf16.gmra.mrb[0].mxu0 %v407
  %v644 = vpop.f32.mrb[0].mxu0
  %v645 = vadd.f32 %v524, %v644
  %v646 = vpop.f32.mrb[0].mxu0
  %v647 = vpop.f32.mrb[0].mxu0
  %v648 = vadd.f32 %v527, %v647
  %v649 = vpop.f32.mrb[0].mxu0
  %650 = vdwg.mxu0
  %v651 = vmax.f32 %v565, 0.0
  %v652 = vmax.f32 %v568, 0.0
  %v653 = vmax.f32 %v573, 0.0
  %v654 = vmax.f32 %v576, 0.0
  %v655 = vmax.f32 %v581, 0.0
  %v656 = vmax.f32 %v584, 0.0
  %v657 = vmax.f32 %v589, 0.0
  %v658 = vmax.f32 %v592, 0.0
  %v659 = vmax.f32 %v597, 0.0
  %v660 = vmax.f32 %v600, 0.0
  %v661 = vmax.f32 %v605, 0.0
  %v662 = vmax.f32 %v608, 0.0
  %v663 = vmax.f32 %v613, 0.0
  %v664 = vmax.f32 %v616, 0.0
  %v665 = vmax.f32 %v621, 0.0
  %v666 = vmax.f32 %v624, 0.0
  %v667 = vmax.f32 %v629, 0.0
  %v668 = vmax.f32 %v632, 0.0
  %v669 = vmax.f32 %v637, 0.0
  %v670 = vmax.f32 %v640, 0.0
  %v671 = vmax.f32 %v645, 0.0
  %v672 = vmax.f32 %v648, 0.0
  %v673 = vpack.c.bf16 %v652, %v651
  %v674 = vpack.c.bf16 %v654, %v653
  %v675 = vpack.c.bf16 %v656, %v655
  %v676 = vpack.c.bf16 %v658, %v657
  %v677 = vpack.c.bf16 %v660, %v659
  %v678 = vpack.c.bf16 %v662, %v661
  %v679 = vpack.c.bf16 %v664, %v663
  %v680 = vpack.c.bf16 %v666, %v665
  %v681 = vpack.c.bf16 %v668, %v667
  %v682 = vpack.c.bf16 %v670, %v669
  %v683 = vpack.c.bf16 %v672, %v671
  %v695 = vunpack.c.l.b16 %v673
  %v696 = vunpack.c.h.b16 %v673
  %v697 = vunpack.c.l.b16 %v674
  %v698 = vunpack.c.h.b16 %v674
  %v699 = vunpack.c.l.b16 %v675
  %v700 = vunpack.c.h.b16 %v675
  %v701 = vunpack.c.l.b16 %v676
  %v702 = vunpack.c.h.b16 %v676
  %v703 = vunpack.c.l.b16 %v677
  %v704 = vunpack.c.h.b16 %v677
  %v705 = vunpack.c.l.b16 %v678
  %v706 = vunpack.c.h.b16 %v678
  %v707 = vunpack.c.l.b16 %v679
  %v708 = vunpack.c.h.b16 %v679
  %v709 = vunpack.c.l.b16 %v680
  %v710 = vunpack.c.h.b16 %v680
  %v711 = vunpack.c.l.b16 %v681
  %v712 = vunpack.c.h.b16 %v681
  %v713 = vunpack.c.l.b16 %v682
  %v714 = vunpack.c.h.b16 %v682
  %v715 = vunpack.c.l.b16 %v683
  %v716 = vunpack.c.h.b16 %v683
  %v717 = vpack.c.b16 %v695, %v695
  %v718 = vpack.c.b16 %v696, %v696
  %v719 = vpack.c.b16 %v697, %v697
  %v720 = vpack.c.b16 %v698, %v698
  %v721 = vpack.c.b16 %v699, %v699
  %v722 = vpack.c.b16 %v700, %v700
  %v723 = vpack.c.b16 %v701, %v701
  %v724 = vpack.c.b16 %v702, %v702
  %v725 = vpack.c.b16 %v703, %v703
  %v726 = vpack.c.b16 %v704, %v704
  %v727 = vpack.c.b16 %v705, %v705
  %v728 = vpack.c.b16 %v706, %v706
  %v729 = vpack.c.b16 %v707, %v707
  %v730 = vpack.c.b16 %v708, %v708
  %v731 = vpack.c.b16 %v709, %v709
  %v732 = vpack.c.b16 %v710, %v710
  %v733 = vpack.c.b16 %v711, %v711
  %v734 = vpack.c.b16 %v712, %v712
  %v735 = vpack.c.b16 %v713, %v713
  %v736 = vpack.c.b16 %v714, %v714
  %v737 = vpack.c.b16 %v715, %v715
  %v738 = vpack.c.b16 %v716, %v716
  %vm761 = vcmask 257024
  %762 = vst.msk [vmem:[%s3] sm:$0xf] %vm761, %v717
  %763 = vst.msk [vmem:[%s3 + $0x4] sm:$0xf] %vm761, %v718
  %764 = vst.msk [vmem:[%s3 + $0x8] sm:$0xf] %vm761, %v719
  %765 = vst.msk [vmem:[%s3 + $0xc] sm:$0xf] %vm761, %v720
  %766 = vst.msk [vmem:[%s3 + $0x10] sm:$0xf] %vm761, %v721
  %767 = vst.msk [vmem:[%s3 + $0x14] sm:$0xf] %vm761, %v722
  %768 = vst.msk [vmem:[%s3 + $0x18] sm:$0xf] %vm761, %v723
  %769 = vst.msk [vmem:[%s3 + $0x1c] sm:$0xf] %vm761, %v724
  %770 = vst.msk [vmem:[%s3 + $0x20] sm:$0xf] %vm761, %v725
  %771 = vst.msk [vmem:[%s3 + $0x24] sm:$0xf] %vm761, %v726
  %772 = vst.msk [vmem:[%s3 + $0x28] sm:$0xf] %vm761, %v727
  %773 = vst.msk [vmem:[%s3 + $0x2c] sm:$0xf] %vm761, %v728
  %774 = vst.msk [vmem:[%s3 + $0x30] sm:$0xf] %vm761, %v729
  %775 = vst.msk [vmem:[%s3 + $0x34] sm:$0xf] %vm761, %v730
  %776 = vst.msk [vmem:[%s3 + $0x38] sm:$0xf] %vm761, %v731
  %777 = vst.msk [vmem:[%s3 + $0x3c] sm:$0xf] %vm761, %v732
  %778 = vst.msk [vmem:[%s3 + $0x40] sm:$0xf] %vm761, %v733
  %779 = vst.msk [vmem:[%s3 + $0x44] sm:$0xf] %vm761, %v734
  %780 = vst.msk [vmem:[%s3 + $0x48] sm:$0xf] %vm761, %v735
  %781 = vst.msk [vmem:[%s3 + $0x4c] sm:$0xf] %vm761, %v736
  %782 = vst.msk [vmem:[%s3 + $0x50] sm:$0xf] %vm761, %v737
  %783 = vst.msk [vmem:[%s3 + $0x54] sm:$0xf] %vm761, %v738
  // Predicated region
  $region14: #{_lambda_.7} parent=0 // pred_check
    _
  $region15: #{_lambda_.7} parent=0 // pred_check_branch
    %785 = sbr.rel (0) target = $region17
  $region16: #{_lambda_.7} parent=0 // pred_region
    _
  $region17: #{_lambda_.7} parent=0 // pred_fallthru
    _
  // Predicated region
  $region18: #{_lambda_.7} parent=0 // pred_check
    _
  $region19: #{_lambda_.7} parent=0 // pred_check_branch
    %787 = sbr.rel (0) target = $region21
  $region20: #{_lambda_.7} parent=0 // pred_region
    _
  $region21: #{_lambda_.7} parent=0 // pred_fallthru
    _

// kernel: _lambda_.8
$region0: #{_lambda_.8}
  #allocation0 [shape = 'u32[]', space=smem, size = 0x4, offset = 0x4, fixed_abs, tag = 'smem constant byte address 0x4 - core index']
  #allocation1 [shape = 'u32[144,128]{1,0:T(1,128)}', space=vmem, size = 0x12000, scoped, tag = 'internal scratch']
  %s0 = inlined_call_operand.vmem [shape: bf16[112,288], index: 0, kind: input, shape index: {}]
  %s1 = inlined_call_operand.vmem [shape: bf16[288,32], index: 1, kind: input, shape index: {}]
  %s2 = inlined_call_operand.vmem [shape: f32[1,32], index: 2, kind: input, shape index: {}]
  %s3 = inlined_call_operand.vmem [shape: bf16[112,32], index: 3, kind: output, shape index: {}]
  %s4 = sld [smem:[#allocation0]]
  $region22: #{_lambda_.8} parent=0
    _
  %s6 = ssub.s32 1, %s4
  %s7 = scalar_select 0, %s6, %s4
  // Predicated region
  $region2: #{_lambda_.8} parent=0 // pred_check
    _
  $region3: #{_lambda_.8} parent=0 // pred_check_branch
    %9 = sbr.rel (0) target = $region5
  $region4: #{_lambda_.8} parent=0 // pred_region
    _
  $region5: #{_lambda_.8} parent=0 // pred_fallthru
    _
  // Predicated region
  $region6: #{_lambda_.8} parent=0 // pred_check
    _
  $region7: #{_lambda_.8} parent=0 // pred_check_branch
    %11 = sbr.rel (0) target = $region9
  $region8: #{_lambda_.8} parent=0 // pred_region
    _
  $region9: #{_lambda_.8} parent=0 // pred_fallthru
    _
  // Predicated region
  $region10: #{_lambda_.8} parent=0 // pred_check
    _
  $region11: #{_lambda_.8} parent=0 // pred_check_branch
    %13 = sbr.rel (0) target = $region13
  $region12: #{_lambda_.8} parent=0 // pred_region
    _
  $region13: #{_lambda_.8} parent=0 // pred_fallthru
    _
  %v15 = vld [vmem:[%s0] sm:$0xff]
  %v16 = vld [vmem:[%s0 + $0x8] sm:$0xf]
  %v17 = vld [vmem:[%s0 + $0xc] sm:$0xff]
  %v18 = vld [vmem:[%s0 + $0x14] sm:$0xf]
  %v19 = vld [vmem:[%s0 + $0x18] sm:$0xff]
  %v20 = vld [vmem:[%s0 + $0x20] sm:$0xf]
  %v21 = vld [vmem:[%s0 + $0x24] sm:$0xff]
  %v22 = vld [vmem:[%s0 + $0x2c] sm:$0xf]
  %v23 = vld [vmem:[%s0 + $0x30] sm:$0xff]
  %v24 = vld [vmem:[%s0 + $0x38] sm:$0xf]
  %v25 = vld [vmem:[%s0 + $0x3c] sm:$0xff]
  %v26 = vld [vmem:[%s0 + $0x44] sm:$0xf]
  %v27 = vld [vmem:[%s0 + $0x48] sm:$0xff]
  %v28 = vld [vmem:[%s0 + $0x50] sm:$0xf]
  %v29 = vld [vmem:[%s0 + $0x54] sm:$0xff]
  %v30 = vld [vmem:[%s0 + $0x5c] sm:$0xf]
  %v31 = vld [vmem:[%s0 + $0x60] sm:$0xff]
  %v32 = vld [vmem:[%s0 + $0x68] sm:$0xf]
  %v33 = vld [vmem:[%s0 + $0x6c] sm:$0xff]
  %v34 = vld [vmem:[%s0 + $0x74] sm:$0xf]
  %v35 = vld [vmem:[%s0 + $0x78] sm:$0xff]
  %v36 = vld [vmem:[%s0 + $0x80] sm:$0xf]
  %v37 = vld [vmem:[%s0 + $0x84] sm:$0xff]
  %v38 = vld [vmem:[%s0 + $0x8c] sm:$0xf]
  %v39 = vld [vmem:[%s0 + $0x90] sm:$0xff]
  %v40 = vld [vmem:[%s0 + $0x98] sm:$0xf]
  %v41 = vld [vmem:[%s0 + $0x9c] sm:$0xff]
  %v42 = vld [vmem:[%s0 + $0xa4] sm:$0xf]
  %v43 = vld [vmem:[%s1] sm:$0xf]
  %v44 = vld [vmem:[%s1 + $0x4] sm:$0xf]
  %v45 = vld [vmem:[%s1 + $0x8] sm:$0xf]
  %v46 = vld [vmem:[%s1 + $0xc] sm:$0xf]
  %v47 = vld [vmem:[%s1 + $0x10] sm:$0xf]
  %v48 = vld [vmem:[%s1 + $0x14] sm:$0xf]
  %v49 = vld [vmem:[%s1 + $0x18] sm:$0xf]
  %v50 = vld [vmem:[%s1 + $0x1c] sm:$0xf]
  %v51 = vld [vmem:[%s1 + $0x20] sm:$0xf]
  %v52 = vld [vmem:[%s1 + $0x24] sm:$0xf]
  %v53 = vld [vmem:[%s1 + $0x28] sm:$0xf]
  %v54 = vld [vmem:[%s1 + $0x2c] sm:$0xf]
  %v55 = vld [vmem:[%s1 + $0x30] sm:$0xf]
  %v56 = vld [vmem:[%s1 + $0x34] sm:$0xf]
  %v57 = vld [vmem:[%s1 + $0x38] sm:$0xf]
  %v58 = vld [vmem:[%s1 + $0x3c] sm:$0xf]
  %v59 = vld [vmem:[%s1 + $0x40] sm:$0xf]
  %v60 = vld [vmem:[%s1 + $0x44] sm:$0xf]
  %v61 = vld [vmem:[%s1 + $0x48] sm:$0xf]
  %v62 = vld [vmem:[%s1 + $0x4c] sm:$0xf]
  %v63 = vld [vmem:[%s1 + $0x50] sm:$0xf]
  %v64 = vld [vmem:[%s1 + $0x54] sm:$0xf]
  %v65 = vld [vmem:[%s1 + $0x58] sm:$0xf]
  %v66 = vld [vmem:[%s1 + $0x5c] sm:$0xf]
  %v67 = vld [vmem:[%s1 + $0x60] sm:$0xf]
  %v68 = vld [vmem:[%s1 + $0x64] sm:$0xf]
  %v69 = vld [vmem:[%s1 + $0x68] sm:$0xf]
  %v70 = vld [vmem:[%s1 + $0x6c] sm:$0xf]
  %v71 = vld [vmem:[%s1 + $0x70] sm:$0xf]
  %v72 = vld [vmem:[%s1 + $0x74] sm:$0xf]
  %v73 = vld [vmem:[%s1 + $0x78] sm:$0xf]
  %v74 = vld [vmem:[%s1 + $0x7c] sm:$0xf]
  %v75 = vld [vmem:[%s1 + $0x80] sm:$0xf]
  %v76 = vld [vmem:[%s1 + $0x84] sm:$0xf]
  %v77 = vld [vmem:[%s1 + $0x88] sm:$0xf]
  %v78 = vld [vmem:[%s1 + $0x8c] sm:$0xf]
  %v79 = vld [vmem:[%s2] sm:$0x1]
  %v81 = vlaneseq
  %v82 = vshrl.u32 %v81, 7
  %v83 = vsub.s32 0, %v82
  %v84 = vrot.slane %v79, %v83
  %v114 = vunpack.c.l.b16 %v15
  %v115 = vunpack.c.h.b16 %v15
  %v116 = vunpack.c.l.b16 %v16
  %v117 = vunpack.c.l.b16 %v17
  %v118 = vunpack.c.h.b16 %v17
  %v119 = vunpack.c.l.b16 %v18
  %v120 = vunpack.c.l.b16 %v19
  %v121 = vunpack.c.h.b16 %v19
  %v122 = vunpack.c.l.b16 %v20
  %v123 = vunpack.c.l.b16 %v21
  %v124 = vunpack.c.h.b16 %v21
  %v125 = vunpack.c.l.b16 %v22
  %v126 = vunpack.c.l.b16 %v23
  %v127 = vunpack.c.h.b16 %v23
  %v128 = vunpack.c.l.b16 %v24
  %v129 = vunpack.c.l.b16 %v25
  %v130 = vunpack.c.h.b16 %v25
  %v131 = vunpack.c.l.b16 %v26
  %v132 = vunpack.c.l.b16 %v27
  %v133 = vunpack.c.h.b16 %v27
  %v134 = vunpack.c.l.b16 %v28
  %v135 = vunpack.c.l.b16 %v29
  %v136 = vunpack.c.h.b16 %v29
  %v137 = vunpack.c.l.b16 %v30
  %v138 = vunpack.c.l.b16 %v31
  %v139 = vunpack.c.h.b16 %v31
  %v140 = vunpack.c.l.b16 %v32
  %v141 = vunpack.c.l.b16 %v33
  %v142 = vunpack.c.h.b16 %v33
  %v143 = vunpack.c.l.b16 %v34
  %v144 = vunpack.c.l.b16 %v35
  %v145 = vunpack.c.h.b16 %v35
  %v146 = vunpack.c.l.b16 %v36
  %v147 = vunpack.c.l.b16 %v37
  %v148 = vunpack.c.h.b16 %v37
  %v149 = vunpack.c.l.b16 %v38
  %v150 = vunpack.c.l.b16 %v39
  %v151 = vunpack.c.h.b16 %v39
  %v152 = vunpack.c.l.b16 %v40
  %v153 = vunpack.c.l.b16 %v41
  %v154 = vunpack.c.h.b16 %v41
  %v155 = vunpack.c.l.b16 %v42
  %v156 = vpack.c.b16 %v117, %v114
  %v157 = vpack.c.b16 %v118, %v115
  %v158 = vpack.c.b16 %v119, %v116
  %v159 = vpack.c.b16 %v123, %v120
  %v160 = vpack.c.b16 %v124, %v121
  %v161 = vpack.c.b16 %v125, %v122
  %v162 = vpack.c.b16 %v129, %v126
  %v163 = vpack.c.b16 %v130, %v127
  %v164 = vpack.c.b16 %v131, %v128
  %v165 = vpack.c.b16 %v135, %v132
  %v166 = vpack.c.b16 %v136, %v133
  %v167 = vpack.c.b16 %v137, %v134
  %v168 = vpack.c.b16 %v141, %v138
  %v169 = vpack.c.b16 %v142, %v139
  %v170 = vpack.c.b16 %v143, %v140
  %v171 = vpack.c.b16 %v147, %v144
  %v172 = vpack.c.b16 %v148, %v145
  %v173 = vpack.c.b16 %v149, %v146
  %v174 = vpack.c.b16 %v153, %v150
  %v175 = vpack.c.b16 %v154, %v151
  %v176 = vpack.c.b16 %v155, %v152
  %v227 = vunpack.c.l.b16 %v43
  %v228 = vunpack.c.l.b16 %v44
  %v229 = vunpack.c.l.b16 %v45
  %v230 = vunpack.c.l.b16 %v46
  %v231 = vunpack.c.l.b16 %v47
  %v232 = vunpack.c.l.b16 %v48
  %v233 = vunpack.c.l.b16 %v49
  %v234 = vunpack.c.l.b16 %v50
  %v235 = vunpack.c.l.b16 %v51
  %v236 = vunpack.c.l.b16 %v52
  %v237 = vunpack.c.l.b16 %v53
  %v238 = vunpack.c.l.b16 %v54
  %v239 = vunpack.c.l.b16 %v55
  %v240 = vunpack.c.l.b16 %v56
  %v241 = vunpack.c.l.b16 %v57
  %v242 = vunpack.c.l.b16 %v58
  %v243 = vunpack.c.l.b16 %v59
  %v244 = vunpack.c.l.b16 %v60
  %v245 = vunpack.c.l.b16 %v61
  %v246 = vunpack.c.l.b16 %v62
  %v247 = vunpack.c.l.b16 %v63
  %v248 = vunpack.c.l.b16 %v64
  %v249 = vunpack.c.l.b16 %v65
  %v250 = vunpack.c.l.b16 %v66
  %v251 = vunpack.c.l.b16 %v67
  %v252 = vunpack.c.l.b16 %v68
  %v253 = vunpack.c.l.b16 %v69
  %v254 = vunpack.c.l.b16 %v70
  %v255 = vunpack.c.l.b16 %v71
  %v256 = vunpack.c.l.b16 %v72
  %v257 = vunpack.c.l.b16 %v73
  %v258 = vunpack.c.l.b16 %v74
  %v259 = vunpack.c.l.b16 %v75
  %v260 = vunpack.c.l.b16 %v76
  %v261 = vunpack.c.l.b16 %v77
  %v262 = vunpack.c.l.b16 %v78
  %v263 = vpack.c.b16 %v228, %v227
  %v264 = vpack.c.b16 %v230, %v229
  %v265 = vpack.c.b16 %v232, %v231
  %v266 = vpack.c.b16 %v234, %v233
  %v267 = vpack.c.b16 %v236, %v235
  %v268 = vpack.c.b16 %v238, %v237
  %v269 = vpack.c.b16 %v240, %v239
  %v270 = vpack.c.b16 %v242, %v241
  %v271 = vpack.c.b16 %v244, %v243
  %v272 = vpack.c.b16 %v246, %v245
  %v273 = vpack.c.b16 %v248, %v247
  %v274 = vpack.c.b16 %v250, %v249
  %v275 = vpack.c.b16 %v252, %v251
  %v276 = vpack.c.b16 %v254, %v253
  %v277 = vpack.c.b16 %v256, %v255
  %v278 = vpack.c.b16 %v258, %v257
  %v279 = vpack.c.b16 %v260, %v259
  %v280 = vpack.c.b16 %v262, %v261
  %vm299 = vcmask 261120
  %v301 = vsel %vm299, %v158, 0
  %v304 = vsel %vm299, %v161, 0
  %v307 = vsel %vm299, %v164, 0
  %v310 = vsel %vm299, %v167, 0
  %v313 = vsel %vm299, %v170, 0
  %v316 = vsel %vm299, %v173, 0
  %v319 = vsel %vm299, %v176, 0
  %321 = vmatprep.subr.bf16.mxu0 0
  %322 = vmatpush1.bf16.msra.mxu0 %v263
  %323 = vmatprep.subr.bf16.mxu0 0
  %324 = vmatpush1.bf16.msra.mxu0 %v264
  %325 = vmatprep.subr.bf16.mxu0 0
  %326 = vmatpush1.bf16.msra.mxu0 %v265
  %327 = vmatprep.subr.bf16.mxu0 0
  %328 = vmatpush1.bf16.msra.mxu0 %v266
  %329 = vmatprep.subr.bf16.mxu0 0
  %330 = vmatpush1.bf16.msra.mxu0 %v267
  %331 = vmatprep.subr.bf16.mxu0 0
  %332 = vmatpush1.bf16.msra.mxu0 %v268
  %333 = vmatprep.subr.bf16.mxu0 0
  %334 = vmatpush1.bf16.msra.mxu0 %v269
  %335 = vmatprep.subr.bf16.mxu0 0
  %336 = vmatpush1.bf16.msra.mxu0 %v270
  %337 = vmatprep.subr.bf16.mxu0 0
  %338 = vmatpush1.bf16.msra.mxu0 %v271
  %339 = vmatprep.subr.bf16.mxu0 0
  %340 = vmatpush1.bf16.msra.mxu0 %v272
  %341 = vmatprep.subr.bf16.mxu0 0
  %342 = vmatpush1.bf16.msra.mxu0 %v273
  %343 = vmatprep.subr.bf16.mxu0 0
  %344 = vmatpush1.bf16.msra.mxu0 %v274
  %345 = vmatprep.subr.bf16.mxu0 0
  %346 = vmatpush1.bf16.msra.mxu0 %v275
  %347 = vmatprep.subr.bf16.mxu0 0
  %348 = vmatpush1.bf16.msra.mxu0 %v276
  %349 = vmatprep.subr.bf16.mxu0 0
  %350 = vmatpush1.bf16.msra.mxu0 %v277
  %351 = vmatprep.subr.bf16.mxu0 0
  %352 = vmatpush1.bf16.msra.mxu0 %v278
  %353 = vmatprep.mubr.bf16.mxu0 %v157
  %354 = vmatmul.mubr.bf16.gmra.mrb[0].mxu0 %v156
  %v355 = vpop.f32.mrb[0].mxu0
  %v356 = vadd.f32 %v84, %v355
  %v357 = vpop.f32.mrb[0].mxu0
  %v358 = vpop.f32.mrb[0].mxu0
  %v359 = vadd.f32 %v84, %v358
  %v360 = vpop.f32.mrb[0].mxu0
  %361 = vmatprep.mubr.bf16.mxu0 %v160
  %362 = vmatmul.mubr.bf16.gmra.mrb[0].mxu0 %v159
  %v363 = vpop.f32.mrb[0].mxu0
  %v364 = vadd.f32 %v84, %v363
  %v365 = vpop.f32.mrb[0].mxu0
  %v366 = vpop.f32.mrb[0].mxu0
  %v367 = vadd.f32 %v84, %v366
  %v368 = vpop.f32.mrb[0].mxu0
  %369 = vmatprep.mubr.bf16.mxu0 %v163
  %370 = vmatmul.mubr.bf16.gmra.mrb[0].mxu0 %v162
  %v371 = vpop.f32.mrb[0].mxu0
  %v372 = vadd.f32 %v84, %v371
  %v373 = vpop.f32.mrb[0].mxu0
  %v374 = vpop.f32.mrb[0].mxu0
  %v375 = vadd.f32 %v84, %v374
  %v376 = vpop.f32.mrb[0].mxu0
  %377 = vmatprep.mubr.bf16.mxu0 %v166
  %378 = vmatmul.mubr.bf16.gmra.mrb[0].mxu0 %v165
  %v379 = vpop.f32.mrb[0].mxu0
  %v380 = vadd.f32 %v84, %v379
  %v381 = vpop.f32.mrb[0].mxu0
  %v382 = vpop.f32.mrb[0].mxu0
  %v383 = vadd.f32 %v84, %v382
  %v384 = vpop.f32.mrb[0].mxu0
  %385 = vmatprep.mubr.bf16.mxu0 %v169
  %386 = vmatmul.mubr.bf16.gmra.mrb[0].mxu0 %v168
  %v387 = vpop.f32.mrb[0].mxu0
  %v388 = vadd.f32 %v84, %v387
  %v389 = vpop.f32.mrb[0].mxu0
  %v390 = vpop.f32.mrb[0].mxu0
  %v391 = vadd.f32 %v84, %v390
  %v392 = vpop.f32.mrb[0].mxu0
  %393 = vmatprep.mubr.bf16.mxu0 %v172
  %394 = vmatmul.mubr.bf16.gmra.mrb[0].mxu0 %v171
  %v395 = vpop.f32.mrb[0].mxu0
  %v396 = vadd.f32 %v84, %v395
  %v397 = vpop.f32.mrb[0].mxu0
  %v398 = vpop.f32.mrb[0].mxu0
  %v399 = vadd.f32 %v84, %v398
  %v400 = vpop.f32.mrb[0].mxu0
  %401 = vmatprep.mubr.bf16.mxu0 %v175
  %402 = vmatmul.mubr.bf16.gmra.mrb[0].mxu0 %v174
  %v403 = vpop.f32.mrb[0].mxu0
  %v404 = vadd.f32 %v84, %v403
  %v405 = vpop.f32.mrb[0].mxu0
  %v406 = vpop.f32.mrb[0].mxu0
  %v407 = vadd.f32 %v84, %v406
  %v408 = vpop.f32.mrb[0].mxu0
  %409 = vdwg.mxu0
  %410 = vmatprep.subr.bf16.mxu0 0
  %411 = vmatpush1.bf16.msra.mxu0 %v279
  %412 = vmatprep.subr.bf16.mxu0 0
  %413 = vmatpush1.bf16.msra.mxu0 %v280
  %414 = vmatprep.subr.bf16.mxu0 0
  %415 = vmatpush1.bf16.msra.mxu0 0
  %416 = vmatprep.subr.bf16.mxu0 0
  %417 = vmatpush1.bf16.msra.mxu0 0
  %418 = vmatprep.subr.bf16.mxu0 0
  %419 = vmatpush1.bf16.msra.mxu0 0
  %420 = vmatprep.subr.bf16.mxu0 0
  %421 = vmatpush1.bf16.msra.mxu0 0
  %422 = vmatprep.subr.bf16.mxu0 0
  %423 = vmatpush1.bf16.msra.mxu0 0
  %424 = vmatprep.subr.bf16.mxu0 0
  %425 = vmatpush1.bf16.msra.mxu0 0
  %426 = vmatprep.subr.bf16.mxu0 0
  %427 = vmatpush1.bf16.msra.mxu0 0
  %428 = vmatprep.subr.bf16.mxu0 0
  %429 = vmatpush1.bf16.msra.mxu0 0
  %430 = vmatprep.subr.bf16.mxu0 0
  %431 = vmatpush1.bf16.msra.mxu0 0
  %432 = vmatprep.subr.bf16.mxu0 0
  %433 = vmatpush1.bf16.msra.mxu0 0
  %434 = vmatprep.subr.bf16.mxu0 0
  %435 = vmatpush1.bf16.msra.mxu0 0
  %436 = vmatprep.subr.bf16.mxu0 0
  %437 = vmatpush1.bf16.msra.mxu0 0
  %438 = vmatprep.subr.bf16.mxu0 0
  %439 = vmatpush1.bf16.msra.mxu0 0
  %440 = vmatprep.subr.bf16.mxu0 0
  %441 = vmatpush1.bf16.msra.mxu0 0
  %442 = vmatprep.mubr.bf16.mxu0 0
  %443 = vmatmul.mubr.bf16.gmra.mrb[0].mxu0 %v301
  %v444 = vpop.f32.mrb[0].mxu0
  %v445 = vadd.f32 %v356, %v444
  %v446 = vpop.f32.mrb[0].mxu0
  %v447 = vpop.f32.mrb[0].mxu0
  %v448 = vadd.f32 %v359, %v447
  %v449 = vpop.f32.mrb[0].mxu0
  %450 = vmatprep.mubr.bf16.mxu0 0
  %451 = vmatmul.mubr.bf16.gmra.mrb[0].mxu0 %v304
  %v452 = vpop.f32.mrb[0].mxu0
  %v453 = vadd.f32 %v364, %v452
  %v454 = vpop.f32.mrb[0].mxu0
  %v455 = vpop.f32.mrb[0].mxu0
  %v456 = vadd.f32 %v367, %v455
  %v457 = vpop.f32.mrb[0].mxu0
  %458 = vmatprep.mubr.bf16.mxu0 0
  %459 = vmatmul.mubr.bf16.gmra.mrb[0].mxu0 %v307
  %v460 = vpop.f32.mrb[0].mxu0
  %v461 = vadd.f32 %v372, %v460
  %v462 = vpop.f32.mrb[0].mxu0
  %v463 = vpop.f32.mrb[0].mxu0
  %v464 = vadd.f32 %v375, %v463
  %v465 = vpop.f32.mrb[0].mxu0
  %466 = vmatprep.mubr.bf16.mxu0 0
  %467 = vmatmul.mubr.bf16.gmra.mrb[0].mxu0 %v310
  %v468 = vpop.f32.mrb[0].mxu0
  %v469 = vadd.f32 %v380, %v468
  %v470 = vpop.f32.mrb[0].mxu0
  %v471 = vpop.f32.mrb[0].mxu0
  %v472 = vadd.f32 %v383, %v471
  %v473 = vpop.f32.mrb[0].mxu0
  %474 = vmatprep.mubr.bf16.mxu0 0
  %475 = vmatmul.mubr.bf16.gmra.mrb[0].mxu0 %v313
  %v476 = vpop.f32.mrb[0].mxu0
  %v477 = vadd.f32 %v388, %v476
  %v478 = vpop.f32.mrb[0].mxu0
  %v479 = vpop.f32.mrb[0].mxu0
  %v480 = vadd.f32 %v391, %v479
  %v481 = vpop.f32.mrb[0].mxu0
  %482 = vmatprep.mubr.bf16.mxu0 0
  %483 = vmatmul.mubr.bf16.gmra.mrb[0].mxu0 %v316
  %v484 = vpop.f32.mrb[0].mxu0
  %v485 = vadd.f32 %v396, %v484
  %v486 = vpop.f32.mrb[0].mxu0
  %v487 = vpop.f32.mrb[0].mxu0
  %v488 = vadd.f32 %v399, %v487
  %v489 = vpop.f32.mrb[0].mxu0
  %490 = vmatprep.mubr.bf16.mxu0 0
  %491 = vmatmul.mubr.bf16.gmra.mrb[0].mxu0 %v319
  %v492 = vpop.f32.mrb[0].mxu0
  %v493 = vadd.f32 %v404, %v492
  %v494 = vpop.f32.mrb[0].mxu0
  %v495 = vpop.f32.mrb[0].mxu0
  %v496 = vadd.f32 %v407, %v495
  %v497 = vpop.f32.mrb[0].mxu0
  %498 = vdwg.mxu0
  %v499 = vpack.c.bf16 %v448, %v445
  %v500 = vpack.c.bf16 %v456, %v453
  %v501 = vpack.c.bf16 %v464, %v461
  %v502 = vpack.c.bf16 %v472, %v469
  %v503 = vpack.c.bf16 %v480, %v477
  %v504 = vpack.c.bf16 %v488, %v485
  %v505 = vpack.c.bf16 %v496, %v493
  %v513 = vunpack.c.l.b16 %v499
  %v514 = vunpack.c.h.b16 %v499
  %v515 = vunpack.c.l.b16 %v500
  %v516 = vunpack.c.h.b16 %v500
  %v517 = vunpack.c.l.b16 %v501
  %v518 = vunpack.c.h.b16 %v501
  %v519 = vunpack.c.l.b16 %v502
  %v520 = vunpack.c.h.b16 %v502
  %v521 = vunpack.c.l.b16 %v503
  %v522 = vunpack.c.h.b16 %v503
  %v523 = vunpack.c.l.b16 %v504
  %v524 = vunpack.c.h.b16 %v504
  %v525 = vunpack.c.l.b16 %v505
  %v526 = vunpack.c.h.b16 %v505
  %v527 = vpack.c.b16 %v513, %v513
  %v528 = vpack.c.b16 %v514, %v514
  %v529 = vpack.c.b16 %v515, %v515
  %v530 = vpack.c.b16 %v516, %v516
  %v531 = vpack.c.b16 %v517, %v517
  %v532 = vpack.c.b16 %v518, %v518
  %v533 = vpack.c.b16 %v519, %v519
  %v534 = vpack.c.b16 %v520, %v520
  %v535 = vpack.c.b16 %v521, %v521
  %v536 = vpack.c.b16 %v522, %v522
  %v537 = vpack.c.b16 %v523, %v523
  %v538 = vpack.c.b16 %v524, %v524
  %v539 = vpack.c.b16 %v525, %v525
  %v540 = vpack.c.b16 %v526, %v526
  %vm555 = vcmask 257024
  %556 = vst.msk [vmem:[%s3] sm:$0xf] %vm555, %v527
  %557 = vst.msk [vmem:[%s3 + $0x4] sm:$0xf] %vm555, %v528
  %558 = vst.msk [vmem:[%s3 + $0x8] sm:$0xf] %vm555, %v529
  %559 = vst.msk [vmem:[%s3 + $0xc] sm:$0xf] %vm555, %v530
  %560 = vst.msk [vmem:[%s3 + $0x10] sm:$0xf] %vm555, %v531
  %561 = vst.msk [vmem:[%s3 + $0x14] sm:$0xf] %vm555, %v532
  %562 = vst.msk [vmem:[%s3 + $0x18] sm:$0xf] %vm555, %v533
  %563 = vst.msk [vmem:[%s3 + $0x1c] sm:$0xf] %vm555, %v534
  %564 = vst.msk [vmem:[%s3 + $0x20] sm:$0xf] %vm555, %v535
  %565 = vst.msk [vmem:[%s3 + $0x24] sm:$0xf] %vm555, %v536
  %566 = vst.msk [vmem:[%s3 + $0x28] sm:$0xf] %vm555, %v537
  %567 = vst.msk [vmem:[%s3 + $0x2c] sm:$0xf] %vm555, %v538
  %568 = vst.msk [vmem:[%s3 + $0x30] sm:$0xf] %vm555, %v539
  %569 = vst.msk [vmem:[%s3 + $0x34] sm:$0xf] %vm555, %v540
  // Predicated region
  $region14: #{_lambda_.8} parent=0 // pred_check
    _
  $region15: #{_lambda_.8} parent=0 // pred_check_branch
    %571 = sbr.rel (0) target = $region17
  $region16: #{_lambda_.8} parent=0 // pred_region
    _
  $region17: #{_lambda_.8} parent=0 // pred_fallthru
    _
  // Predicated region
  $region18: #{_lambda_.8} parent=0 // pred_check
    _
  $region19: #{_lambda_.8} parent=0 // pred_check_branch
    %573 = sbr.rel (0) target = $region21
  $region20: #{_lambda_.8} parent=0 // pred_region
    _
  $region21: #{_lambda_.8} parent=0 // pred_fallthru
    _

// kernel: _lambda_.9
$region0: #{_lambda_.9}
  #allocation0 [shape = 'u32[]', space=smem, size = 0x4, offset = 0x4, fixed_abs, tag = 'smem constant byte address 0x4 - core index']
  #allocation1 [shape = 'u32[144,128]{1,0:T(1,128)}', space=vmem, size = 0x12000, scoped, tag = 'internal scratch']
  %s0 = inlined_call_operand.vmem [shape: bf16[16,1568], index: 0, kind: input, shape index: {}]
  %s1 = inlined_call_operand.vmem [shape: bf16[1568,128], index: 1, kind: input, shape index: {}]
  %s2 = inlined_call_operand.vmem [shape: f32[1,128], index: 2, kind: input, shape index: {}]
  %s3 = inlined_call_operand.vmem [shape: bf16[128,128], index: 3, kind: input, shape index: {}]
  %s4 = inlined_call_operand.vmem [shape: f32[1,128], index: 4, kind: input, shape index: {}]
  %s5 = inlined_call_operand.vmem [shape: f32[16,128], index: 5, kind: output, shape index: {}]
  %s6 = sld [smem:[#allocation0]]
  $region30: #{_lambda_.9} parent=0
    _
  %s8 = ssub.s32 1, %s6
  %s9 = scalar_select 0, %s8, %s6
  // Predicated region
  $region2: #{_lambda_.9} parent=0 // pred_check
    _
  $region3: #{_lambda_.9} parent=0 // pred_check_branch
    %11 = sbr.rel (0) target = $region5
  $region4: #{_lambda_.9} parent=0 // pred_region
    _
  $region5: #{_lambda_.9} parent=0 // pred_fallthru
    _
  // Predicated region
  $region6: #{_lambda_.9} parent=0 // pred_check
    _
  $region7: #{_lambda_.9} parent=0 // pred_check_branch
    %13 = sbr.rel (0) target = $region9
  $region8: #{_lambda_.9} parent=0 // pred_region
    _
  $region9: #{_lambda_.9} parent=0 // pred_fallthru
    _
  // Predicated region
  $region10: #{_lambda_.9} parent=0 // pred_check
    _
  $region11: #{_lambda_.9} parent=0 // pred_check_branch
    %15 = sbr.rel (0) target = $region13
  $region12: #{_lambda_.9} parent=0 // pred_region
    _
  $region13: #{_lambda_.9} parent=0 // pred_fallthru
    _
  // Predicated region
  $region14: #{_lambda_.9} parent=0 // pred_check
    _
  $region15: #{_lambda_.9} parent=0 // pred_check_branch
    %17 = sbr.rel (0) target = $region17
  $region16: #{_lambda_.9} parent=0 // pred_region
    _
  $region17: #{_lambda_.9} parent=0 // pred_fallthru
    _
  // Predicated region
  $region18: #{_lambda_.9} parent=0 // pred_check
    _
  $region19: #{_lambda_.9} parent=0 // pred_check_branch
    %19 = sbr.rel (0) target = $region21
  $region20: #{_lambda_.9} parent=0 // pred_region
    _
  $region21: #{_lambda_.9} parent=0 // pred_fallthru
    _
  %v21 = vld [vmem:[%s0] sm:$0xff]
  %v22 = vld [vmem:[%s0 + $0x8] sm:$0xff]
  %v23 = vld [vmem:[%s0 + $0x10] sm:$0xff]
  %v24 = vld [vmem:[%s0 + $0x18] sm:$0xff]
  %v25 = vld [vmem:[%s0 + $0x20] sm:$0xff]
  %v26 = vld [vmem:[%s0 + $0x28] sm:$0xff]
  %v27 = vld [vmem:[%s0 + $0x30] sm:$0xf]
  %v28 = vld [vmem:[%s0 + $0x34] sm:$0xff]
  %v29 = vld [vmem:[%s0 + $0x3c] sm:$0xff]
  %v30 = vld [vmem:[%s0 + $0x44] sm:$0xff]
  %v31 = vld [vmem:[%s0 + $0x4c] sm:$0xff]
  %v32 = vld [vmem:[%s0 + $0x54] sm:$0xff]
  %v33 = vld [vmem:[%s0 + $0x5c] sm:$0xff]
  %v34 = vld [vmem:[%s0 + $0x64] sm:$0xf]
  %v35 = vld [vmem:[%s1] sm:$0xf]
  %v36 = vld [vmem:[%s1 + $0x4] sm:$0xf]
  %v37 = vld [vmem:[%s1 + $0x8] sm:$0xf]
  %v38 = vld [vmem:[%s1 + $0xc] sm:$0xf]
  %v39 = vld [vmem:[%s1 + $0x10] sm:$0xf]
  %v40 = vld [vmem:[%s1 + $0x14] sm:$0xf]
  %v41 = vld [vmem:[%s1 + $0x18] sm:$0xf]
  %v42 = vld [vmem:[%s1 + $0x1c] sm:$0xf]
  %v43 = vld [vmem:[%s1 + $0x20] sm:$0xf]
  %v44 = vld [vmem:[%s1 + $0x24] sm:$0xf]
  %v45 = vld [vmem:[%s1 + $0x28] sm:$0xf]
  %v46 = vld [vmem:[%s1 + $0x2c] sm:$0xf]
  %v47 = vld [vmem:[%s1 + $0x30] sm:$0xf]
  %v48 = vld [vmem:[%s1 + $0x34] sm:$0xf]
  %v49 = vld [vmem:[%s1 + $0x38] sm:$0xf]
  %v50 = vld [vmem:[%s1 + $0x3c] sm:$0xf]
  %v51 = vld [vmem:[%s1 + $0x40] sm:$0xf]
  %v52 = vld [vmem:[%s1 + $0x44] sm:$0xf]
  %v53 = vld [vmem:[%s1 + $0x48] sm:$0xf]
  %v54 = vld [vmem:[%s1 + $0x4c] sm:$0xf]
  %v55 = vld [vmem:[%s1 + $0x50] sm:$0xf]
  %v56 = vld [vmem:[%s1 + $0x54] sm:$0xf]
  %v57 = vld [vmem:[%s1 + $0x58] sm:$0xf]
  %v58 = vld [vmem:[%s1 + $0x5c] sm:$0xf]
  %v59 = vld [vmem:[%s1 + $0x60] sm:$0xf]
  %v60 = vld [vmem:[%s1 + $0x64] sm:$0xf]
  %v61 = vld [vmem:[%s1 + $0x68] sm:$0xf]
  %v62 = vld [vmem:[%s1 + $0x6c] sm:$0xf]
  %v63 = vld [vmem:[%s1 + $0x70] sm:$0xf]
  %v64 = vld [vmem:[%s1 + $0x74] sm:$0xf]
  %v65 = vld [vmem:[%s1 + $0x78] sm:$0xf]
  %v66 = vld [vmem:[%s1 + $0x7c] sm:$0xf]
  %v67 = vld [vmem:[%s1 + $0x80] sm:$0xf]
  %v68 = vld [vmem:[%s1 + $0x84] sm:$0xf]
  %v69 = vld [vmem:[%s1 + $0x88] sm:$0xf]
  %v70 = vld [vmem:[%s1 + $0x8c] sm:$0xf]
  %v71 = vld [vmem:[%s1 + $0x90] sm:$0xf]
  %v72 = vld [vmem:[%s1 + $0x94] sm:$0xf]
  %v73 = vld [vmem:[%s1 + $0x98] sm:$0xf]
  %v74 = vld [vmem:[%s1 + $0x9c] sm:$0xf]
  %v75 = vld [vmem:[%s1 + $0xa0] sm:$0xf]
  %v76 = vld [vmem:[%s1 + $0xa4] sm:$0xf]
  %v77 = vld [vmem:[%s1 + $0xa8] sm:$0xf]
  %v78 = vld [vmem:[%s1 + $0xac] sm:$0xf]
  %v79 = vld [vmem:[%s1 + $0xb0] sm:$0xf]
  %v80 = vld [vmem:[%s1 + $0xb4] sm:$0xf]
  %v81 = vld [vmem:[%s1 + $0xb8] sm:$0xf]
  %v82 = vld [vmem:[%s1 + $0xbc] sm:$0xf]
  %v83 = vld [vmem:[%s1 + $0xc0] sm:$0xf]
  %v84 = vld [vmem:[%s1 + $0xc4] sm:$0xf]
  %v85 = vld [vmem:[%s1 + $0xc8] sm:$0xf]
  %v86 = vld [vmem:[%s1 + $0xcc] sm:$0xf]
  %v87 = vld [vmem:[%s1 + $0xd0] sm:$0xf]
  %v88 = vld [vmem:[%s1 + $0xd4] sm:$0xf]
  %v89 = vld [vmem:[%s1 + $0xd8] sm:$0xf]
  %v90 = vld [vmem:[%s1 + $0xdc] sm:$0xf]
  %v91 = vld [vmem:[%s1 + $0xe0] sm:$0xf]
  %v92 = vld [vmem:[%s1 + $0xe4] sm:$0xf]
  %v93 = vld [vmem:[%s1 + $0xe8] sm:$0xf]
  %v94 = vld [vmem:[%s1 + $0xec] sm:$0xf]
  %v95 = vld [vmem:[%s1 + $0xf0] sm:$0xf]
  %v96 = vld [vmem:[%s1 + $0xf4] sm:$0xf]
  %v97 = vld [vmem:[%s1 + $0xf8] sm:$0xf]
  %v98 = vld [vmem:[%s1 + $0xfc] sm:$0xf]
  %v99 = vld [vmem:[%s1 + $0x100] sm:$0xf]
  %v100 = vld [vmem:[%s1 + $0x104] sm:$0xf]
  %v101 = vld [vmem:[%s1 + $0x108] sm:$0xf]
  %v102 = vld [vmem:[%s1 + $0x10c] sm:$0xf]
  %v103 = vld [vmem:[%s1 + $0x110] sm:$0xf]
  %v104 = vld [vmem:[%s1 + $0x114] sm:$0xf]
  %v105 = vld [vmem:[%s1 + $0x118] sm:$0xf]
  %v106 = vld [vmem:[%s1 + $0x11c] sm:$0xf]
  %v107 = vld [vmem:[%s1 + $0x120] sm:$0xf]
  %v108 = vld [vmem:[%s1 + $0x124] sm:$0xf]
  %v109 = vld [vmem:[%s1 + $0x128] sm:$0xf]
  %v110 = vld [vmem:[%s1 + $0x12c] sm:$0xf]
  %v111 = vld [vmem:[%s1 + $0x130] sm:$0xf]
  %v112 = vld [vmem:[%s1 + $0x134] sm:$0xf]
  %v113 = vld [vmem:[%s1 + $0x138] sm:$0xf]
  %v114 = vld [vmem:[%s1 + $0x13c] sm:$0xf]
  %v115 = vld [vmem:[%s1 + $0x140] sm:$0xf]
  %v116 = vld [vmem:[%s1 + $0x144] sm:$0xf]
  %v117 = vld [vmem:[%s1 + $0x148] sm:$0xf]
  %v118 = vld [vmem:[%s1 + $0x14c] sm:$0xf]
  %v119 = vld [vmem:[%s1 + $0x150] sm:$0xf]
  %v120 = vld [vmem:[%s1 + $0x154] sm:$0xf]
  %v121 = vld [vmem:[%s1 + $0x158] sm:$0xf]
  %v122 = vld [vmem:[%s1 + $0x15c] sm:$0xf]
  %v123 = vld [vmem:[%s1 + $0x160] sm:$0xf]
  %v124 = vld [vmem:[%s1 + $0x164] sm:$0xf]
  %v125 = vld [vmem:[%s1 + $0x168] sm:$0xf]
  %v126 = vld [vmem:[%s1 + $0x16c] sm:$0xf]
  %v127 = vld [vmem:[%s1 + $0x170] sm:$0xf]
  %v128 = vld [vmem:[%s1 + $0x174] sm:$0xf]
  %v129 = vld [vmem:[%s1 + $0x178] sm:$0xf]
  %v130 = vld [vmem:[%s1 + $0x17c] sm:$0xf]
  %v131 = vld [vmem:[%s1 + $0x180] sm:$0xf]
  %v132 = vld [vmem:[%s1 + $0x184] sm:$0xf]
  %v133 = vld [vmem:[%s1 + $0x188] sm:$0xf]
  %v134 = vld [vmem:[%s1 + $0x18c] sm:$0xf]
  %v135 = vld [vmem:[%s1 + $0x190] sm:$0xf]
  %v136 = vld [vmem:[%s1 + $0x194] sm:$0xf]
  %v137 = vld [vmem:[%s1 + $0x198] sm:$0xf]
  %v138 = vld [vmem:[%s1 + $0x19c] sm:$0xf]
  %v139 = vld [vmem:[%s1 + $0x1a0] sm:$0xf]
  %v140 = vld [vmem:[%s1 + $0x1a4] sm:$0xf]
  %v141 = vld [vmem:[%s1 + $0x1a8] sm:$0xf]
  %v142 = vld [vmem:[%s1 + $0x1ac] sm:$0xf]
  %v143 = vld [vmem:[%s1 + $0x1b0] sm:$0xf]
  %v144 = vld [vmem:[%s1 + $0x1b4] sm:$0xf]
  %v145 = vld [vmem:[%s1 + $0x1b8] sm:$0xf]
  %v146 = vld [vmem:[%s1 + $0x1bc] sm:$0xf]
  %v147 = vld [vmem:[%s1 + $0x1c0] sm:$0xf]
  %v148 = vld [vmem:[%s1 + $0x1c4] sm:$0xf]
  %v149 = vld [vmem:[%s1 + $0x1c8] sm:$0xf]
  %v150 = vld [vmem:[%s1 + $0x1cc] sm:$0xf]
  %v151 = vld [vmem:[%s1 + $0x1d0] sm:$0xf]
  %v152 = vld [vmem:[%s1 + $0x1d4] sm:$0xf]
  %v153 = vld [vmem:[%s1 + $0x1d8] sm:$0xf]
  %v154 = vld [vmem:[%s1 + $0x1dc] sm:$0xf]
  %v155 = vld [vmem:[%s1 + $0x1e0] sm:$0xf]
  %v156 = vld [vmem:[%s1 + $0x1e4] sm:$0xf]
  %v157 = vld [vmem:[%s1 + $0x1e8] sm:$0xf]
  %v158 = vld [vmem:[%s1 + $0x1ec] sm:$0xf]
  %v159 = vld [vmem:[%s1 + $0x1f0] sm:$0xf]
  %v160 = vld [vmem:[%s1 + $0x1f4] sm:$0xf]
  %v161 = vld [vmem:[%s1 + $0x1f8] sm:$0xf]
  %v162 = vld [vmem:[%s1 + $0x1fc] sm:$0xf]
  %v163 = vld [vmem:[%s1 + $0x200] sm:$0xf]
  %v164 = vld [vmem:[%s1 + $0x204] sm:$0xf]
  %v165 = vld [vmem:[%s1 + $0x208] sm:$0xf]
  %v166 = vld [vmem:[%s1 + $0x20c] sm:$0xf]
  %v167 = vld [vmem:[%s1 + $0x210] sm:$0xf]
  %v168 = vld [vmem:[%s1 + $0x214] sm:$0xf]
  %v169 = vld [vmem:[%s1 + $0x218] sm:$0xf]
  %v170 = vld [vmem:[%s1 + $0x21c] sm:$0xf]
  %v171 = vld [vmem:[%s1 + $0x220] sm:$0xf]
  %v172 = vld [vmem:[%s1 + $0x224] sm:$0xf]
  %v173 = vld [vmem:[%s1 + $0x228] sm:$0xf]
  %v174 = vld [vmem:[%s1 + $0x22c] sm:$0xf]
  %v175 = vld [vmem:[%s1 + $0x230] sm:$0xf]
  %v176 = vld [vmem:[%s1 + $0x234] sm:$0xf]
  %v177 = vld [vmem:[%s1 + $0x238] sm:$0xf]
  %v178 = vld [vmem:[%s1 + $0x23c] sm:$0xf]
  %v179 = vld [vmem:[%s1 + $0x240] sm:$0xf]
  %v180 = vld [vmem:[%s1 + $0x244] sm:$0xf]
  %v181 = vld [vmem:[%s1 + $0x248] sm:$0xf]
  %v182 = vld [vmem:[%s1 + $0x24c] sm:$0xf]
  %v183 = vld [vmem:[%s1 + $0x250] sm:$0xf]
  %v184 = vld [vmem:[%s1 + $0x254] sm:$0xf]
  %v185 = vld [vmem:[%s1 + $0x258] sm:$0xf]
  %v186 = vld [vmem:[%s1 + $0x25c] sm:$0xf]
  %v187 = vld [vmem:[%s1 + $0x260] sm:$0xf]
  %v188 = vld [vmem:[%s1 + $0x264] sm:$0xf]
  %v189 = vld [vmem:[%s1 + $0x268] sm:$0xf]
  %v190 = vld [vmem:[%s1 + $0x26c] sm:$0xf]
  %v191 = vld [vmem:[%s1 + $0x270] sm:$0xf]
  %v192 = vld [vmem:[%s1 + $0x274] sm:$0xf]
  %v193 = vld [vmem:[%s1 + $0x278] sm:$0xf]
  %v194 = vld [vmem:[%s1 + $0x27c] sm:$0xf]
  %v195 = vld [vmem:[%s1 + $0x280] sm:$0xf]
  %v196 = vld [vmem:[%s1 + $0x284] sm:$0xf]
  %v197 = vld [vmem:[%s1 + $0x288] sm:$0xf]
  %v198 = vld [vmem:[%s1 + $0x28c] sm:$0xf]
  %v199 = vld [vmem:[%s1 + $0x290] sm:$0xf]
  %v200 = vld [vmem:[%s1 + $0x294] sm:$0xf]
  %v201 = vld [vmem:[%s1 + $0x298] sm:$0xf]
  %v202 = vld [vmem:[%s1 + $0x29c] sm:$0xf]
  %v203 = vld [vmem:[%s1 + $0x2a0] sm:$0xf]
  %v204 = vld [vmem:[%s1 + $0x2a4] sm:$0xf]
  %v205 = vld [vmem:[%s1 + $0x2a8] sm:$0xf]
  %v206 = vld [vmem:[%s1 + $0x2ac] sm:$0xf]
  %v207 = vld [vmem:[%s1 + $0x2b0] sm:$0xf]
  %v208 = vld [vmem:[%s1 + $0x2b4] sm:$0xf]
  %v209 = vld [vmem:[%s1 + $0x2b8] sm:$0xf]
  %v210 = vld [vmem:[%s1 + $0x2bc] sm:$0xf]
  %v211 = vld [vmem:[%s1 + $0x2c0] sm:$0xf]
  %v212 = vld [vmem:[%s1 + $0x2c4] sm:$0xf]
  %v213 = vld [vmem:[%s1 + $0x2c8] sm:$0xf]
  %v214 = vld [vmem:[%s1 + $0x2cc] sm:$0xf]
  %v215 = vld [vmem:[%s1 + $0x2d0] sm:$0xf]
  %v216 = vld [vmem:[%s1 + $0x2d4] sm:$0xf]
  %v217 = vld [vmem:[%s1 + $0x2d8] sm:$0xf]
  %v218 = vld [vmem:[%s1 + $0x2dc] sm:$0xf]
  %v219 = vld [vmem:[%s1 + $0x2e0] sm:$0xf]
  %v220 = vld [vmem:[%s1 + $0x2e4] sm:$0xf]
  %v221 = vld [vmem:[%s1 + $0x2e8] sm:$0xf]
  %v222 = vld [vmem:[%s1 + $0x2ec] sm:$0xf]
  %v223 = vld [vmem:[%s1 + $0x2f0] sm:$0xf]
  %v224 = vld [vmem:[%s1 + $0x2f4] sm:$0xf]
  %v225 = vld [vmem:[%s1 + $0x2f8] sm:$0xf]
  %v226 = vld [vmem:[%s1 + $0x2fc] sm:$0xf]
  %v227 = vld [vmem:[%s1 + $0x300] sm:$0xf]
  %v228 = vld [vmem:[%s1 + $0x304] sm:$0xf]
  %v229 = vld [vmem:[%s1 + $0x308] sm:$0xf]
  %v230 = vld [vmem:[%s1 + $0x30c] sm:$0xf]
  %v231 = vld [vmem:[%s2] sm:$0x1]
  %v233 = vlaneseq
  %v234 = vshrl.u32 %v233, 7
  %v235 = vsub.s32 0, %v234
  %v236 = vrot.slane %v231, %v235
  %v252 = vunpack.c.l.b16 %v21
  %v253 = vunpack.c.h.b16 %v21
  %v254 = vunpack.c.l.b16 %v22
  %v255 = vunpack.c.h.b16 %v22
  %v256 = vunpack.c.l.b16 %v23
  %v257 = vunpack.c.h.b16 %v23
  %v258 = vunpack.c.l.b16 %v24
  %v259 = vunpack.c.h.b16 %v24
  %v260 = vunpack.c.l.b16 %v25
  %v261 = vunpack.c.h.b16 %v25
  %v262 = vunpack.c.l.b16 %v26
  %v263 = vunpack.c.h.b16 %v26
  %v264 = vunpack.c.l.b16 %v27
  %v265 = vunpack.c.l.b16 %v28
  %v266 = vunpack.c.h.b16 %v28
  %v267 = vunpack.c.l.b16 %v29
  %v268 = vunpack.c.h.b16 %v29
  %v269 = vunpack.c.l.b16 %v30
  %v270 = vunpack.c.h.b16 %v30
  %v271 = vunpack.c.l.b16 %v31
  %v272 = vunpack.c.h.b16 %v31
  %v273 = vunpack.c.l.b16 %v32
  %v274 = vunpack.c.h.b16 %v32
  %v275 = vunpack.c.l.b16 %v33
  %v276 = vunpack.c.h.b16 %v33
  %v277 = vunpack.c.l.b16 %v34
  %v278 = vpack.c.b16 %v265, %v252
  %v279 = vpack.c.b16 %v266, %v253
  %v280 = vpack.c.b16 %v267, %v254
  %v281 = vpack.c.b16 %v268, %v255
  %v282 = vpack.c.b16 %v269, %v256
  %v283 = vpack.c.b16 %v270, %v257
  %v284 = vpack.c.b16 %v271, %v258
  %v285 = vpack.c.b16 %v272, %v259
  %v286 = vpack.c.b16 %v273, %v260
  %v287 = vpack.c.b16 %v274, %v261
  %v288 = vpack.c.b16 %v275, %v262
  %v289 = vpack.c.b16 %v276, %v263
  %v290 = vpack.c.b16 %v277, %v264
  %v499 = vunpack.c.l.b16 %v35
  %v500 = vunpack.c.l.b16 %v36
  %v501 = vunpack.c.l.b16 %v37
  %v502 = vunpack.c.l.b16 %v38
  %v503 = vunpack.c.l.b16 %v39
  %v504 = vunpack.c.l.b16 %v40
  %v505 = vunpack.c.l.b16 %v41
  %v506 = vunpack.c.l.b16 %v42
  %v507 = vunpack.c.l.b16 %v43
  %v508 = vunpack.c.l.b16 %v44
  %v509 = vunpack.c.l.b16 %v45
  %v510 = vunpack.c.l.b16 %v46
  %v511 = vunpack.c.l.b16 %v47
  %v512 = vunpack.c.l.b16 %v48
  %v513 = vunpack.c.l.b16 %v49
  %v514 = vunpack.c.l.b16 %v50
  %v515 = vunpack.c.l.b16 %v51
  %v516 = vunpack.c.l.b16 %v52
  %v517 = vunpack.c.l.b16 %v53
  %v518 = vunpack.c.l.b16 %v54
  %v519 = vunpack.c.l.b16 %v55
  %v520 = vunpack.c.l.b16 %v56
  %v521 = vunpack.c.l.b16 %v57
  %v522 = vunpack.c.l.b16 %v58
  %v523 = vunpack.c.l.b16 %v59
  %v524 = vunpack.c.l.b16 %v60
  %v525 = vunpack.c.l.b16 %v61
  %v526 = vunpack.c.l.b16 %v62
  %v527 = vunpack.c.l.b16 %v63
  %v528 = vunpack.c.l.b16 %v64
  %v529 = vunpack.c.l.b16 %v65
  %v530 = vunpack.c.l.b16 %v66
  %v531 = vunpack.c.l.b16 %v67
  %v532 = vunpack.c.l.b16 %v68
  %v533 = vunpack.c.l.b16 %v69
  %v534 = vunpack.c.l.b16 %v70
  %v535 = vunpack.c.l.b16 %v71
  %v536 = vunpack.c.l.b16 %v72
  %v537 = vunpack.c.l.b16 %v73
  %v538 = vunpack.c.l.b16 %v74
  %v539 = vunpack.c.l.b16 %v75
  %v540 = vunpack.c.l.b16 %v76
  %v541 = vunpack.c.l.b16 %v77
  %v542 = vunpack.c.l.b16 %v78
  %v543 = vunpack.c.l.b16 %v79
  %v544 = vunpack.c.l.b16 %v80
  %v545 = vunpack.c.l.b16 %v81
  %v546 = vunpack.c.l.b16 %v82
  %v547 = vunpack.c.l.b16 %v83
  %v548 = vunpack.c.l.b16 %v84
  %v549 = vunpack.c.l.b16 %v85
  %v550 = vunpack.c.l.b16 %v86
  %v551 = vunpack.c.l.b16 %v87
  %v552 = vunpack.c.l.b16 %v88
  %v553 = vunpack.c.l.b16 %v89
  %v554 = vunpack.c.l.b16 %v90
  %v555 = vunpack.c.l.b16 %v91
  %v556 = vunpack.c.l.b16 %v92
  %v557 = vunpack.c.l.b16 %v93
  %v558 = vunpack.c.l.b16 %v94
  %v559 = vunpack.c.l.b16 %v95
  %v560 = vunpack.c.l.b16 %v96
  %v561 = vunpack.c.l.b16 %v97
  %v562 = vunpack.c.l.b16 %v98
  %v563 = vunpack.c.l.b16 %v99
  %v564 = vunpack.c.l.b16 %v100
  %v565 = vunpack.c.l.b16 %v101
  %v566 = vunpack.c.l.b16 %v102
  %v567 = vunpack.c.l.b16 %v103
  %v568 = vunpack.c.l.b16 %v104
  %v569 = vunpack.c.l.b16 %v105
  %v570 = vunpack.c.l.b16 %v106
  %v571 = vunpack.c.l.b16 %v107
  %v572 = vunpack.c.l.b16 %v108
  %v573 = vunpack.c.l.b16 %v109
  %v574 = vunpack.c.l.b16 %v110
  %v575 = vunpack.c.l.b16 %v111
  %v576 = vunpack.c.l.b16 %v112
  %v577 = vunpack.c.l.b16 %v113
  %v578 = vunpack.c.l.b16 %v114
  %v579 = vunpack.c.l.b16 %v115
  %v580 = vunpack.c.l.b16 %v116
  %v581 = vunpack.c.l.b16 %v117
  %v582 = vunpack.c.l.b16 %v118
  %v583 = vunpack.c.l.b16 %v119
  %v584 = vunpack.c.l.b16 %v120
  %v585 = vunpack.c.l.b16 %v121
  %v586 = vunpack.c.l.b16 %v122
  %v587 = vunpack.c.l.b16 %v123
  %v588 = vunpack.c.l.b16 %v124
  %v589 = vunpack.c.l.b16 %v125
  %v590 = vunpack.c.l.b16 %v126
  %v591 = vunpack.c.l.b16 %v127
  %v592 = vunpack.c.l.b16 %v128
  %v593 = vunpack.c.l.b16 %v129
  %v594 = vunpack.c.l.b16 %v130
  %v595 = vunpack.c.l.b16 %v131
  %v596 = vunpack.c.l.b16 %v132
  %v597 = vunpack.c.l.b16 %v133
  %v598 = vunpack.c.l.b16 %v134
  %v599 = vunpack.c.l.b16 %v135
  %v600 = vunpack.c.l.b16 %v136
  %v601 = vunpack.c.l.b16 %v137
  %v602 = vunpack.c.l.b16 %v138
  %v603 = vunpack.c.l.b16 %v139
  %v604 = vunpack.c.l.b16 %v140
  %v605 = vunpack.c.l.b16 %v141
  %v606 = vunpack.c.l.b16 %v142
  %v607 = vunpack.c.l.b16 %v143
  %v608 = vunpack.c.l.b16 %v144
  %v609 = vunpack.c.l.b16 %v145
  %v610 = vunpack.c.l.b16 %v146
  %v611 = vunpack.c.l.b16 %v147
  %v612 = vunpack.c.l.b16 %v148
  %v613 = vunpack.c.l.b16 %v149
  %v614 = vunpack.c.l.b16 %v150
  %v615 = vunpack.c.l.b16 %v151
  %v616 = vunpack.c.l.b16 %v152
  %v617 = vunpack.c.l.b16 %v153
  %v618 = vunpack.c.l.b16 %v154
  %v619 = vunpack.c.l.b16 %v155
  %v620 = vunpack.c.l.b16 %v156
  %v621 = vunpack.c.l.b16 %v157
  %v622 = vunpack.c.l.b16 %v158
  %v623 = vunpack.c.l.b16 %v159
  %v624 = vunpack.c.l.b16 %v160
  %v625 = vunpack.c.l.b16 %v161
  %v626 = vunpack.c.l.b16 %v162
  %v627 = vunpack.c.l.b16 %v163
  %v628 = vunpack.c.l.b16 %v164
  %v629 = vunpack.c.l.b16 %v165
  %v630 = vunpack.c.l.b16 %v166
  %v631 = vunpack.c.l.b16 %v167
  %v632 = vunpack.c.l.b16 %v168
  %v633 = vunpack.c.l.b16 %v169
  %v634 = vunpack.c.l.b16 %v170
  %v635 = vunpack.c.l.b16 %v171
  %v636 = vunpack.c.l.b16 %v172
  %v637 = vunpack.c.l.b16 %v173
  %v638 = vunpack.c.l.b16 %v174
  %v639 = vunpack.c.l.b16 %v175
  %v640 = vunpack.c.l.b16 %v176
  %v641 = vunpack.c.l.b16 %v177
  %v642 = vunpack.c.l.b16 %v178
  %v643 = vunpack.c.l.b16 %v179
  %v644 = vunpack.c.l.b16 %v180
  %v645 = vunpack.c.l.b16 %v181
  %v646 = vunpack.c.l.b16 %v182
  %v647 = vunpack.c.l.b16 %v183
  %v648 = vunpack.c.l.b16 %v184
  %v649 = vunpack.c.l.b16 %v185
  %v650 = vunpack.c.l.b16 %v186
  %v651 = vunpack.c.l.b16 %v187
  %v652 = vunpack.c.l.b16 %v188
  %v653 = vunpack.c.l.b16 %v189
  %v654 = vunpack.c.l.b16 %v190
  %v655 = vunpack.c.l.b16 %v191
  %v656 = vunpack.c.l.b16 %v192
  %v657 = vunpack.c.l.b16 %v193
  %v658 = vunpack.c.l.b16 %v194
  %v659 = vunpack.c.l.b16 %v195
  %v660 = vunpack.c.l.b16 %v196
  %v661 = vunpack.c.l.b16 %v197
  %v662 = vunpack.c.l.b16 %v198
  %v663 = vunpack.c.l.b16 %v199
  %v664 = vunpack.c.l.b16 %v200
  %v665 = vunpack.c.l.b16 %v201
  %v666 = vunpack.c.l.b16 %v202
  %v667 = vunpack.c.l.b16 %v203
  %v668 = vunpack.c.l.b16 %v204
  %v669 = vunpack.c.l.b16 %v205
  %v670 = vunpack.c.l.b16 %v206
  %v671 = vunpack.c.l.b16 %v207
  %v672 = vunpack.c.l.b16 %v208
  %v673 = vunpack.c.l.b16 %v209
  %v674 = vunpack.c.l.b16 %v210
  %v675 = vunpack.c.l.b16 %v211
  %v676 = vunpack.c.l.b16 %v212
  %v677 = vunpack.c.l.b16 %v213
  %v678 = vunpack.c.l.b16 %v214
  %v679 = vunpack.c.l.b16 %v215
  %v680 = vunpack.c.l.b16 %v216
  %v681 = vunpack.c.l.b16 %v217
  %v682 = vunpack.c.l.b16 %v218
  %v683 = vunpack.c.l.b16 %v219
  %v684 = vunpack.c.l.b16 %v220
  %v685 = vunpack.c.l.b16 %v221
  %v686 = vunpack.c.l.b16 %v222
  %v687 = vunpack.c.l.b16 %v223
  %v688 = vunpack.c.l.b16 %v224
  %v689 = vunpack.c.l.b16 %v225
  %v690 = vunpack.c.l.b16 %v226
  %v691 = vunpack.c.l.b16 %v227
  %v692 = vunpack.c.l.b16 %v228
  %v693 = vunpack.c.l.b16 %v229
  %v694 = vunpack.c.l.b16 %v230
  %v695 = vpack.c.b16 %v500, %v499
  %v696 = vpack.c.b16 %v502, %v501
  %v697 = vpack.c.b16 %v504, %v503
  %v698 = vpack.c.b16 %v506, %v505
  %v699 = vpack.c.b16 %v508, %v507
  %v700 = vpack.c.b16 %v510, %v509
  %v701 = vpack.c.b16 %v512, %v511
  %v702 = vpack.c.b16 %v514, %v513
  %v703 = vpack.c.b16 %v516, %v515
  %v704 = vpack.c.b16 %v518, %v517
  %v705 = vpack.c.b16 %v520, %v519
  %v706 = vpack.c.b16 %v522, %v521
  %v707 = vpack.c.b16 %v524, %v523
  %v708 = vpack.c.b16 %v526, %v525
  %v709 = vpack.c.b16 %v528, %v527
  %v710 = vpack.c.b16 %v530, %v529
  %v711 = vpack.c.b16 %v532, %v531
  %v712 = vpack.c.b16 %v534, %v533
  %v713 = vpack.c.b16 %v536, %v535
  %v714 = vpack.c.b16 %v538, %v537
  %v715 = vpack.c.b16 %v540, %v539
  %v716 = vpack.c.b16 %v542, %v541
  %v717 = vpack.c.b16 %v544, %v543
  %v718 = vpack.c.b16 %v546, %v545
  %v719 = vpack.c.b16 %v548, %v547
  %v720 = vpack.c.b16 %v550, %v549
  %v721 = vpack.c.b16 %v552, %v551
  %v722 = vpack.c.b16 %v554, %v553
  %v723 = vpack.c.b16 %v556, %v555
  %v724 = vpack.c.b16 %v558, %v557
  %v725 = vpack.c.b16 %v560, %v559
  %v726 = vpack.c.b16 %v562, %v561
  %v727 = vpack.c.b16 %v564, %v563
  %v728 = vpack.c.b16 %v566, %v565
  %v729 = vpack.c.b16 %v568, %v567
  %v730 = vpack.c.b16 %v570, %v569
  %v731 = vpack.c.b16 %v572, %v571
  %v732 = vpack.c.b16 %v574, %v573
  %v733 = vpack.c.b16 %v576, %v575
  %v734 = vpack.c.b16 %v578, %v577
  %v735 = vpack.c.b16 %v580, %v579
  %v736 = vpack.c.b16 %v582, %v581
  %v737 = vpack.c.b16 %v584, %v583
  %v738 = vpack.c.b16 %v586, %v585
  %v739 = vpack.c.b16 %v588, %v587
  %v740 = vpack.c.b16 %v590, %v589
  %v741 = vpack.c.b16 %v592, %v591
  %v742 = vpack.c.b16 %v594, %v593
  %v743 = vpack.c.b16 %v596, %v595
  %v744 = vpack.c.b16 %v598, %v597
  %v745 = vpack.c.b16 %v600, %v599
  %v746 = vpack.c.b16 %v602, %v601
  %v747 = vpack.c.b16 %v604, %v603
  %v748 = vpack.c.b16 %v606, %v605
  %v749 = vpack.c.b16 %v608, %v607
  %v750 = vpack.c.b16 %v610, %v609
  %v751 = vpack.c.b16 %v612, %v611
  %v752 = vpack.c.b16 %v614, %v613
  %v753 = vpack.c.b16 %v616, %v615
  %v754 = vpack.c.b16 %v618, %v617
  %v755 = vpack.c.b16 %v620, %v619
  %v756 = vpack.c.b16 %v622, %v621
  %v757 = vpack.c.b16 %v624, %v623
  %v758 = vpack.c.b16 %v626, %v625
  %v759 = vpack.c.b16 %v628, %v627
  %v760 = vpack.c.b16 %v630, %v629
  %v761 = vpack.c.b16 %v632, %v631
  %v762 = vpack.c.b16 %v634, %v633
  %v763 = vpack.c.b16 %v636, %v635
  %v764 = vpack.c.b16 %v638, %v637
  %v765 = vpack.c.b16 %v640, %v639
  %v766 = vpack.c.b16 %v642, %v641
  %v767 = vpack.c.b16 %v644, %v643
  %v768 = vpack.c.b16 %v646, %v645
  %v769 = vpack.c.b16 %v648, %v647
  %v770 = vpack.c.b16 %v650, %v649
  %v771 = vpack.c.b16 %v652, %v651
  %v772 = vpack.c.b16 %v654, %v653
  %v773 = vpack.c.b16 %v656, %v655
  %v774 = vpack.c.b16 %v658, %v657
  %v775 = vpack.c.b16 %v660, %v659
  %v776 = vpack.c.b16 %v662, %v661
  %v777 = vpack.c.b16 %v664, %v663
  %v778 = vpack.c.b16 %v666, %v665
  %v779 = vpack.c.b16 %v668, %v667
  %v780 = vpack.c.b16 %v670, %v669
  %v781 = vpack.c.b16 %v672, %v671
  %v782 = vpack.c.b16 %v674, %v673
  %v783 = vpack.c.b16 %v676, %v675
  %v784 = vpack.c.b16 %v678, %v677
  %v785 = vpack.c.b16 %v680, %v679
  %v786 = vpack.c.b16 %v682, %v681
  %v787 = vpack.c.b16 %v684, %v683
  %v788 = vpack.c.b16 %v686, %v685
  %v789 = vpack.c.b16 %v688, %v687
  %v790 = vpack.c.b16 %v690, %v689
  %v791 = vpack.c.b16 %v692, %v691
  %v792 = vpack.c.b16 %v694, %v693
  %vm891 = vcmask 261120
  %v893 = vsel %vm891, %v290, 0
  %895 = vmatprep.subr.bf16.mxu0 0
  %896 = vmatpush1.bf16.msra.mxu0 %v695
  %897 = vmatprep.subr.bf16.mxu0 0
  %898 = vmatpush1.bf16.msra.mxu0 %v696
  %899 = vmatprep.subr.bf16.mxu0 0
  %900 = vmatpush1.bf16.msra.mxu0 %v697
  %901 = vmatprep.subr.bf16.mxu0 0
  %902 = vmatpush1.bf16.msra.mxu0 %v698
  %903 = vmatprep.subr.bf16.mxu0 0
  %904 = vmatpush1.bf16.msra.mxu0 %v699
  %905 = vmatprep.subr.bf16.mxu0 0
  %906 = vmatpush1.bf16.msra.mxu0 %v700
  %907 = vmatprep.subr.bf16.mxu0 0
  %908 = vmatpush1.bf16.msra.mxu0 %v701
  %909 = vmatprep.subr.bf16.mxu0 0
  %910 = vmatpush1.bf16.msra.mxu0 %v702
  %911 = vmatprep.subr.bf16.mxu0 0
  %912 = vmatpush1.bf16.msra.mxu0 %v703
  %913 = vmatprep.subr.bf16.mxu0 0
  %914 = vmatpush1.bf16.msra.mxu0 %v704
  %915 = vmatprep.subr.bf16.mxu0 0
  %916 = vmatpush1.bf16.msra.mxu0 %v705
  %917 = vmatprep.subr.bf16.mxu0 0
  %918 = vmatpush1.bf16.msra.mxu0 %v706
  %919 = vmatprep.subr.bf16.mxu0 0
  %920 = vmatpush1.bf16.msra.mxu0 %v707
  %921 = vmatprep.subr.bf16.mxu0 0
  %922 = vmatpush1.bf16.msra.mxu0 %v708
  %923 = vmatprep.subr.bf16.mxu0 0
  %924 = vmatpush1.bf16.msra.mxu0 %v709
  %925 = vmatprep.subr.bf16.mxu0 0
  %926 = vmatpush1.bf16.msra.mxu0 %v710
  %927 = vmatprep.mubr.bf16.mxu0 %v279
  %928 = vmatmul.mubr.bf16.gmra.mrb[0].mxu0 %v278
  %v929 = vpop.f32.mrb[0].mxu0
  %v930 = vadd.f32 %v236, %v929
  %v931 = vpop.f32.mrb[0].mxu0
  %v932 = vpop.f32.mrb[0].mxu0
  %v933 = vadd.f32 %v236, %v932
  %v934 = vpop.f32.mrb[0].mxu0
  %935 = vdwg.mxu0
  %936 = vmatprep.subr.bf16.mxu0 0
  %937 = vmatpush1.bf16.msra.mxu0 %v711
  %938 = vmatprep.subr.bf16.mxu0 0
  %939 = vmatpush1.bf16.msra.mxu0 %v712
  %940 = vmatprep.subr.bf16.mxu0 0
  %941 = vmatpush1.bf16.msra.mxu0 %v713
  %942 = vmatprep.subr.bf16.mxu0 0
  %943 = vmatpush1.bf16.msra.mxu0 %v714
  %944 = vmatprep.subr.bf16.mxu0 0
  %945 = vmatpush1.bf16.msra.mxu0 %v715
  %946 = vmatprep.subr.bf16.mxu0 0
  %947 = vmatpush1.bf16.msra.mxu0 %v716
  %948 = vmatprep.subr.bf16.mxu0 0
  %949 = vmatpush1.bf16.msra.mxu0 %v717
  %950 = vmatprep.subr.bf16.mxu0 0
  %951 = vmatpush1.bf16.msra.mxu0 %v718
  %952 = vmatprep.subr.bf16.mxu0 0
  %953 = vmatpush1.bf16.msra.mxu0 %v719
  %954 = vmatprep.subr.bf16.mxu0 0
  %955 = vmatpush1.bf16.msra.mxu0 %v720
  %956 = vmatprep.subr.bf16.mxu0 0
  %957 = vmatpush1.bf16.msra.mxu0 %v721
  %958 = vmatprep.subr.bf16.mxu0 0
  %959 = vmatpush1.bf16.msra.mxu0 %v722
  %960 = vmatprep.subr.bf16.mxu0 0
  %961 = vmatpush1.bf16.msra.mxu0 %v723
  %962 = vmatprep.subr.bf16.mxu0 0
  %963 = vmatpush1.bf16.msra.mxu0 %v724
  %964 = vmatprep.subr.bf16.mxu0 0
  %965 = vmatpush1.bf16.msra.mxu0 %v725
  %966 = vmatprep.subr.bf16.mxu0 0
  %967 = vmatpush1.bf16.msra.mxu0 %v726
  %968 = vmatprep.mubr.bf16.mxu0 %v281
  %969 = vmatmul.mubr.bf16.gmra.mrb[0].mxu0 %v280
  %v970 = vpop.f32.mrb[0].mxu0
  %v971 = vadd.f32 %v930, %v970
  %v972 = vpop.f32.mrb[0].mxu0
  %v973 = vpop.f32.mrb[0].mxu0
  %v974 = vadd.f32 %v933, %v973
  %v975 = vpop.f32.mrb[0].mxu0
  %976 = vdwg.mxu0
  %977 = vmatprep.subr.bf16.mxu0 0
  %978 = vmatpush1.bf16.msra.mxu0 %v727
  %979 = vmatprep.subr.bf16.mxu0 0
  %980 = vmatpush1.bf16.msra.mxu0 %v728
  %981 = vmatprep.subr.bf16.mxu0 0
  %982 = vmatpush1.bf16.msra.mxu0 %v729
  %983 = vmatprep.subr.bf16.mxu0 0
  %984 = vmatpush1.bf16.msra.mxu0 %v730
  %985 = vmatprep.subr.bf16.mxu0 0
  %986 = vmatpush1.bf16.msra.mxu0 %v731
  %987 = vmatprep.subr.bf16.mxu0 0
  %988 = vmatpush1.bf16.msra.mxu0 %v732
  %989 = vmatprep.subr.bf16.mxu0 0
  %990 = vmatpush1.bf16.msra.mxu0 %v733
  %991 = vmatprep.subr.bf16.mxu0 0
  %992 = vmatpush1.bf16.msra.mxu0 %v734
  %993 = vmatprep.subr.bf16.mxu0 0
  %994 = vmatpush1.bf16.msra.mxu0 %v735
  %995 = vmatprep.subr.bf16.mxu0 0
  %996 = vmatpush1.bf16.msra.mxu0 %v736
  %997 = vmatprep.subr.bf16.mxu0 0
  %998 = vmatpush1.bf16.msra.mxu0 %v737
  %999 = vmatprep.subr.bf16.mxu0 0
  %1000 = vmatpush1.bf16.msra.mxu0 %v738
  %1001 = vmatprep.subr.bf16.mxu0 0
  %1002 = vmatpush1.bf16.msra.mxu0 %v739
  %1003 = vmatprep.subr.bf16.mxu0 0
  %1004 = vmatpush1.bf16.msra.mxu0 %v740
  %1005 = vmatprep.subr.bf16.mxu0 0
  %1006 = vmatpush1.bf16.msra.mxu0 %v741
  %1007 = vmatprep.subr.bf16.mxu0 0
  %1008 = vmatpush1.bf16.msra.mxu0 %v742
  %1009 = vmatprep.mubr.bf16.mxu0 %v283
  %1010 = vmatmul.mubr.bf16.gmra.mrb[0].mxu0 %v282
  %v1011 = vpop.f32.mrb[0].mxu0
  %v1012 = vadd.f32 %v971, %v1011
  %v1013 = vpop.f32.mrb[0].mxu0
  %v1014 = vpop.f32.mrb[0].mxu0
  %v1015 = vadd.f32 %v974, %v1014
  %v1016 = vpop.f32.mrb[0].mxu0
  %1017 = vdwg.mxu0
  %1018 = vmatprep.subr.bf16.mxu0 0
  %1019 = vmatpush1.bf16.msra.mxu0 %v743
  %1020 = vmatprep.subr.bf16.mxu0 0
  %1021 = vmatpush1.bf16.msra.mxu0 %v744
  %1022 = vmatprep.subr.bf16.mxu0 0
  %1023 = vmatpush1.bf16.msra.mxu0 %v745
  %1024 = vmatprep.subr.bf16.mxu0 0
  %1025 = vmatpush1.bf16.msra.mxu0 %v746
  %1026 = vmatprep.subr.bf16.mxu0 0
  %1027 = vmatpush1.bf16.msra.mxu0 %v747
  %1028 = vmatprep.subr.bf16.mxu0 0
  %1029 = vmatpush1.bf16.msra.mxu0 %v748
  %1030 = vmatprep.subr.bf16.mxu0 0
  %1031 = vmatpush1.bf16.msra.mxu0 %v749
  %1032 = vmatprep.subr.bf16.mxu0 0
  %1033 = vmatpush1.bf16.msra.mxu0 %v750
  %1034 = vmatprep.subr.bf16.mxu0 0
  %1035 = vmatpush1.bf16.msra.mxu0 %v751
  %1036 = vmatprep.subr.bf16.mxu0 0
  %1037 = vmatpush1.bf16.msra.mxu0 %v752
  %1038 = vmatprep.subr.bf16.mxu0 0
  %1039 = vmatpush1.bf16.msra.mxu0 %v753
  %1040 = vmatprep.subr.bf16.mxu0 0
  %1041 = vmatpush1.bf16.msra.mxu0 %v754
  %1042 = vmatprep.subr.bf16.mxu0 0
  %1043 = vmatpush1.bf16.msra.mxu0 %v755
  %1044 = vmatprep.subr.bf16.mxu0 0
  %1045 = vmatpush1.bf16.msra.mxu0 %v756
  %1046 = vmatprep.subr.bf16.mxu0 0
  %1047 = vmatpush1.bf16.msra.mxu0 %v757
  %1048 = vmatprep.subr.bf16.mxu0 0
  %1049 = vmatpush1.bf16.msra.mxu0 %v758
  %1050 = vmatprep.mubr.bf16.mxu0 %v285
  %1051 = vmatmul.mubr.bf16.gmra.mrb[0].mxu0 %v284
  %v1052 = vpop.f32.mrb[0].mxu0
  %v1053 = vadd.f32 %v1012, %v1052
  %v1054 = vpop.f32.mrb[0].mxu0
  %v1055 = vpop.f32.mrb[0].mxu0
  %v1056 = vadd.f32 %v1015, %v1055
  %v1057 = vpop.f32.mrb[0].mxu0
  %1058 = vdwg.mxu0
  %1059 = vmatprep.subr.bf16.mxu0 0
  %1060 = vmatpush1.bf16.msra.mxu0 %v759
  %1061 = vmatprep.subr.bf16.mxu0 0
  %1062 = vmatpush1.bf16.msra.mxu0 %v760
  %1063 = vmatprep.subr.bf16.mxu0 0
  %1064 = vmatpush1.bf16.msra.mxu0 %v761
  %1065 = vmatprep.subr.bf16.mxu0 0
  %1066 = vmatpush1.bf16.msra.mxu0 %v762
  %1067 = vmatprep.subr.bf16.mxu0 0
  %1068 = vmatpush1.bf16.msra.mxu0 %v763
  %1069 = vmatprep.subr.bf16.mxu0 0
  %1070 = vmatpush1.bf16.msra.mxu0 %v764
  %1071 = vmatprep.subr.bf16.mxu0 0
  %1072 = vmatpush1.bf16.msra.mxu0 %v765
  %1073 = vmatprep.subr.bf16.mxu0 0
  %1074 = vmatpush1.bf16.msra.mxu0 %v766
  %1075 = vmatprep.subr.bf16.mxu0 0
  %1076 = vmatpush1.bf16.msra.mxu0 %v767
  %1077 = vmatprep.subr.bf16.mxu0 0
  %1078 = vmatpush1.bf16.msra.mxu0 %v768
  %1079 = vmatprep.subr.bf16.mxu0 0
  %1080 = vmatpush1.bf16.msra.mxu0 %v769
  %1081 = vmatprep.subr.bf16.mxu0 0
  %1082 = vmatpush1.bf16.msra.mxu0 %v770
  %1083 = vmatprep.subr.bf16.mxu0 0
  %1084 = vmatpush1.bf16.msra.mxu0 %v771
  %1085 = vmatprep.subr.bf16.mxu0 0
  %1086 = vmatpush1.bf16.msra.mxu0 %v772
  %1087 = vmatprep.subr.bf16.mxu0 0
  %1088 = vmatpush1.bf16.msra.mxu0 %v773
  %1089 = vmatprep.subr.bf16.mxu0 0
  %1090 = vmatpush1.bf16.msra.mxu0 %v774
  %1091 = vmatprep.mubr.bf16.mxu0 %v287
  %1092 = vmatmul.mubr.bf16.gmra.mrb[0].mxu0 %v286
  %v1093 = vpop.f32.mrb[0].mxu0
  %v1094 = vadd.f32 %v1053, %v1093
  %v1095 = vpop.f32.mrb[0].mxu0
  %v1096 = vpop.f32.mrb[0].mxu0
  %v1097 = vadd.f32 %v1056, %v1096
  %v1098 = vpop.f32.mrb[0].mxu0
  %1099 = vdwg.mxu0
  %1100 = vmatprep.subr.bf16.mxu0 0
  %1101 = vmatpush1.bf16.msra.mxu0 %v775
  %1102 = vmatprep.subr.bf16.mxu0 0
  %1103 = vmatpush1.bf16.msra.mxu0 %v776
  %1104 = vmatprep.subr.bf16.mxu0 0
  %1105 = vmatpush1.bf16.msra.mxu0 %v777
  %1106 = vmatprep.subr.bf16.mxu0 0
  %1107 = vmatpush1.bf16.msra.mxu0 %v778
  %1108 = vmatprep.subr.bf16.mxu0 0
  %1109 = vmatpush1.bf16.msra.mxu0 %v779
  %1110 = vmatprep.subr.bf16.mxu0 0
  %1111 = vmatpush1.bf16.msra.mxu0 %v780
  %1112 = vmatprep.subr.bf16.mxu0 0
  %1113 = vmatpush1.bf16.msra.mxu0 %v781
  %1114 = vmatprep.subr.bf16.mxu0 0
  %1115 = vmatpush1.bf16.msra.mxu0 %v782
  %1116 = vmatprep.subr.bf16.mxu0 0
  %1117 = vmatpush1.bf16.msra.mxu0 %v783
  %1118 = vmatprep.subr.bf16.mxu0 0
  %1119 = vmatpush1.bf16.msra.mxu0 %v784
  %1120 = vmatprep.subr.bf16.mxu0 0
  %1121 = vmatpush1.bf16.msra.mxu0 %v785
  %1122 = vmatprep.subr.bf16.mxu0 0
  %1123 = vmatpush1.bf16.msra.mxu0 %v786
  %1124 = vmatprep.subr.bf16.mxu0 0
  %1125 = vmatpush1.bf16.msra.mxu0 %v787
  %1126 = vmatprep.subr.bf16.mxu0 0
  %1127 = vmatpush1.bf16.msra.mxu0 %v788
  %1128 = vmatprep.subr.bf16.mxu0 0
  %1129 = vmatpush1.bf16.msra.mxu0 %v789
  %1130 = vmatprep.subr.bf16.mxu0 0
  %1131 = vmatpush1.bf16.msra.mxu0 %v790
  %1132 = vmatprep.mubr.bf16.mxu0 %v289
  %1133 = vmatmul.mubr.bf16.gmra.mrb[0].mxu0 %v288
  %v1134 = vpop.f32.mrb[0].mxu0
  %v1135 = vadd.f32 %v1094, %v1134
  %v1136 = vpop.f32.mrb[0].mxu0
  %v1137 = vpop.f32.mrb[0].mxu0
  %v1138 = vadd.f32 %v1097, %v1137
  %v1139 = vpop.f32.mrb[0].mxu0
  %1140 = vdwg.mxu0
  %1141 = vmatprep.subr.bf16.mxu0 0
  %1142 = vmatpush1.bf16.msra.mxu0 %v791
  %1143 = vmatprep.subr.bf16.mxu0 0
  %1144 = vmatpush1.bf16.msra.mxu0 %v792
  %1145 = vmatprep.subr.bf16.mxu0 0
  %1146 = vmatpush1.bf16.msra.mxu0 0
  %1147 = vmatprep.subr.bf16.mxu0 0
  %1148 = vmatpush1.bf16.msra.mxu0 0
  %1149 = vmatprep.subr.bf16.mxu0 0
  %1150 = vmatpush1.bf16.msra.mxu0 0
  %1151 = vmatprep.subr.bf16.mxu0 0
  %1152 = vmatpush1.bf16.msra.mxu0 0
  %1153 = vmatprep.subr.bf16.mxu0 0
  %1154 = vmatpush1.bf16.msra.mxu0 0
  %1155 = vmatprep.subr.bf16.mxu0 0
  %1156 = vmatpush1.bf16.msra.mxu0 0
  %1157 = vmatprep.subr.bf16.mxu0 0
  %1158 = vmatpush1.bf16.msra.mxu0 0
  %1159 = vmatprep.subr.bf16.mxu0 0
  %1160 = vmatpush1.bf16.msra.mxu0 0
  %1161 = vmatprep.subr.bf16.mxu0 0
  %1162 = vmatpush1.bf16.msra.mxu0 0
  %1163 = vmatprep.subr.bf16.mxu0 0
  %1164 = vmatpush1.bf16.msra.mxu0 0
  %1165 = vmatprep.subr.bf16.mxu0 0
  %1166 = vmatpush1.bf16.msra.mxu0 0
  %1167 = vmatprep.subr.bf16.mxu0 0
  %1168 = vmatpush1.bf16.msra.mxu0 0
  %1169 = vmatprep.subr.bf16.mxu0 0
  %1170 = vmatpush1.bf16.msra.mxu0 0
  %1171 = vmatprep.subr.bf16.mxu0 0
  %1172 = vmatpush1.bf16.msra.mxu0 0
  %1173 = vmatprep.mubr.bf16.mxu0 0
  %1174 = vmatmul.mubr.bf16.gmra.mrb[0].mxu0 %v893
  %v1175 = vpop.f32.mrb[0].mxu0
  %v1176 = vadd.f32 %v1135, %v1175
  %v1177 = vpop.f32.mrb[0].mxu0
  %v1178 = vpop.f32.mrb[0].mxu0
  %v1179 = vadd.f32 %v1138, %v1178
  %v1180 = vpop.f32.mrb[0].mxu0
  %1181 = vdwg.mxu0
  %v1182 = vld [vmem:[%s3] sm:$0xf]
  %v1183 = vld [vmem:[%s3 + $0x4] sm:$0xf]
  %v1184 = vld [vmem:[%s3 + $0x8] sm:$0xf]
  %v1185 = vld [vmem:[%s3 + $0xc] sm:$0xf]
  %v1186 = vld [vmem:[%s3 + $0x10] sm:$0xf]
  %v1187 = vld [vmem:[%s3 + $0x14] sm:$0xf]
  %v1188 = vld [vmem:[%s3 + $0x18] sm:$0xf]
  %v1189 = vld [vmem:[%s3 + $0x1c] sm:$0xf]
  %v1190 = vld [vmem:[%s3 + $0x20] sm:$0xf]
  %v1191 = vld [vmem:[%s3 + $0x24] sm:$0xf]
  %v1192 = vld [vmem:[%s3 + $0x28] sm:$0xf]
  %v1193 = vld [vmem:[%s3 + $0x2c] sm:$0xf]
  %v1194 = vld [vmem:[%s3 + $0x30] sm:$0xf]
  %v1195 = vld [vmem:[%s3 + $0x34] sm:$0xf]
  %v1196 = vld [vmem:[%s3 + $0x38] sm:$0xf]
  %v1197 = vld [vmem:[%s3 + $0x3c] sm:$0xf]
  %v1198 = vunpack.c.l.bf16 %v1182
  %v1199 = vunpack.c.l.bf16 %v1183
  %v1200 = vunpack.c.l.bf16 %v1184
  %v1201 = vunpack.c.l.bf16 %v1185
  %v1202 = vunpack.c.l.bf16 %v1186
  %v1203 = vunpack.c.l.bf16 %v1187
  %v1204 = vunpack.c.l.bf16 %v1188
  %v1205 = vunpack.c.l.bf16 %v1189
  %v1206 = vunpack.c.l.bf16 %v1190
  %v1207 = vunpack.c.l.bf16 %v1191
  %v1208 = vunpack.c.l.bf16 %v1192
  %v1209 = vunpack.c.l.bf16 %v1193
  %v1210 = vunpack.c.l.bf16 %v1194
  %v1211 = vunpack.c.l.bf16 %v1195
  %v1212 = vunpack.c.l.bf16 %v1196
  %v1213 = vunpack.c.l.bf16 %v1197
  %v1214 = vld [vmem:[%s4] sm:$0x1]
  %v1216 = vlaneseq
  %v1217 = vshrl.u32 %v1216, 7
  %v1218 = vsub.s32 0, %v1217
  %v1219 = vrot.slane %v1214, %v1218
  %1221 = vmatprep.subr.mxu0 0.0
  %1222 = vmatpush1.msra.mxu0 %v1198
  %1223 = vmatprep.subr.mxu0 0.0
  %1224 = vmatpush1.msra.mxu0 %v1199
  %1225 = vmatprep.subr.mxu0 0.0
  %1226 = vmatpush1.msra.mxu0 %v1200
  %1227 = vmatprep.subr.mxu0 0.0
  %1228 = vmatpush1.msra.mxu0 %v1201
  %1229 = vmatprep.subr.mxu0 0.0
  %1230 = vmatpush1.msra.mxu0 %v1202
  %1231 = vmatprep.subr.mxu0 0.0
  %1232 = vmatpush1.msra.mxu0 %v1203
  %1233 = vmatprep.subr.mxu0 0.0
  %1234 = vmatpush1.msra.mxu0 %v1204
  %1235 = vmatprep.subr.mxu0 0.0
  %1236 = vmatpush1.msra.mxu0 %v1205
  %1237 = vmatprep.subr.mxu0 0.0
  %1238 = vmatpush1.msra.mxu0 %v1206
  %1239 = vmatprep.subr.mxu0 0.0
  %1240 = vmatpush1.msra.mxu0 %v1207
  %1241 = vmatprep.subr.mxu0 0.0
  %1242 = vmatpush1.msra.mxu0 %v1208
  %1243 = vmatprep.subr.mxu0 0.0
  %1244 = vmatpush1.msra.mxu0 %v1209
  %1245 = vmatprep.subr.mxu0 0.0
  %1246 = vmatpush1.msra.mxu0 %v1210
  %1247 = vmatprep.subr.mxu0 0.0
  %1248 = vmatpush1.msra.mxu0 %v1211
  %1249 = vmatprep.subr.mxu0 0.0
  %1250 = vmatpush1.msra.mxu0 %v1212
  %1251 = vmatprep.subr.mxu0 0.0
  %1252 = vmatpush1.msra.mxu0 %v1213
  %1253 = vmatprep.subr.mxu0 0.0
  %1254 = vmatpush1.msra.mxu0 0.0
  %1255 = vmatprep.subr.mxu0 0.0
  %1256 = vmatpush1.msra.mxu0 0.0
  %1257 = vmatprep.subr.mxu0 0.0
  %1258 = vmatpush1.msra.mxu0 0.0
  %1259 = vmatprep.subr.mxu0 0.0
  %1260 = vmatpush1.msra.mxu0 0.0
  %1261 = vmatprep.subr.mxu0 0.0
  %1262 = vmatpush1.msra.mxu0 0.0
  %1263 = vmatprep.subr.mxu0 0.0
  %1264 = vmatpush1.msra.mxu0 0.0
  %1265 = vmatprep.subr.mxu0 0.0
  %1266 = vmatpush1.msra.mxu0 0.0
  %1267 = vmatprep.subr.mxu0 0.0
  %1268 = vmatpush1.msra.mxu0 0.0
  %1269 = vmatprep.subr.mxu0 0.0
  %1270 = vmatpush1.msra.mxu0 0.0
  %1271 = vmatprep.subr.mxu0 0.0
  %1272 = vmatpush1.msra.mxu0 0.0
  %1273 = vmatprep.subr.mxu0 0.0
  %1274 = vmatpush1.msra.mxu0 0.0
  %1275 = vmatprep.subr.mxu0 0.0
  %1276 = vmatpush1.msra.mxu0 0.0
  %1277 = vmatprep.subr.mxu0 0.0
  %1278 = vmatpush1.msra.mxu0 0.0
  %1279 = vmatprep.subr.mxu0 0.0
  %1280 = vmatpush1.msra.mxu0 0.0
  %1281 = vmatprep.subr.mxu0 0.0
  %1282 = vmatpush1.msra.mxu0 0.0
  %1283 = vmatprep.subr.mxu0 0.0
  %1284 = vmatpush1.msra.mxu0 0.0
  %1285 = vmatprep.mubr.f32.mxu0 0.0
  %1286 = vmatmul.mubr.f32.gmra.mrb[0].mxu0 %v1176
  %v1287 = vpop.f32.mrb[0].mxu0
  %v1288 = vadd.f32 %v1219, %v1287
  %v1289 = vpop.f32.mrb[0].mxu0
  %1290 = vmatprep.mubr.f32.mxu0 0.0
  %1291 = vmatmul.mubr.f32.gmra.mrb[0].mxu0 %v1179
  %v1292 = vpop.f32.mrb[0].mxu0
  %v1293 = vadd.f32 %v1219, %v1292
  %v1294 = vpop.f32.mrb[0].mxu0
  %1295 = vdwg.mxu0
  %1296 = vst [vmem:[%s5] sm:$0xff] %v1288
  %1297 = vst [vmem:[%s5 + $0x8] sm:$0xff] %v1293
  // Predicated region
  $region22: #{_lambda_.9} parent=0 // pred_check
    _
  $region23: #{_lambda_.9} parent=0 // pred_check_branch
    %1299 = sbr.rel (0) target = $region25
  $region24: #{_lambda_.9} parent=0 // pred_region
    _
  $region25: #{_lambda_.9} parent=0 // pred_fallthru
    _
  // Predicated region
  $region26: #{_lambda_.9} parent=0 // pred_check
    _
  $region27: #{_lambda_.9} parent=0 // pred_check_branch
    %1301 = sbr.rel (0) target = $region29
  $region28: #{_lambda_.9} parent=0 // pred_region
    _
  $region29: #{_lambda_.9} parent=0 // pred_fallthru
    _

</llo_original>
